<compile_context>
chip_gen: v5e
topology: v5e:2x2
jax: 0.10.0
libtpu: 0.0.40
codegen_flags: <defaults>
</compile_context>

<pallas_src>
import functools

import jax
import jax.numpy as jnp
from jax.experimental import pallas as pl
from jax.experimental.pallas import tpu as pltpu


def _round_up(n, m):
    return ((n + m - 1) // m) * m


def _sigmoid(x):
    # sigmoid(x) == 0.5 * (tanh(0.5 * x) + 1): EUP tanh + VPU FMA, no exact divide.
    return 0.5 * jnp.tanh(0.5 * x) + 0.5


# ----------------------------------------------------------------------------
# Fused Pallas kernel (all layers + FC, single grid-less invocation)
# ----------------------------------------------------------------------------
def make_fused_lstm_kernel(T, B_pad, Hp, num_layers):
    """Kernel ref layout:
         x (T*B_pad, D),
         per layer: wih (D_in, 4*Hp), whh (Hp, 4*Hp), bias (1, 4*Hp),
         fc_w (Hp, C_pad), fc_b (1, C_pad),
         out (B_pad, C_pad),
         scratch: xproj (T*B_pad, 4*Hp) [, hseq (T*B_pad, Hp) if num_layers > 1].
       Gate g occupies lanes [g*Hp, (g+1)*Hp); pad lanes carry exact zeros."""
    multi_layer = num_layers > 1

    def kernel(*refs):
        x_ref = refs[0]
        layer_refs = [tuple(refs[1 + 3 * l: 4 + 3 * l]) for l in range(num_layers)]
        fcw_ref, fcb_ref, out_ref = refs[1 + 3 * num_layers: 4 + 3 * num_layers]
        xproj_ref = refs[4 + 3 * num_layers]
        hseq_ref = refs[5 + 3 * num_layers] if multi_layer else None

        h = None
        for l, (wih_ref, whh_ref, b_ref) in enumerate(layer_refs):
            last_layer = l == num_layers - 1
            wih = wih_ref[...]
            layer_in = x_ref[...] if l == 0 else hseq_ref[...]
            # One input projection over ALL timesteps (good MXU occupancy),
            # staged in VMEM scratch: only ~4 vregs/step are loaded below.
            xproj_ref[...] = (
                jnp.dot(layer_in.astype(wih.dtype), wih,
                        preferred_element_type=jnp.float32)
                + b_ref[...]
            )

            whh = whh_ref[...]                      # resident for the whole layer
            h = jnp.zeros((B_pad, Hp), jnp.float32)
            c = jnp.zeros((B_pad, Hp), jnp.float32)
            for t in range(T):                      # static unroll (T is small)
                # sublane-aligned static slice (B_pad is a multiple of 8, f32)
                g = xproj_ref[t * B_pad:(t + 1) * B_pad, :] + jnp.dot(
                    h.astype(whh.dtype), whh, preferred_element_type=jnp.float32
                )                                   # (B_pad, 4*Hp), f32
                # lane-aligned 128-wide gate groups (PyTorch order i, f, g, o)
                i_g = _sigmoid(g[:, 0 * Hp:1 * Hp])
                f_g = _sigmoid(g[:, 1 * Hp:2 * Hp])
                g_g = jnp.tanh(g[:, 2 * Hp:3 * Hp])
                o_g = _sigmoid(g[:, 3 * Hp:4 * Hp])
                c = f_g * c + i_g * g_g
                h = o_g * jnp.tanh(c)
                if not last_layer:
                    hseq_ref[t * B_pad:(t + 1) * B_pad, :] = h

        fcw = fcw_ref[...]
        logits = (
            jnp.dot(h.astype(fcw.dtype), fcw, preferred_element_type=jnp.float32)
            + fcb_ref[...]
        )                                           # (B_pad, C_pad)
        out_ref[...] = logits.astype(out_ref.dtype)  # lane-dense, unmasked store

    return kernel


# ----------------------------------------------------------------------------
# One-time parameter preparation (transpose + gate/lane padding + bias fuse)
# ----------------------------------------------------------------------------
def prepare_params(params, *, weight_dtype=jnp.float32):
    """PyTorch-layout params -> Pallas-friendly padded layout.

    Per layer: wih (D_in, 4*Hp), whh (Hp, 4*Hp), bias (1, 4*Hp); gate g lives in
    lane group [g*Hp, g*Hp+H); padded lanes/rows are zero.  FC: (Hp, C_pad), (1, C_pad).
    Weights optionally cast to bf16 (v6e/v7x MXU-native); biases stay f32 because
    they are added to the f32 accumulation.
    """
    H4 = params["lstm"][0][0].shape[0]
    H = H4 // 4
    Hp = _round_up(max(H, 128), 128)
    C = params["fc_w"].shape[0]
    Cp = _round_up(max(C, 128), 128)

    layers = []
    for li, (w_ih, w_hh, b_ih, b_hh) in enumerate(params["lstm"]):
        d_in = w_ih.shape[1]
        d_in_p = d_in if li == 0 else Hp            # deeper layers consume padded h
        wih = jnp.transpose(w_ih.reshape(4, H, d_in), (2, 0, 1))       # (d_in, 4, H)
        wih = jnp.pad(wih, ((0, d_in_p - d_in), (0, 0), (0, Hp - H)))
        wih = wih.reshape(d_in_p, 4 * Hp).astype(weight_dtype)
        whh = jnp.transpose(w_hh.reshape(4, H, H), (2, 0, 1))          # (H, 4, H)
        whh = jnp.pad(whh, ((0, Hp - H), (0, 0), (0, Hp - H)))
        whh = whh.reshape(Hp, 4 * Hp).astype(weight_dtype)
        b = jnp.pad((b_ih + b_hh).reshape(4, H), ((0, 0), (0, Hp - H)))
        b = b.reshape(1, 4 * Hp).astype(jnp.float32)
        layers.append((wih, whh, b))

    fc_w = jnp.pad(jnp.transpose(params["fc_w"]), ((0, Hp - H), (0, Cp - C)))
    fc_w = fc_w.astype(weight_dtype)                                   # (Hp, C_pad)
    fc_b = jnp.pad(params["fc_b"].reshape(1, -1), ((0, 0), (0, Cp - C)))
    return {"layers": tuple(layers), "fc_w": fc_w, "fc_b": fc_b, "num_classes": C}


# ----------------------------------------------------------------------------
# Forward (single fused pallas_call)
# ----------------------------------------------------------------------------
@functools.partial(jax.jit, static_argnames=("num_classes",))
def _forward(x, layers, fc_w, fc_b, *, num_classes):
    B, T, D = x.shape
    num_layers = len(layers)
    Hp = layers[0][1].shape[0]
    Cp = fc_w.shape[1]
    B_pad = _round_up(max(B, 8), 8)

    xt = jnp.transpose(x, (1, 0, 2))                     # (T, B, D) time-major
    xt = jnp.pad(xt, ((0, 0), (0, B_pad - B), (0, 0)))   # pad batch to 8 sublanes
    x_flat = xt.reshape(T * B_pad, D).astype(jnp.float32)

    args = [x_flat]
    for wih, whh, b in layers:
        args.extend((wih, whh, b))
    args.extend((fc_w, fc_b))

    scratch_shapes = [pltpu.VMEM((T * B_pad, 4 * Hp), jnp.float32)]   # xproj slab
    scratch_bytes = T * B_pad * 4 * Hp * 4
    if num_layers > 1:
        scratch_shapes.append(pltpu.VMEM((T * B_pad, Hp), jnp.float32))  # hseq
        scratch_bytes += T * B_pad * Hp * 4

    total_bytes = sum(int(a.size) * a.dtype.itemsize for a in args)
    total_bytes += B_pad * Cp * 4 + scratch_bytes
    vmem_limit = int(min(128 * 1024 * 1024,
                         max(32 * 1024 * 1024, 2 * total_bytes + (2 << 20))))

    kernel = make_fused_lstm_kernel(T, B_pad, Hp, num_layers)
    vmem = pl.BlockSpec(memory_space=pltpu.MemorySpace.VMEM)
    out_full = pl.pallas_call(
        kernel,
        out_shape=jax.ShapeDtypeStruct((B_pad, Cp), jnp.float32),
        in_specs=[vmem] * len(args),
        out_specs=vmem,
        scratch_shapes=scratch_shapes,
        compiler_params=pltpu.CompilerParams(vmem_limit_bytes=vmem_limit),
    )(*args)
    return out_full[:B, :num_classes]


def lstm_model_forward(x, prep):
    """Equivalent of LSTM.forward: x (B, T, D) -> logits (B, num_classes)."""
    return _forward(x, prep["layers"], prep["fc_w"], prep["fc_b"],
                    num_classes=prep["num_classes"])


# ----------------------------------------------------------------------------
# Pure-JAX reference (for correctness check)
# ----------------------------------------------------------------------------
def lstm_model_ref(x, params):
    xt = jnp.transpose(x, (1, 0, 2))
    for (w_ih, w_hh, b_ih, b_hh) in params["lstm"]:
        H = w_hh.shape[1]
        B = xt.shape[1]

        def step(carry, x_t):
            h, c = carry
            gates = x_t @ w_ih.T + h @ w_hh.T + b_ih + b_hh
            i = jax.nn.sigmoid(gates[:, :H])
            f = jax.nn.sigmoid(gates[:, H:2 * H])
            g = jnp.tanh(gates[:, 2 * H:3 * H])
            o = jax.nn.sigmoid(gates[:, 3 * H:])
            c = f * c + i * g
            h = o * jnp.tanh(c)
            return (h, c), h

        init = (jnp.zeros((B, H), jnp.float32), jnp.zeros((B, H), jnp.float32))
        _, xt = jax.lax.scan(step, init, xt)
    return xt[-1] @ params["fc_w"].T + params["fc_b"]


# ----------------------------------------------------------------------------
# Deterministic parameter init (PyTorch-style uniform(-1/sqrt(H), 1/sqrt(H)))
# ----------------------------------------------------------------------------
def init_params(key, inp_size, hidden_size, num_layers, num_classes):
    k = 1.0 / jnp.sqrt(hidden_size)
    layers = []
    for layer in range(num_layers):
        d_in = inp_size if layer == 0 else hidden_size
        key, k1, k2, k3, k4 = jax.random.split(key, 5)
        layers.append((
            jax.random.uniform(k1, (4 * hidden_size, d_in), jnp.float32, -k, k),
            jax.random.uniform(k2, (4 * hidden_size, hidden_size), jnp.float32, -k, k),
            jax.random.uniform(k3, (4 * hidden_size,), jnp.float32, -k, k),
            jax.random.uniform(k4, (4 * hidden_size,), jnp.float32, -k, k),
        ))
    key, k5, k6 = jax.random.split(key, 3)
    fc_w = jax.random.uniform(k5, (num_classes, hidden_size), jnp.float32, -k, k)
    fc_b = jax.random.uniform(k6, (num_classes,), jnp.float32, -k, k)
    return {"lstm": layers, "fc_w": fc_w, "fc_b": fc_b}


# ----------------------------------------------------------------------------
if __name__ == "__main__":
    B, T = 2, 8
    INP, HID, LAYERS, CLASSES = 16, 32, 2, 5

    key = jax.random.PRNGKey(0)
    key, xkey = jax.random.split(key)
    x = jax.random.normal(xkey, (B, T, INP), jnp.float32)
    params = init_params(key, INP, HID, LAYERS, CLASSES)
    ref = lstm_model_ref(x, params)

    # f32 weights: exact against the pure-JAX reference.
    prep_f32 = prepare_params(params, weight_dtype=jnp.float32)
    out = jax.block_until_ready(lstm_model_forward(x, prep_f32))
    assert out.shape == (B, CLASSES)
    assert jnp.allclose(out, ref, rtol=1e-4, atol=1e-4), (
        f"f32 mismatch: max abs diff {jnp.max(jnp.abs(out - ref))}"
    )

    # bf16 weights (MXU-native on v6e/v7x); c / accumulation / nonlinearities stay f32.
    prep_bf16 = prepare_params(params, weight_dtype=jnp.bfloat16)
    out_bf16 = jax.block_until_ready(lstm_model_forward(x, prep_bf16))
    assert out_bf16.shape == (B, CLASSES)
    assert jnp.allclose(out_bf16, ref, rtol=5e-2, atol=5e-2), (
        f"bf16 mismatch: max abs diff {jnp.max(jnp.abs(out_bf16 - ref))}"
    )

    print("KERNEL_OK")
</pallas_src>

<mosaic_0001>
module attributes {stable_mosaic.version = 11 : i64} {
  func.func @kernel(%arg0: memref<64x16xf32, #tpu.memory_space<vmem>>, %arg1: memref<16x512xf32, #tpu.memory_space<vmem>>, %arg2: memref<128x512xf32, #tpu.memory_space<vmem>>, %arg3: memref<1x512xf32, #tpu.memory_space<vmem>>, %arg4: memref<128x512xf32, #tpu.memory_space<vmem>>, %arg5: memref<128x512xf32, #tpu.memory_space<vmem>>, %arg6: memref<1x512xf32, #tpu.memory_space<vmem>>, %arg7: memref<128x128xf32, #tpu.memory_space<vmem>>, %arg8: memref<1x128xf32, #tpu.memory_space<vmem>>, %arg9: memref<8x128xf32, #tpu.memory_space<vmem>>, %arg10: memref<64x512xf32, #tpu.memory_space<vmem>>, %arg11: memref<64x128xf32, #tpu.memory_space<vmem>>) attributes {dimension_semantics = [], scalar_prefetch = 0 : i64, scratch_operands = 2 : i64, tpu.core_type = #tpu.core_type<tc>} {
    %c0 = arith.constant 0 : index
    %c0_0 = arith.constant 0 : index
    %0 = vector.load %arg1[%c0, %c0_0] : memref<16x512xf32, #tpu.memory_space<vmem>>, vector<16x512xf32>
    %c0_1 = arith.constant 0 : index
    %c0_2 = arith.constant 0 : index
    %1 = vector.load %arg0[%c0_1, %c0_2] : memref<64x16xf32, #tpu.memory_space<vmem>>, vector<64x16xf32>
    %cst = arith.constant dense<0.000000e+00> : vector<64x512xf32>
    %2 = tpu.matmul %1, %0, %cst {dimension_numbers = #tpu.dot_dimension_numbers<[1], [0], [0], [1], [0, 0, 1, 1], [], []>} : vector<64x16xf32>, vector<16x512xf32>, vector<64x512xf32> -> vector<64x512xf32>
    %c0_3 = arith.constant 0 : index
    %c0_4 = arith.constant 0 : index
    %3 = vector.load %arg3[%c0_3, %c0_4] : memref<1x512xf32, #tpu.memory_space<vmem>>, vector<1x512xf32>
    %4 = vector.broadcast %3 : vector<1x512xf32> to vector<64x512xf32>
    %5 = arith.addf %2, %4 : vector<64x512xf32>
    %c0_5 = arith.constant 0 : index
    %c0_6 = arith.constant 0 : index
    %6 = vector.load %arg10[%c0_5, %c0_6] : memref<64x512xf32, #tpu.memory_space<vmem>>, vector<64x512xf32>
    tpu.vector_store %arg10[%c0_5, %c0_6], %5 {strides = array<i32>} : memref<64x512xf32, #tpu.memory_space<vmem>>, vector<64x512xf32>,
    %c0_7 = arith.constant 0 : index
    %c0_8 = arith.constant 0 : index
    %7 = vector.load %arg2[%c0_7, %c0_8] : memref<128x512xf32, #tpu.memory_space<vmem>>, vector<128x512xf32>
    %cst_9 = arith.constant 0.000000e+00 : f32
    %8 = vector.broadcast %cst_9 : f32 to vector<8x128xf32>
    %cst_10 = arith.constant 0.000000e+00 : f32
    %9 = vector.broadcast %cst_10 : f32 to vector<8x128xf32>
    %c0_11 = arith.constant 0 : index
    %c0_12 = arith.constant 0 : index
    %10 = vector.load %arg10[%c0_11, %c0_12] : memref<64x512xf32, #tpu.memory_space<vmem>>, vector<8x512xf32>
    %cst_13 = arith.constant dense<0.000000e+00> : vector<8x512xf32>
    %11 = tpu.matmul %8, %7, %cst_13 {dimension_numbers = #tpu.dot_dimension_numbers<[1], [0], [0], [1], [0, 0, 1, 1], [], []>} : vector<8x128xf32>, vector<128x512xf32>, vector<8x512xf32> -> vector<8x512xf32>
    %12 = arith.addf %10, %11 : vector<8x512xf32>
    %13 = vector.extract_strided_slice %12 {offsets = [0, 0], sizes = [8, 128], strides = [1, 1]} : vector<8x512xf32> to vector<8x128xf32>
    %cst_14 = arith.constant 5.000000e-01 : f32
    %14 = vector.broadcast %cst_14 : f32 to vector<8x128xf32>
    %15 = arith.mulf %14, %13 : vector<8x128xf32>
    %16 = math.tanh %15 : vector<8x128xf32>
    %cst_15 = arith.constant 5.000000e-01 : f32
    %17 = vector.broadcast %cst_15 : f32 to vector<8x128xf32>
    %18 = arith.mulf %17, %16 : vector<8x128xf32>
    %cst_16 = arith.constant 5.000000e-01 : f32
    %19 = vector.broadcast %cst_16 : f32 to vector<8x128xf32>
    %20 = arith.addf %18, %19 : vector<8x128xf32>
    %21 = vector.extract_strided_slice %12 {offsets = [0, 128], sizes = [8, 128], strides = [1, 1]} : vector<8x512xf32> to vector<8x128xf32>
    %cst_17 = arith.constant 5.000000e-01 : f32
    %22 = vector.broadcast %cst_17 : f32 to vector<8x128xf32>
    %23 = arith.mulf %22, %21 : vector<8x128xf32>
    %24 = math.tanh %23 : vector<8x128xf32>
    %cst_18 = arith.constant 5.000000e-01 : f32
    %25 = vector.broadcast %cst_18 : f32 to vector<8x128xf32>
    %26 = arith.mulf %25, %24 : vector<8x128xf32>
    %cst_19 = arith.constant 5.000000e-01 : f32
    %27 = vector.broadcast %cst_19 : f32 to vector<8x128xf32>
    %28 = arith.addf %26, %27 : vector<8x128xf32>
    %29 = vector.extract_strided_slice %12 {offsets = [0, 256], sizes = [8, 128], strides = [1, 1]} : vector<8x512xf32> to vector<8x128xf32>
    %30 = math.tanh %29 : vector<8x128xf32>
    %31 = vector.extract_strided_slice %12 {offsets = [0, 384], sizes = [8, 128], strides = [1, 1]} : vector<8x512xf32> to vector<8x128xf32>
    %cst_20 = arith.constant 5.000000e-01 : f32
    %32 = vector.broadcast %cst_20 : f32 to vector<8x128xf32>
    %33 = arith.mulf %32, %31 : vector<8x128xf32>
    %34 = math.tanh %33 : vector<8x128xf32>
    %cst_21 = arith.constant 5.000000e-01 : f32
    %35 = vector.broadcast %cst_21 : f32 to vector<8x128xf32>
    %36 = arith.mulf %35, %34 : vector<8x128xf32>
    %cst_22 = arith.constant 5.000000e-01 : f32
    %37 = vector.broadcast %cst_22 : f32 to vector<8x128xf32>
    %38 = arith.addf %36, %37 : vector<8x128xf32>
    %39 = arith.mulf %28, %9 : vector<8x128xf32>
    %40 = arith.mulf %20, %30 : vector<8x128xf32>
    %41 = arith.addf %39, %40 : vector<8x128xf32>
    %42 = math.tanh %41 : vector<8x128xf32>
    %43 = arith.mulf %38, %42 : vector<8x128xf32>
    %c0_23 = arith.constant 0 : index
    %c0_24 = arith.constant 0 : index
    %44 = vector.load %arg11[%c0_23, %c0_24] : memref<64x128xf32, #tpu.memory_space<vmem>>, vector<8x128xf32>
    tpu.vector_store %arg11[%c0_23, %c0_24], %43 {strides = array<i32>} : memref<64x128xf32, #tpu.memory_space<vmem>>, vector<8x128xf32>,
    %c8 = arith.constant 8 : index
    %c0_25 = arith.constant 0 : index
    %45 = vector.load %arg10[%c8, %c0_25] : memref<64x512xf32, #tpu.memory_space<vmem>>, vector<8x512xf32>
    %cst_26 = arith.constant dense<0.000000e+00> : vector<8x512xf32>
    %46 = tpu.matmul %43, %7, %cst_26 {dimension_numbers = #tpu.dot_dimension_numbers<[1], [0], [0], [1], [0, 0, 1, 1], [], []>} : vector<8x128xf32>, vector<128x512xf32>, vector<8x512xf32> -> vector<8x512xf32>
    %47 = arith.addf %45, %46 : vector<8x512xf32>
    %48 = vector.extract_strided_slice %47 {offsets = [0, 0], sizes = [8, 128], strides = [1, 1]} : vector<8x512xf32> to vector<8x128xf32>
    %cst_27 = arith.constant 5.000000e-01 : f32
    %49 = vector.broadcast %cst_27 : f32 to vector<8x128xf32>
    %50 = arith.mulf %49, %48 : vector<8x128xf32>
    %51 = math.tanh %50 : vector<8x128xf32>
    %cst_28 = arith.constant 5.000000e-01 : f32
    %52 = vector.broadcast %cst_28 : f32 to vector<8x128xf32>
    %53 = arith.mulf %52, %51 : vector<8x128xf32>
    %cst_29 = arith.constant 5.000000e-01 : f32
    %54 = vector.broadcast %cst_29 : f32 to vector<8x128xf32>
    %55 = arith.addf %53, %54 : vector<8x128xf32>
    %56 = vector.extract_strided_slice %47 {offsets = [0, 128], sizes = [8, 128], strides = [1, 1]} : vector<8x512xf32> to vector<8x128xf32>
    %cst_30 = arith.constant 5.000000e-01 : f32
    %57 = vector.broadcast %cst_30 : f32 to vector<8x128xf32>
    %58 = arith.mulf %57, %56 : vector<8x128xf32>
    %59 = math.tanh %58 : vector<8x128xf32>
    %cst_31 = arith.constant 5.000000e-01 : f32
    %60 = vector.broadcast %cst_31 : f32 to vector<8x128xf32>
    %61 = arith.mulf %60, %59 : vector<8x128xf32>
    %cst_32 = arith.constant 5.000000e-01 : f32
    %62 = vector.broadcast %cst_32 : f32 to vector<8x128xf32>
    %63 = arith.addf %61, %62 : vector<8x128xf32>
    %64 = vector.extract_strided_slice %47 {offsets = [0, 256], sizes = [8, 128], strides = [1, 1]} : vector<8x512xf32> to vector<8x128xf32>
    %65 = math.tanh %64 : vector<8x128xf32>
    %66 = vector.extract_strided_slice %47 {offsets = [0, 384], sizes = [8, 128], strides = [1, 1]} : vector<8x512xf32> to vector<8x128xf32>
    %cst_33 = arith.constant 5.000000e-01 : f32
    %67 = vector.broadcast %cst_33 : f32 to vector<8x128xf32>
    %68 = arith.mulf %67, %66 : vector<8x128xf32>
    %69 = math.tanh %68 : vector<8x128xf32>
    %cst_34 = arith.constant 5.000000e-01 : f32
    %70 = vector.broadcast %cst_34 : f32 to vector<8x128xf32>
    %71 = arith.mulf %70, %69 : vector<8x128xf32>
    %cst_35 = arith.constant 5.000000e-01 : f32
    %72 = vector.broadcast %cst_35 : f32 to vector<8x128xf32>
    %73 = arith.addf %71, %72 : vector<8x128xf32>
    %74 = arith.mulf %63, %41 : vector<8x128xf32>
    %75 = arith.mulf %55, %65 : vector<8x128xf32>
    %76 = arith.addf %74, %75 : vector<8x128xf32>
    %77 = math.tanh %76 : vector<8x128xf32>
    %78 = arith.mulf %73, %77 : vector<8x128xf32>
    %c8_36 = arith.constant 8 : index
    %c0_37 = arith.constant 0 : index
    %79 = vector.load %arg11[%c8_36, %c0_37] : memref<64x128xf32, #tpu.memory_space<vmem>>, vector<8x128xf32>
    tpu.vector_store %arg11[%c8_36, %c0_37], %78 {strides = array<i32>} : memref<64x128xf32, #tpu.memory_space<vmem>>, vector<8x128xf32>,
    %c16 = arith.constant 16 : index
    %c0_38 = arith.constant 0 : index
    %80 = vector.load %arg10[%c16, %c0_38] : memref<64x512xf32, #tpu.memory_space<vmem>>, vector<8x512xf32>
    %cst_39 = arith.constant dense<0.000000e+00> : vector<8x512xf32>
    %81 = tpu.matmul %78, %7, %cst_39 {dimension_numbers = #tpu.dot_dimension_numbers<[1], [0], [0], [1], [0, 0, 1, 1], [], []>} : vector<8x128xf32>, vector<128x512xf32>, vector<8x512xf32> -> vector<8x512xf32>
    %82 = arith.addf %80, %81 : vector<8x512xf32>
    %83 = vector.extract_strided_slice %82 {offsets = [0, 0], sizes = [8, 128], strides = [1, 1]} : vector<8x512xf32> to vector<8x128xf32>
    %cst_40 = arith.constant 5.000000e-01 : f32
    %84 = vector.broadcast %cst_40 : f32 to vector<8x128xf32>
    %85 = arith.mulf %84, %83 : vector<8x128xf32>
    %86 = math.tanh %85 : vector<8x128xf32>
    %cst_41 = arith.constant 5.000000e-01 : f32
    %87 = vector.broadcast %cst_41 : f32 to vector<8x128xf32>
    %88 = arith.mulf %87, %86 : vector<8x128xf32>
    %cst_42 = arith.constant 5.000000e-01 : f32
    %89 = vector.broadcast %cst_42 : f32 to vector<8x128xf32>
    %90 = arith.addf %88, %89 : vector<8x128xf32>
    %91 = vector.extract_strided_slice %82 {offsets = [0, 128], sizes = [8, 128], strides = [1, 1]} : vector<8x512xf32> to vector<8x128xf32>
    %cst_43 = arith.constant 5.000000e-01 : f32
    %92 = vector.broadcast %cst_43 : f32 to vector<8x128xf32>
    %93 = arith.mulf %92, %91 : vector<8x128xf32>
    %94 = math.tanh %93 : vector<8x128xf32>
    %cst_44 = arith.constant 5.000000e-01 : f32
    %95 = vector.broadcast %cst_44 : f32 to vector<8x128xf32>
    %96 = arith.mulf %95, %94 : vector<8x128xf32>
    %cst_45 = arith.constant 5.000000e-01 : f32
    %97 = vector.broadcast %cst_45 : f32 to vector<8x128xf32>
    %98 = arith.addf %96, %97 : vector<8x128xf32>
    %99 = vector.extract_strided_slice %82 {offsets = [0, 256], sizes = [8, 128], strides = [1, 1]} : vector<8x512xf32> to vector<8x128xf32>
    %100 = math.tanh %99 : vector<8x128xf32>
    %101 = vector.extract_strided_slice %82 {offsets = [0, 384], sizes = [8, 128], strides = [1, 1]} : vector<8x512xf32> to vector<8x128xf32>
    %cst_46 = arith.constant 5.000000e-01 : f32
    %102 = vector.broadcast %cst_46 : f32 to vector<8x128xf32>
    %103 = arith.mulf %102, %101 : vector<8x128xf32>
    %104 = math.tanh %103 : vector<8x128xf32>
    %cst_47 = arith.constant 5.000000e-01 : f32
    %105 = vector.broadcast %cst_47 : f32 to vector<8x128xf32>
    %106 = arith.mulf %105, %104 : vector<8x128xf32>
    %cst_48 = arith.constant 5.000000e-01 : f32
    %107 = vector.broadcast %cst_48 : f32 to vector<8x128xf32>
    %108 = arith.addf %106, %107 : vector<8x128xf32>
    %109 = arith.mulf %98, %76 : vector<8x128xf32>
    %110 = arith.mulf %90, %100 : vector<8x128xf32>
    %111 = arith.addf %109, %110 : vector<8x128xf32>
    %112 = math.tanh %111 : vector<8x128xf32>
    %113 = arith.mulf %108, %112 : vector<8x128xf32>
    %c16_49 = arith.constant 16 : index
    %c0_50 = arith.constant 0 : index
    %114 = vector.load %arg11[%c16_49, %c0_50] : memref<64x128xf32, #tpu.memory_space<vmem>>, vector<8x128xf32>
    tpu.vector_store %arg11[%c16_49, %c0_50], %113 {strides = array<i32>} : memref<64x128xf32, #tpu.memory_space<vmem>>, vector<8x128xf32>,
    %c24 = arith.constant 24 : index
    %c0_51 = arith.constant 0 : index
    %115 = vector.load %arg10[%c24, %c0_51] : memref<64x512xf32, #tpu.memory_space<vmem>>, vector<8x512xf32>
    %cst_52 = arith.constant dense<0.000000e+00> : vector<8x512xf32>
    %116 = tpu.matmul %113, %7, %cst_52 {dimension_numbers = #tpu.dot_dimension_numbers<[1], [0], [0], [1], [0, 0, 1, 1], [], []>} : vector<8x128xf32>, vector<128x512xf32>, vector<8x512xf32> -> vector<8x512xf32>
    %117 = arith.addf %115, %116 : vector<8x512xf32>
    %118 = vector.extract_strided_slice %117 {offsets = [0, 0], sizes = [8, 128], strides = [1, 1]} : vector<8x512xf32> to vector<8x128xf32>
    %cst_53 = arith.constant 5.000000e-01 : f32
    %119 = vector.broadcast %cst_53 : f32 to vector<8x128xf32>
    %120 = arith.mulf %119, %118 : vector<8x128xf32>
    %121 = math.tanh %120 : vector<8x128xf32>
    %cst_54 = arith.constant 5.000000e-01 : f32
    %122 = vector.broadcast %cst_54 : f32 to vector<8x128xf32>
    %123 = arith.mulf %122, %121 : vector<8x128xf32>
    %cst_55 = arith.constant 5.000000e-01 : f32
    %124 = vector.broadcast %cst_55 : f32 to vector<8x128xf32>
    %125 = arith.addf %123, %124 : vector<8x128xf32>
    %126 = vector.extract_strided_slice %117 {offsets = [0, 128], sizes = [8, 128], strides = [1, 1]} : vector<8x512xf32> to vector<8x128xf32>
    %cst_56 = arith.constant 5.000000e-01 : f32
    %127 = vector.broadcast %cst_56 : f32 to vector<8x128xf32>
    %128 = arith.mulf %127, %126 : vector<8x128xf32>
    %129 = math.tanh %128 : vector<8x128xf32>
    %cst_57 = arith.constant 5.000000e-01 : f32
    %130 = vector.broadcast %cst_57 : f32 to vector<8x128xf32>
    %131 = arith.mulf %130, %129 : vector<8x128xf32>
    %cst_58 = arith.constant 5.000000e-01 : f32
    %132 = vector.broadcast %cst_58 : f32 to vector<8x128xf32>
    %133 = arith.addf %131, %132 : vector<8x128xf32>
    %134 = vector.extract_strided_slice %117 {offsets = [0, 256], sizes = [8, 128], strides = [1, 1]} : vector<8x512xf32> to vector<8x128xf32>
    %135 = math.tanh %134 : vector<8x128xf32>
    %136 = vector.extract_strided_slice %117 {offsets = [0, 384], sizes = [8, 128], strides = [1, 1]} : vector<8x512xf32> to vector<8x128xf32>
    %cst_59 = arith.constant 5.000000e-01 : f32
    %137 = vector.broadcast %cst_59 : f32 to vector<8x128xf32>
    %138 = arith.mulf %137, %136 : vector<8x128xf32>
    %139 = math.tanh %138 : vector<8x128xf32>
    %cst_60 = arith.constant 5.000000e-01 : f32
    %140 = vector.broadcast %cst_60 : f32 to vector<8x128xf32>
    %141 = arith.mulf %140, %139 : vector<8x128xf32>
    %cst_61 = arith.constant 5.000000e-01 : f32
    %142 = vector.broadcast %cst_61 : f32 to vector<8x128xf32>
    %143 = arith.addf %141, %142 : vector<8x128xf32>
    %144 = arith.mulf %133, %111 : vector<8x128xf32>
    %145 = arith.mulf %125, %135 : vector<8x128xf32>
    %146 = arith.addf %144, %145 : vector<8x128xf32>
    %147 = math.tanh %146 : vector<8x128xf32>
    %148 = arith.mulf %143, %147 : vector<8x128xf32>
    %c24_62 = arith.constant 24 : index
    %c0_63 = arith.constant 0 : index
    %149 = vector.load %arg11[%c24_62, %c0_63] : memref<64x128xf32, #tpu.memory_space<vmem>>, vector<8x128xf32>
    tpu.vector_store %arg11[%c24_62, %c0_63], %148 {strides = array<i32>} : memref<64x128xf32, #tpu.memory_space<vmem>>, vector<8x128xf32>,
    %c32 = arith.constant 32 : index
    %c0_64 = arith.constant 0 : index
    %150 = vector.load %arg10[%c32, %c0_64] : memref<64x512xf32, #tpu.memory_space<vmem>>, vector<8x512xf32>
    %cst_65 = arith.constant dense<0.000000e+00> : vector<8x512xf32>
    %151 = tpu.matmul %148, %7, %cst_65 {dimension_numbers = #tpu.dot_dimension_numbers<[1], [0], [0], [1], [0, 0, 1, 1], [], []>} : vector<8x128xf32>, vector<128x512xf32>, vector<8x512xf32> -> vector<8x512xf32>
    %152 = arith.addf %150, %151 : vector<8x512xf32>
    %153 = vector.extract_strided_slice %152 {offsets = [0, 0], sizes = [8, 128], strides = [1, 1]} : vector<8x512xf32> to vector<8x128xf32>
    %cst_66 = arith.constant 5.000000e-01 : f32
    %154 = vector.broadcast %cst_66 : f32 to vector<8x128xf32>
    %155 = arith.mulf %154, %153 : vector<8x128xf32>
    %156 = math.tanh %155 : vector<8x128xf32>
    %cst_67 = arith.constant 5.000000e-01 : f32
    %157 = vector.broadcast %cst_67 : f32 to vector<8x128xf32>
    %158 = arith.mulf %157, %156 : vector<8x128xf32>
    %cst_68 = arith.constant 5.000000e-01 : f32
    %159 = vector.broadcast %cst_68 : f32 to vector<8x128xf32>
    %160 = arith.addf %158, %159 : vector<8x128xf32>
    %161 = vector.extract_strided_slice %152 {offsets = [0, 128], sizes = [8, 128], strides = [1, 1]} : vector<8x512xf32> to vector<8x128xf32>
    %cst_69 = arith.constant 5.000000e-01 : f32
    %162 = vector.broadcast %cst_69 : f32 to vector<8x128xf32>
    %163 = arith.mulf %162, %161 : vector<8x128xf32>
    %164 = math.tanh %163 : vector<8x128xf32>
    %cst_70 = arith.constant 5.000000e-01 : f32
    %165 = vector.broadcast %cst_70 : f32 to vector<8x128xf32>
    %166 = arith.mulf %165, %164 : vector<8x128xf32>
    %cst_71 = arith.constant 5.000000e-01 : f32
    %167 = vector.broadcast %cst_71 : f32 to vector<8x128xf32>
    %168 = arith.addf %166, %167 : vector<8x128xf32>
    %169 = vector.extract_strided_slice %152 {offsets = [0, 256], sizes = [8, 128], strides = [1, 1]} : vector<8x512xf32> to vector<8x128xf32>
    %170 = math.tanh %169 : vector<8x128xf32>
    %171 = vector.extract_strided_slice %152 {offsets = [0, 384], sizes = [8, 128], strides = [1, 1]} : vector<8x512xf32> to vector<8x128xf32>
    %cst_72 = arith.constant 5.000000e-01 : f32
    %172 = vector.broadcast %cst_72 : f32 to vector<8x128xf32>
    %173 = arith.mulf %172, %171 : vector<8x128xf32>
    %174 = math.tanh %173 : vector<8x128xf32>
    %cst_73 = arith.constant 5.000000e-01 : f32
    %175 = vector.broadcast %cst_73 : f32 to vector<8x128xf32>
    %176 = arith.mulf %175, %174 : vector<8x128xf32>
    %cst_74 = arith.constant 5.000000e-01 : f32
    %177 = vector.broadcast %cst_74 : f32 to vector<8x128xf32>
    %178 = arith.addf %176, %177 : vector<8x128xf32>
    %179 = arith.mulf %168, %146 : vector<8x128xf32>
    %180 = arith.mulf %160, %170 : vector<8x128xf32>
    %181 = arith.addf %179, %180 : vector<8x128xf32>
    %182 = math.tanh %181 : vector<8x128xf32>
    %183 = arith.mulf %178, %182 : vector<8x128xf32>
    %c32_75 = arith.constant 32 : index
    %c0_76 = arith.constant 0 : index
    %184 = vector.load %arg11[%c32_75, %c0_76] : memref<64x128xf32, #tpu.memory_space<vmem>>, vector<8x128xf32>
    tpu.vector_store %arg11[%c32_75, %c0_76], %183 {strides = array<i32>} : memref<64x128xf32, #tpu.memory_space<vmem>>, vector<8x128xf32>,
    %c40 = arith.constant 40 : index
    %c0_77 = arith.constant 0 : index
    %185 = vector.load %arg10[%c40, %c0_77] : memref<64x512xf32, #tpu.memory_space<vmem>>, vector<8x512xf32>
    %cst_78 = arith.constant dense<0.000000e+00> : vector<8x512xf32>
    %186 = tpu.matmul %183, %7, %cst_78 {dimension_numbers = #tpu.dot_dimension_numbers<[1], [0], [0], [1], [0, 0, 1, 1], [], []>} : vector<8x128xf32>, vector<128x512xf32>, vector<8x512xf32> -> vector<8x512xf32>
    %187 = arith.addf %185, %186 : vector<8x512xf32>
    %188 = vector.extract_strided_slice %187 {offsets = [0, 0], sizes = [8, 128], strides = [1, 1]} : vector<8x512xf32> to vector<8x128xf32>
    %cst_79 = arith.constant 5.000000e-01 : f32
    %189 = vector.broadcast %cst_79 : f32 to vector<8x128xf32>
    %190 = arith.mulf %189, %188 : vector<8x128xf32>
    %191 = math.tanh %190 : vector<8x128xf32>
    %cst_80 = arith.constant 5.000000e-01 : f32
    %192 = vector.broadcast %cst_80 : f32 to vector<8x128xf32>
    %193 = arith.mulf %192, %191 : vector<8x128xf32>
    %cst_81 = arith.constant 5.000000e-01 : f32
    %194 = vector.broadcast %cst_81 : f32 to vector<8x128xf32>
    %195 = arith.addf %193, %194 : vector<8x128xf32>
    %196 = vector.extract_strided_slice %187 {offsets = [0, 128], sizes = [8, 128], strides = [1, 1]} : vector<8x512xf32> to vector<8x128xf32>
    %cst_82 = arith.constant 5.000000e-01 : f32
    %197 = vector.broadcast %cst_82 : f32 to vector<8x128xf32>
    %198 = arith.mulf %197, %196 : vector<8x128xf32>
    %199 = math.tanh %198 : vector<8x128xf32>
    %cst_83 = arith.constant 5.000000e-01 : f32
    %200 = vector.broadcast %cst_83 : f32 to vector<8x128xf32>
    %201 = arith.mulf %200, %199 : vector<8x128xf32>
    %cst_84 = arith.constant 5.000000e-01 : f32
    %202 = vector.broadcast %cst_84 : f32 to vector<8x128xf32>
    %203 = arith.addf %201, %202 : vector<8x128xf32>
    %204 = vector.extract_strided_slice %187 {offsets = [0, 256], sizes = [8, 128], strides = [1, 1]} : vector<8x512xf32> to vector<8x128xf32>
    %205 = math.tanh %204 : vector<8x128xf32>
    %206 = vector.extract_strided_slice %187 {offsets = [0, 384], sizes = [8, 128], strides = [1, 1]} : vector<8x512xf32> to vector<8x128xf32>
    %cst_85 = arith.constant 5.000000e-01 : f32
    %207 = vector.broadcast %cst_85 : f32 to vector<8x128xf32>
    %208 = arith.mulf %207, %206 : vector<8x128xf32>
    %209 = math.tanh %208 : vector<8x128xf32>
    %cst_86 = arith.constant 5.000000e-01 : f32
    %210 = vector.broadcast %cst_86 : f32 to vector<8x128xf32>
    %211 = arith.mulf %210, %209 : vector<8x128xf32>
    %cst_87 = arith.constant 5.000000e-01 : f32
    %212 = vector.broadcast %cst_87 : f32 to vector<8x128xf32>
    %213 = arith.addf %211, %212 : vector<8x128xf32>
    %214 = arith.mulf %203, %181 : vector<8x128xf32>
    %215 = arith.mulf %195, %205 : vector<8x128xf32>
    %216 = arith.addf %214, %215 : vector<8x128xf32>
    %217 = math.tanh %216 : vector<8x128xf32>
    %218 = arith.mulf %213, %217 : vector<8x128xf32>
    %c40_88 = arith.constant 40 : index
    %c0_89 = arith.constant 0 : index
    %219 = vector.load %arg11[%c40_88, %c0_89] : memref<64x128xf32, #tpu.memory_space<vmem>>, vector<8x128xf32>
    tpu.vector_store %arg11[%c40_88, %c0_89], %218 {strides = array<i32>} : memref<64x128xf32, #tpu.memory_space<vmem>>, vector<8x128xf32>,
    %c48 = arith.constant 48 : index
    %c0_90 = arith.constant 0 : index
    %220 = vector.load %arg10[%c48, %c0_90] : memref<64x512xf32, #tpu.memory_space<vmem>>, vector<8x512xf32>
    %cst_91 = arith.constant dense<0.000000e+00> : vector<8x512xf32>
    %221 = tpu.matmul %218, %7, %cst_91 {dimension_numbers = #tpu.dot_dimension_numbers<[1], [0], [0], [1], [0, 0, 1, 1], [], []>} : vector<8x128xf32>, vector<128x512xf32>, vector<8x512xf32> -> vector<8x512xf32>
    %222 = arith.addf %220, %221 : vector<8x512xf32>
    %223 = vector.extract_strided_slice %222 {offsets = [0, 0], sizes = [8, 128], strides = [1, 1]} : vector<8x512xf32> to vector<8x128xf32>
    %cst_92 = arith.constant 5.000000e-01 : f32
    %224 = vector.broadcast %cst_92 : f32 to vector<8x128xf32>
    %225 = arith.mulf %224, %223 : vector<8x128xf32>
    %226 = math.tanh %225 : vector<8x128xf32>
    %cst_93 = arith.constant 5.000000e-01 : f32
    %227 = vector.broadcast %cst_93 : f32 to vector<8x128xf32>
    %228 = arith.mulf %227, %226 : vector<8x128xf32>
    %cst_94 = arith.constant 5.000000e-01 : f32
    %229 = vector.broadcast %cst_94 : f32 to vector<8x128xf32>
    %230 = arith.addf %228, %229 : vector<8x128xf32>
    %231 = vector.extract_strided_slice %222 {offsets = [0, 128], sizes = [8, 128], strides = [1, 1]} : vector<8x512xf32> to vector<8x128xf32>
    %cst_95 = arith.constant 5.000000e-01 : f32
    %232 = vector.broadcast %cst_95 : f32 to vector<8x128xf32>
    %233 = arith.mulf %232, %231 : vector<8x128xf32>
    %234 = math.tanh %233 : vector<8x128xf32>
    %cst_96 = arith.constant 5.000000e-01 : f32
    %235 = vector.broadcast %cst_96 : f32 to vector<8x128xf32>
    %236 = arith.mulf %235, %234 : vector<8x128xf32>
    %cst_97 = arith.constant 5.000000e-01 : f32
    %237 = vector.broadcast %cst_97 : f32 to vector<8x128xf32>
    %238 = arith.addf %236, %237 : vector<8x128xf32>
    %239 = vector.extract_strided_slice %222 {offsets = [0, 256], sizes = [8, 128], strides = [1, 1]} : vector<8x512xf32> to vector<8x128xf32>
    %240 = math.tanh %239 : vector<8x128xf32>
    %241 = vector.extract_strided_slice %222 {offsets = [0, 384], sizes = [8, 128], strides = [1, 1]} : vector<8x512xf32> to vector<8x128xf32>
    %cst_98 = arith.constant 5.000000e-01 : f32
    %242 = vector.broadcast %cst_98 : f32 to vector<8x128xf32>
    %243 = arith.mulf %242, %241 : vector<8x128xf32>
    %244 = math.tanh %243 : vector<8x128xf32>
    %cst_99 = arith.constant 5.000000e-01 : f32
    %245 = vector.broadcast %cst_99 : f32 to vector<8x128xf32>
    %246 = arith.mulf %245, %244 : vector<8x128xf32>
    %cst_100 = arith.constant 5.000000e-01 : f32
    %247 = vector.broadcast %cst_100 : f32 to vector<8x128xf32>
    %248 = arith.addf %246, %247 : vector<8x128xf32>
    %249 = arith.mulf %238, %216 : vector<8x128xf32>
    %250 = arith.mulf %230, %240 : vector<8x128xf32>
    %251 = arith.addf %249, %250 : vector<8x128xf32>
    %252 = math.tanh %251 : vector<8x128xf32>
    %253 = arith.mulf %248, %252 : vector<8x128xf32>
    %c48_101 = arith.constant 48 : index
    %c0_102 = arith.constant 0 : index
    %254 = vector.load %arg11[%c48_101, %c0_102] : memref<64x128xf32, #tpu.memory_space<vmem>>, vector<8x128xf32>
    tpu.vector_store %arg11[%c48_101, %c0_102], %253 {strides = array<i32>} : memref<64x128xf32, #tpu.memory_space<vmem>>, vector<8x128xf32>,
    %c56 = arith.constant 56 : index
    %c0_103 = arith.constant 0 : index
    %255 = vector.load %arg10[%c56, %c0_103] : memref<64x512xf32, #tpu.memory_space<vmem>>, vector<8x512xf32>
    %cst_104 = arith.constant dense<0.000000e+00> : vector<8x512xf32>
    %256 = tpu.matmul %253, %7, %cst_104 {dimension_numbers = #tpu.dot_dimension_numbers<[1], [0], [0], [1], [0, 0, 1, 1], [], []>} : vector<8x128xf32>, vector<128x512xf32>, vector<8x512xf32> -> vector<8x512xf32>
    %257 = arith.addf %255, %256 : vector<8x512xf32>
    %258 = vector.extract_strided_slice %257 {offsets = [0, 0], sizes = [8, 128], strides = [1, 1]} : vector<8x512xf32> to vector<8x128xf32>
    %cst_105 = arith.constant 5.000000e-01 : f32
    %259 = vector.broadcast %cst_105 : f32 to vector<8x128xf32>
    %260 = arith.mulf %259, %258 : vector<8x128xf32>
    %261 = math.tanh %260 : vector<8x128xf32>
    %cst_106 = arith.constant 5.000000e-01 : f32
    %262 = vector.broadcast %cst_106 : f32 to vector<8x128xf32>
    %263 = arith.mulf %262, %261 : vector<8x128xf32>
    %cst_107 = arith.constant 5.000000e-01 : f32
    %264 = vector.broadcast %cst_107 : f32 to vector<8x128xf32>
    %265 = arith.addf %263, %264 : vector<8x128xf32>
    %266 = vector.extract_strided_slice %257 {offsets = [0, 128], sizes = [8, 128], strides = [1, 1]} : vector<8x512xf32> to vector<8x128xf32>
    %cst_108 = arith.constant 5.000000e-01 : f32
    %267 = vector.broadcast %cst_108 : f32 to vector<8x128xf32>
    %268 = arith.mulf %267, %266 : vector<8x128xf32>
    %269 = math.tanh %268 : vector<8x128xf32>
    %cst_109 = arith.constant 5.000000e-01 : f32
    %270 = vector.broadcast %cst_109 : f32 to vector<8x128xf32>
    %271 = arith.mulf %270, %269 : vector<8x128xf32>
    %cst_110 = arith.constant 5.000000e-01 : f32
    %272 = vector.broadcast %cst_110 : f32 to vector<8x128xf32>
    %273 = arith.addf %271, %272 : vector<8x128xf32>
    %274 = vector.extract_strided_slice %257 {offsets = [0, 256], sizes = [8, 128], strides = [1, 1]} : vector<8x512xf32> to vector<8x128xf32>
    %275 = math.tanh %274 : vector<8x128xf32>
    %276 = vector.extract_strided_slice %257 {offsets = [0, 384], sizes = [8, 128], strides = [1, 1]} : vector<8x512xf32> to vector<8x128xf32>
    %cst_111 = arith.constant 5.000000e-01 : f32
    %277 = vector.broadcast %cst_111 : f32 to vector<8x128xf32>
    %278 = arith.mulf %277, %276 : vector<8x128xf32>
    %279 = math.tanh %278 : vector<8x128xf32>
    %cst_112 = arith.constant 5.000000e-01 : f32
    %280 = vector.broadcast %cst_112 : f32 to vector<8x128xf32>
    %281 = arith.mulf %280, %279 : vector<8x128xf32>
    %cst_113 = arith.constant 5.000000e-01 : f32
    %282 = vector.broadcast %cst_113 : f32 to vector<8x128xf32>
    %283 = arith.addf %281, %282 : vector<8x128xf32>
    %284 = arith.mulf %273, %251 : vector<8x128xf32>
    %285 = arith.mulf %265, %275 : vector<8x128xf32>
    %286 = arith.addf %284, %285 : vector<8x128xf32>
    %287 = math.tanh %286 : vector<8x128xf32>
    %288 = arith.mulf %283, %287 : vector<8x128xf32>
    %c56_114 = arith.constant 56 : index
    %c0_115 = arith.constant 0 : index
    %289 = vector.load %arg11[%c56_114, %c0_115] : memref<64x128xf32, #tpu.memory_space<vmem>>, vector<8x128xf32>
    tpu.vector_store %arg11[%c56_114, %c0_115], %288 {strides = array<i32>} : memref<64x128xf32, #tpu.memory_space<vmem>>, vector<8x128xf32>,
    %c0_116 = arith.constant 0 : index
    %c0_117 = arith.constant 0 : index
    %290 = vector.load %arg4[%c0_116, %c0_117] : memref<128x512xf32, #tpu.memory_space<vmem>>, vector<128x512xf32>
    %c0_118 = arith.constant 0 : index
    %c0_119 = arith.constant 0 : index
    %291 = vector.load %arg11[%c0_118, %c0_119] : memref<64x128xf32, #tpu.memory_space<vmem>>, vector<64x128xf32>
    %cst_120 = arith.constant dense<0.000000e+00> : vector<64x512xf32>
    %292 = tpu.matmul %291, %290, %cst_120 {dimension_numbers = #tpu.dot_dimension_numbers<[1], [0], [0], [1], [0, 0, 1, 1], [], []>} : vector<64x128xf32>, vector<128x512xf32>, vector<64x512xf32> -> vector<64x512xf32>
    %c0_121 = arith.constant 0 : index
    %c0_122 = arith.constant 0 : index
    %293 = vector.load %arg6[%c0_121, %c0_122] : memref<1x512xf32, #tpu.memory_space<vmem>>, vector<1x512xf32>
    %294 = vector.broadcast %293 : vector<1x512xf32> to vector<64x512xf32>
    %295 = arith.addf %292, %294 : vector<64x512xf32>
    %c0_123 = arith.constant 0 : index
    %c0_124 = arith.constant 0 : index
    %296 = vector.load %arg10[%c0_123, %c0_124] : memref<64x512xf32, #tpu.memory_space<vmem>>, vector<64x512xf32>
    tpu.vector_store %arg10[%c0_123, %c0_124], %295 {strides = array<i32>} : memref<64x512xf32, #tpu.memory_space<vmem>>, vector<64x512xf32>,
    %c0_125 = arith.constant 0 : index
    %c0_126 = arith.constant 0 : index
    %297 = vector.load %arg5[%c0_125, %c0_126] : memref<128x512xf32, #tpu.memory_space<vmem>>, vector<128x512xf32>
    %cst_127 = arith.constant 0.000000e+00 : f32
    %298 = vector.broadcast %cst_127 : f32 to vector<8x128xf32>
    %cst_128 = arith.constant 0.000000e+00 : f32
    %299 = vector.broadcast %cst_128 : f32 to vector<8x128xf32>
    %c0_129 = arith.constant 0 : index
    %c0_130 = arith.constant 0 : index
    %300 = vector.load %arg10[%c0_129, %c0_130] : memref<64x512xf32, #tpu.memory_space<vmem>>, vector<8x512xf32>
    %cst_131 = arith.constant dense<0.000000e+00> : vector<8x512xf32>
    %301 = tpu.matmul %298, %297, %cst_131 {dimension_numbers = #tpu.dot_dimension_numbers<[1], [0], [0], [1], [0, 0, 1, 1], [], []>} : vector<8x128xf32>, vector<128x512xf32>, vector<8x512xf32> -> vector<8x512xf32>
    %302 = arith.addf %300, %301 : vector<8x512xf32>
    %303 = vector.extract_strided_slice %302 {offsets = [0, 0], sizes = [8, 128], strides = [1, 1]} : vector<8x512xf32> to vector<8x128xf32>
    %cst_132 = arith.constant 5.000000e-01 : f32
    %304 = vector.broadcast %cst_132 : f32 to vector<8x128xf32>
    %305 = arith.mulf %304, %303 : vector<8x128xf32>
    %306 = math.tanh %305 : vector<8x128xf32>
    %cst_133 = arith.constant 5.000000e-01 : f32
    %307 = vector.broadcast %cst_133 : f32 to vector<8x128xf32>
    %308 = arith.mulf %307, %306 : vector<8x128xf32>
    %cst_134 = arith.constant 5.000000e-01 : f32
    %309 = vector.broadcast %cst_134 : f32 to vector<8x128xf32>
    %310 = arith.addf %308, %309 : vector<8x128xf32>
    %311 = vector.extract_strided_slice %302 {offsets = [0, 128], sizes = [8, 128], strides = [1, 1]} : vector<8x512xf32> to vector<8x128xf32>
    %cst_135 = arith.constant 5.000000e-01 : f32
    %312 = vector.broadcast %cst_135 : f32 to vector<8x128xf32>
    %313 = arith.mulf %312, %311 : vector<8x128xf32>
    %314 = math.tanh %313 : vector<8x128xf32>
    %cst_136 = arith.constant 5.000000e-01 : f32
    %315 = vector.broadcast %cst_136 : f32 to vector<8x128xf32>
    %316 = arith.mulf %315, %314 : vector<8x128xf32>
    %cst_137 = arith.constant 5.000000e-01 : f32
    %317 = vector.broadcast %cst_137 : f32 to vector<8x128xf32>
    %318 = arith.addf %316, %317 : vector<8x128xf32>
    %319 = vector.extract_strided_slice %302 {offsets = [0, 256], sizes = [8, 128], strides = [1, 1]} : vector<8x512xf32> to vector<8x128xf32>
    %320 = math.tanh %319 : vector<8x128xf32>
    %321 = vector.extract_strided_slice %302 {offsets = [0, 384], sizes = [8, 128], strides = [1, 1]} : vector<8x512xf32> to vector<8x128xf32>
    %cst_138 = arith.constant 5.000000e-01 : f32
    %322 = vector.broadcast %cst_138 : f32 to vector<8x128xf32>
    %323 = arith.mulf %322, %321 : vector<8x128xf32>
    %324 = math.tanh %323 : vector<8x128xf32>
    %cst_139 = arith.constant 5.000000e-01 : f32
    %325 = vector.broadcast %cst_139 : f32 to vector<8x128xf32>
    %326 = arith.mulf %325, %324 : vector<8x128xf32>
    %cst_140 = arith.constant 5.000000e-01 : f32
    %327 = vector.broadcast %cst_140 : f32 to vector<8x128xf32>
    %328 = arith.addf %326, %327 : vector<8x128xf32>
    %329 = arith.mulf %318, %299 : vector<8x128xf32>
    %330 = arith.mulf %310, %320 : vector<8x128xf32>
    %331 = arith.addf %329, %330 : vector<8x128xf32>
    %332 = math.tanh %331 : vector<8x128xf32>
    %333 = arith.mulf %328, %332 : vector<8x128xf32>
    %c8_141 = arith.constant 8 : index
    %c0_142 = arith.constant 0 : index
    %334 = vector.load %arg10[%c8_141, %c0_142] : memref<64x512xf32, #tpu.memory_space<vmem>>, vector<8x512xf32>
    %cst_143 = arith.constant dense<0.000000e+00> : vector<8x512xf32>
    %335 = tpu.matmul %333, %297, %cst_143 {dimension_numbers = #tpu.dot_dimension_numbers<[1], [0], [0], [1], [0, 0, 1, 1], [], []>} : vector<8x128xf32>, vector<128x512xf32>, vector<8x512xf32> -> vector<8x512xf32>
    %336 = arith.addf %334, %335 : vector<8x512xf32>
    %337 = vector.extract_strided_slice %336 {offsets = [0, 0], sizes = [8, 128], strides = [1, 1]} : vector<8x512xf32> to vector<8x128xf32>
    %cst_144 = arith.constant 5.000000e-01 : f32
    %338 = vector.broadcast %cst_144 : f32 to vector<8x128xf32>
    %339 = arith.mulf %338, %337 : vector<8x128xf32>
    %340 = math.tanh %339 : vector<8x128xf32>
    %cst_145 = arith.constant 5.000000e-01 : f32
    %341 = vector.broadcast %cst_145 : f32 to vector<8x128xf32>
    %342 = arith.mulf %341, %340 : vector<8x128xf32>
    %cst_146 = arith.constant 5.000000e-01 : f32
    %343 = vector.broadcast %cst_146 : f32 to vector<8x128xf32>
    %344 = arith.addf %342, %343 : vector<8x128xf32>
    %345 = vector.extract_strided_slice %336 {offsets = [0, 128], sizes = [8, 128], strides = [1, 1]} : vector<8x512xf32> to vector<8x128xf32>
    %cst_147 = arith.constant 5.000000e-01 : f32
    %346 = vector.broadcast %cst_147 : f32 to vector<8x128xf32>
    %347 = arith.mulf %346, %345 : vector<8x128xf32>
    %348 = math.tanh %347 : vector<8x128xf32>
    %cst_148 = arith.constant 5.000000e-01 : f32
    %349 = vector.broadcast %cst_148 : f32 to vector<8x128xf32>
    %350 = arith.mulf %349, %348 : vector<8x128xf32>
    %cst_149 = arith.constant 5.000000e-01 : f32
    %351 = vector.broadcast %cst_149 : f32 to vector<8x128xf32>
    %352 = arith.addf %350, %351 : vector<8x128xf32>
    %353 = vector.extract_strided_slice %336 {offsets = [0, 256], sizes = [8, 128], strides = [1, 1]} : vector<8x512xf32> to vector<8x128xf32>
    %354 = math.tanh %353 : vector<8x128xf32>
    %355 = vector.extract_strided_slice %336 {offsets = [0, 384], sizes = [8, 128], strides = [1, 1]} : vector<8x512xf32> to vector<8x128xf32>
    %cst_150 = arith.constant 5.000000e-01 : f32
    %356 = vector.broadcast %cst_150 : f32 to vector<8x128xf32>
    %357 = arith.mulf %356, %355 : vector<8x128xf32>
    %358 = math.tanh %357 : vector<8x128xf32>
    %cst_151 = arith.constant 5.000000e-01 : f32
    %359 = vector.broadcast %cst_151 : f32 to vector<8x128xf32>
    %360 = arith.mulf %359, %358 : vector<8x128xf32>
    %cst_152 = arith.constant 5.000000e-01 : f32
    %361 = vector.broadcast %cst_152 : f32 to vector<8x128xf32>
    %362 = arith.addf %360, %361 : vector<8x128xf32>
    %363 = arith.mulf %352, %331 : vector<8x128xf32>
    %364 = arith.mulf %344, %354 : vector<8x128xf32>
    %365 = arith.addf %363, %364 : vector<8x128xf32>
    %366 = math.tanh %365 : vector<8x128xf32>
    %367 = arith.mulf %362, %366 : vector<8x128xf32>
    %c16_153 = arith.constant 16 : index
    %c0_154 = arith.constant 0 : index
    %368 = vector.load %arg10[%c16_153, %c0_154] : memref<64x512xf32, #tpu.memory_space<vmem>>, vector<8x512xf32>
    %cst_155 = arith.constant dense<0.000000e+00> : vector<8x512xf32>
    %369 = tpu.matmul %367, %297, %cst_155 {dimension_numbers = #tpu.dot_dimension_numbers<[1], [0], [0], [1], [0, 0, 1, 1], [], []>} : vector<8x128xf32>, vector<128x512xf32>, vector<8x512xf32> -> vector<8x512xf32>
    %370 = arith.addf %368, %369 : vector<8x512xf32>
    %371 = vector.extract_strided_slice %370 {offsets = [0, 0], sizes = [8, 128], strides = [1, 1]} : vector<8x512xf32> to vector<8x128xf32>
    %cst_156 = arith.constant 5.000000e-01 : f32
    %372 = vector.broadcast %cst_156 : f32 to vector<8x128xf32>
    %373 = arith.mulf %372, %371 : vector<8x128xf32>
    %374 = math.tanh %373 : vector<8x128xf32>
    %cst_157 = arith.constant 5.000000e-01 : f32
    %375 = vector.broadcast %cst_157 : f32 to vector<8x128xf32>
    %376 = arith.mulf %375, %374 : vector<8x128xf32>
    %cst_158 = arith.constant 5.000000e-01 : f32
    %377 = vector.broadcast %cst_158 : f32 to vector<8x128xf32>
    %378 = arith.addf %376, %377 : vector<8x128xf32>
    %379 = vector.extract_strided_slice %370 {offsets = [0, 128], sizes = [8, 128], strides = [1, 1]} : vector<8x512xf32> to vector<8x128xf32>
    %cst_159 = arith.constant 5.000000e-01 : f32
    %380 = vector.broadcast %cst_159 : f32 to vector<8x128xf32>
    %381 = arith.mulf %380, %379 : vector<8x128xf32>
    %382 = math.tanh %381 : vector<8x128xf32>
    %cst_160 = arith.constant 5.000000e-01 : f32
    %383 = vector.broadcast %cst_160 : f32 to vector<8x128xf32>
    %384 = arith.mulf %383, %382 : vector<8x128xf32>
    %cst_161 = arith.constant 5.000000e-01 : f32
    %385 = vector.broadcast %cst_161 : f32 to vector<8x128xf32>
    %386 = arith.addf %384, %385 : vector<8x128xf32>
    %387 = vector.extract_strided_slice %370 {offsets = [0, 256], sizes = [8, 128], strides = [1, 1]} : vector<8x512xf32> to vector<8x128xf32>
    %388 = math.tanh %387 : vector<8x128xf32>
    %389 = vector.extract_strided_slice %370 {offsets = [0, 384], sizes = [8, 128], strides = [1, 1]} : vector<8x512xf32> to vector<8x128xf32>
    %cst_162 = arith.constant 5.000000e-01 : f32
    %390 = vector.broadcast %cst_162 : f32 to vector<8x128xf32>
    %391 = arith.mulf %390, %389 : vector<8x128xf32>
    %392 = math.tanh %391 : vector<8x128xf32>
    %cst_163 = arith.constant 5.000000e-01 : f32
    %393 = vector.broadcast %cst_163 : f32 to vector<8x128xf32>
    %394 = arith.mulf %393, %392 : vector<8x128xf32>
    %cst_164 = arith.constant 5.000000e-01 : f32
    %395 = vector.broadcast %cst_164 : f32 to vector<8x128xf32>
    %396 = arith.addf %394, %395 : vector<8x128xf32>
    %397 = arith.mulf %386, %365 : vector<8x128xf32>
    %398 = arith.mulf %378, %388 : vector<8x128xf32>
    %399 = arith.addf %397, %398 : vector<8x128xf32>
    %400 = math.tanh %399 : vector<8x128xf32>
    %401 = arith.mulf %396, %400 : vector<8x128xf32>
    %c24_165 = arith.constant 24 : index
    %c0_166 = arith.constant 0 : index
    %402 = vector.load %arg10[%c24_165, %c0_166] : memref<64x512xf32, #tpu.memory_space<vmem>>, vector<8x512xf32>
    %cst_167 = arith.constant dense<0.000000e+00> : vector<8x512xf32>
    %403 = tpu.matmul %401, %297, %cst_167 {dimension_numbers = #tpu.dot_dimension_numbers<[1], [0], [0], [1], [0, 0, 1, 1], [], []>} : vector<8x128xf32>, vector<128x512xf32>, vector<8x512xf32> -> vector<8x512xf32>
    %404 = arith.addf %402, %403 : vector<8x512xf32>
    %405 = vector.extract_strided_slice %404 {offsets = [0, 0], sizes = [8, 128], strides = [1, 1]} : vector<8x512xf32> to vector<8x128xf32>
    %cst_168 = arith.constant 5.000000e-01 : f32
    %406 = vector.broadcast %cst_168 : f32 to vector<8x128xf32>
    %407 = arith.mulf %406, %405 : vector<8x128xf32>
    %408 = math.tanh %407 : vector<8x128xf32>
    %cst_169 = arith.constant 5.000000e-01 : f32
    %409 = vector.broadcast %cst_169 : f32 to vector<8x128xf32>
    %410 = arith.mulf %409, %408 : vector<8x128xf32>
    %cst_170 = arith.constant 5.000000e-01 : f32
    %411 = vector.broadcast %cst_170 : f32 to vector<8x128xf32>
    %412 = arith.addf %410, %411 : vector<8x128xf32>
    %413 = vector.extract_strided_slice %404 {offsets = [0, 128], sizes = [8, 128], strides = [1, 1]} : vector<8x512xf32> to vector<8x128xf32>
    %cst_171 = arith.constant 5.000000e-01 : f32
    %414 = vector.broadcast %cst_171 : f32 to vector<8x128xf32>
    %415 = arith.mulf %414, %413 : vector<8x128xf32>
    %416 = math.tanh %415 : vector<8x128xf32>
    %cst_172 = arith.constant 5.000000e-01 : f32
    %417 = vector.broadcast %cst_172 : f32 to vector<8x128xf32>
    %418 = arith.mulf %417, %416 : vector<8x128xf32>
    %cst_173 = arith.constant 5.000000e-01 : f32
    %419 = vector.broadcast %cst_173 : f32 to vector<8x128xf32>
    %420 = arith.addf %418, %419 : vector<8x128xf32>
    %421 = vector.extract_strided_slice %404 {offsets = [0, 256], sizes = [8, 128], strides = [1, 1]} : vector<8x512xf32> to vector<8x128xf32>
    %422 = math.tanh %421 : vector<8x128xf32>
    %423 = vector.extract_strided_slice %404 {offsets = [0, 384], sizes = [8, 128], strides = [1, 1]} : vector<8x512xf32> to vector<8x128xf32>
    %cst_174 = arith.constant 5.000000e-01 : f32
    %424 = vector.broadcast %cst_174 : f32 to vector<8x128xf32>
    %425 = arith.mulf %424, %423 : vector<8x128xf32>
    %426 = math.tanh %425 : vector<8x128xf32>
    %cst_175 = arith.constant 5.000000e-01 : f32
    %427 = vector.broadcast %cst_175 : f32 to vector<8x128xf32>
    %428 = arith.mulf %427, %426 : vector<8x128xf32>
    %cst_176 = arith.constant 5.000000e-01 : f32
    %429 = vector.broadcast %cst_176 : f32 to vector<8x128xf32>
    %430 = arith.addf %428, %429 : vector<8x128xf32>
    %431 = arith.mulf %420, %399 : vector<8x128xf32>
    %432 = arith.mulf %412, %422 : vector<8x128xf32>
    %433 = arith.addf %431, %432 : vector<8x128xf32>
    %434 = math.tanh %433 : vector<8x128xf32>
    %435 = arith.mulf %430, %434 : vector<8x128xf32>
    %c32_177 = arith.constant 32 : index
    %c0_178 = arith.constant 0 : index
    %436 = vector.load %arg10[%c32_177, %c0_178] : memref<64x512xf32, #tpu.memory_space<vmem>>, vector<8x512xf32>
    %cst_179 = arith.constant dense<0.000000e+00> : vector<8x512xf32>
    %437 = tpu.matmul %435, %297, %cst_179 {dimension_numbers = #tpu.dot_dimension_numbers<[1], [0], [0], [1], [0, 0, 1, 1], [], []>} : vector<8x128xf32>, vector<128x512xf32>, vector<8x512xf32> -> vector<8x512xf32>
    %438 = arith.addf %436, %437 : vector<8x512xf32>
    %439 = vector.extract_strided_slice %438 {offsets = [0, 0], sizes = [8, 128], strides = [1, 1]} : vector<8x512xf32> to vector<8x128xf32>
    %cst_180 = arith.constant 5.000000e-01 : f32
    %440 = vector.broadcast %cst_180 : f32 to vector<8x128xf32>
    %441 = arith.mulf %440, %439 : vector<8x128xf32>
    %442 = math.tanh %441 : vector<8x128xf32>
    %cst_181 = arith.constant 5.000000e-01 : f32
    %443 = vector.broadcast %cst_181 : f32 to vector<8x128xf32>
    %444 = arith.mulf %443, %442 : vector<8x128xf32>
    %cst_182 = arith.constant 5.000000e-01 : f32
    %445 = vector.broadcast %cst_182 : f32 to vector<8x128xf32>
    %446 = arith.addf %444, %445 : vector<8x128xf32>
    %447 = vector.extract_strided_slice %438 {offsets = [0, 128], sizes = [8, 128], strides = [1, 1]} : vector<8x512xf32> to vector<8x128xf32>
    %cst_183 = arith.constant 5.000000e-01 : f32
    %448 = vector.broadcast %cst_183 : f32 to vector<8x128xf32>
    %449 = arith.mulf %448, %447 : vector<8x128xf32>
    %450 = math.tanh %449 : vector<8x128xf32>
    %cst_184 = arith.constant 5.000000e-01 : f32
    %451 = vector.broadcast %cst_184 : f32 to vector<8x128xf32>
    %452 = arith.mulf %451, %450 : vector<8x128xf32>
    %cst_185 = arith.constant 5.000000e-01 : f32
    %453 = vector.broadcast %cst_185 : f32 to vector<8x128xf32>
    %454 = arith.addf %452, %453 : vector<8x128xf32>
    %455 = vector.extract_strided_slice %438 {offsets = [0, 256], sizes = [8, 128], strides = [1, 1]} : vector<8x512xf32> to vector<8x128xf32>
    %456 = math.tanh %455 : vector<8x128xf32>
    %457 = vector.extract_strided_slice %438 {offsets = [0, 384], sizes = [8, 128], strides = [1, 1]} : vector<8x512xf32> to vector<8x128xf32>
    %cst_186 = arith.constant 5.000000e-01 : f32
    %458 = vector.broadcast %cst_186 : f32 to vector<8x128xf32>
    %459 = arith.mulf %458, %457 : vector<8x128xf32>
    %460 = math.tanh %459 : vector<8x128xf32>
    %cst_187 = arith.constant 5.000000e-01 : f32
    %461 = vector.broadcast %cst_187 : f32 to vector<8x128xf32>
    %462 = arith.mulf %461, %460 : vector<8x128xf32>
    %cst_188 = arith.constant 5.000000e-01 : f32
    %463 = vector.broadcast %cst_188 : f32 to vector<8x128xf32>
    %464 = arith.addf %462, %463 : vector<8x128xf32>
    %465 = arith.mulf %454, %433 : vector<8x128xf32>
    %466 = arith.mulf %446, %456 : vector<8x128xf32>
    %467 = arith.addf %465, %466 : vector<8x128xf32>
    %468 = math.tanh %467 : vector<8x128xf32>
    %469 = arith.mulf %464, %468 : vector<8x128xf32>
    %c40_189 = arith.constant 40 : index
    %c0_190 = arith.constant 0 : index
    %470 = vector.load %arg10[%c40_189, %c0_190] : memref<64x512xf32, #tpu.memory_space<vmem>>, vector<8x512xf32>
    %cst_191 = arith.constant dense<0.000000e+00> : vector<8x512xf32>
    %471 = tpu.matmul %469, %297, %cst_191 {dimension_numbers = #tpu.dot_dimension_numbers<[1], [0], [0], [1], [0, 0, 1, 1], [], []>} : vector<8x128xf32>, vector<128x512xf32>, vector<8x512xf32> -> vector<8x512xf32>
    %472 = arith.addf %470, %471 : vector<8x512xf32>
    %473 = vector.extract_strided_slice %472 {offsets = [0, 0], sizes = [8, 128], strides = [1, 1]} : vector<8x512xf32> to vector<8x128xf32>
    %cst_192 = arith.constant 5.000000e-01 : f32
    %474 = vector.broadcast %cst_192 : f32 to vector<8x128xf32>
    %475 = arith.mulf %474, %473 : vector<8x128xf32>
    %476 = math.tanh %475 : vector<8x128xf32>
    %cst_193 = arith.constant 5.000000e-01 : f32
    %477 = vector.broadcast %cst_193 : f32 to vector<8x128xf32>
    %478 = arith.mulf %477, %476 : vector<8x128xf32>
    %cst_194 = arith.constant 5.000000e-01 : f32
    %479 = vector.broadcast %cst_194 : f32 to vector<8x128xf32>
    %480 = arith.addf %478, %479 : vector<8x128xf32>
    %481 = vector.extract_strided_slice %472 {offsets = [0, 128], sizes = [8, 128], strides = [1, 1]} : vector<8x512xf32> to vector<8x128xf32>
    %cst_195 = arith.constant 5.000000e-01 : f32
    %482 = vector.broadcast %cst_195 : f32 to vector<8x128xf32>
    %483 = arith.mulf %482, %481 : vector<8x128xf32>
    %484 = math.tanh %483 : vector<8x128xf32>
    %cst_196 = arith.constant 5.000000e-01 : f32
    %485 = vector.broadcast %cst_196 : f32 to vector<8x128xf32>
    %486 = arith.mulf %485, %484 : vector<8x128xf32>
    %cst_197 = arith.constant 5.000000e-01 : f32
    %487 = vector.broadcast %cst_197 : f32 to vector<8x128xf32>
    %488 = arith.addf %486, %487 : vector<8x128xf32>
    %489 = vector.extract_strided_slice %472 {offsets = [0, 256], sizes = [8, 128], strides = [1, 1]} : vector<8x512xf32> to vector<8x128xf32>
    %490 = math.tanh %489 : vector<8x128xf32>
    %491 = vector.extract_strided_slice %472 {offsets = [0, 384], sizes = [8, 128], strides = [1, 1]} : vector<8x512xf32> to vector<8x128xf32>
    %cst_198 = arith.constant 5.000000e-01 : f32
    %492 = vector.broadcast %cst_198 : f32 to vector<8x128xf32>
    %493 = arith.mulf %492, %491 : vector<8x128xf32>
    %494 = math.tanh %493 : vector<8x128xf32>
    %cst_199 = arith.constant 5.000000e-01 : f32
    %495 = vector.broadcast %cst_199 : f32 to vector<8x128xf32>
    %496 = arith.mulf %495, %494 : vector<8x128xf32>
    %cst_200 = arith.constant 5.000000e-01 : f32
    %497 = vector.broadcast %cst_200 : f32 to vector<8x128xf32>
    %498 = arith.addf %496, %497 : vector<8x128xf32>
    %499 = arith.mulf %488, %467 : vector<8x128xf32>
    %500 = arith.mulf %480, %490 : vector<8x128xf32>
    %501 = arith.addf %499, %500 : vector<8x128xf32>
    %502 = math.tanh %501 : vector<8x128xf32>
    %503 = arith.mulf %498, %502 : vector<8x128xf32>
    %c48_201 = arith.constant 48 : index
    %c0_202 = arith.constant 0 : index
    %504 = vector.load %arg10[%c48_201, %c0_202] : memref<64x512xf32, #tpu.memory_space<vmem>>, vector<8x512xf32>
    %cst_203 = arith.constant dense<0.000000e+00> : vector<8x512xf32>
    %505 = tpu.matmul %503, %297, %cst_203 {dimension_numbers = #tpu.dot_dimension_numbers<[1], [0], [0], [1], [0, 0, 1, 1], [], []>} : vector<8x128xf32>, vector<128x512xf32>, vector<8x512xf32> -> vector<8x512xf32>
    %506 = arith.addf %504, %505 : vector<8x512xf32>
    %507 = vector.extract_strided_slice %506 {offsets = [0, 0], sizes = [8, 128], strides = [1, 1]} : vector<8x512xf32> to vector<8x128xf32>
    %cst_204 = arith.constant 5.000000e-01 : f32
    %508 = vector.broadcast %cst_204 : f32 to vector<8x128xf32>
    %509 = arith.mulf %508, %507 : vector<8x128xf32>
    %510 = math.tanh %509 : vector<8x128xf32>
    %cst_205 = arith.constant 5.000000e-01 : f32
    %511 = vector.broadcast %cst_205 : f32 to vector<8x128xf32>
    %512 = arith.mulf %511, %510 : vector<8x128xf32>
    %cst_206 = arith.constant 5.000000e-01 : f32
    %513 = vector.broadcast %cst_206 : f32 to vector<8x128xf32>
    %514 = arith.addf %512, %513 : vector<8x128xf32>
    %515 = vector.extract_strided_slice %506 {offsets = [0, 128], sizes = [8, 128], strides = [1, 1]} : vector<8x512xf32> to vector<8x128xf32>
    %cst_207 = arith.constant 5.000000e-01 : f32
    %516 = vector.broadcast %cst_207 : f32 to vector<8x128xf32>
    %517 = arith.mulf %516, %515 : vector<8x128xf32>
    %518 = math.tanh %517 : vector<8x128xf32>
    %cst_208 = arith.constant 5.000000e-01 : f32
    %519 = vector.broadcast %cst_208 : f32 to vector<8x128xf32>
    %520 = arith.mulf %519, %518 : vector<8x128xf32>
    %cst_209 = arith.constant 5.000000e-01 : f32
    %521 = vector.broadcast %cst_209 : f32 to vector<8x128xf32>
    %522 = arith.addf %520, %521 : vector<8x128xf32>
    %523 = vector.extract_strided_slice %506 {offsets = [0, 256], sizes = [8, 128], strides = [1, 1]} : vector<8x512xf32> to vector<8x128xf32>
    %524 = math.tanh %523 : vector<8x128xf32>
    %525 = vector.extract_strided_slice %506 {offsets = [0, 384], sizes = [8, 128], strides = [1, 1]} : vector<8x512xf32> to vector<8x128xf32>
    %cst_210 = arith.constant 5.000000e-01 : f32
    %526 = vector.broadcast %cst_210 : f32 to vector<8x128xf32>
    %527 = arith.mulf %526, %525 : vector<8x128xf32>
    %528 = math.tanh %527 : vector<8x128xf32>
    %cst_211 = arith.constant 5.000000e-01 : f32
    %529 = vector.broadcast %cst_211 : f32 to vector<8x128xf32>
    %530 = arith.mulf %529, %528 : vector<8x128xf32>
    %cst_212 = arith.constant 5.000000e-01 : f32
    %531 = vector.broadcast %cst_212 : f32 to vector<8x128xf32>
    %532 = arith.addf %530, %531 : vector<8x128xf32>
    %533 = arith.mulf %522, %501 : vector<8x128xf32>
    %534 = arith.mulf %514, %524 : vector<8x128xf32>
    %535 = arith.addf %533, %534 : vector<8x128xf32>
    %536 = math.tanh %535 : vector<8x128xf32>
    %537 = arith.mulf %532, %536 : vector<8x128xf32>
    %c56_213 = arith.constant 56 : index
    %c0_214 = arith.constant 0 : index
    %538 = vector.load %arg10[%c56_213, %c0_214] : memref<64x512xf32, #tpu.memory_space<vmem>>, vector<8x512xf32>
    %cst_215 = arith.constant dense<0.000000e+00> : vector<8x512xf32>
    %539 = tpu.matmul %537, %297, %cst_215 {dimension_numbers = #tpu.dot_dimension_numbers<[1], [0], [0], [1], [0, 0, 1, 1], [], []>} : vector<8x128xf32>, vector<128x512xf32>, vector<8x512xf32> -> vector<8x512xf32>
    %540 = arith.addf %538, %539 : vector<8x512xf32>
    %541 = vector.extract_strided_slice %540 {offsets = [0, 0], sizes = [8, 128], strides = [1, 1]} : vector<8x512xf32> to vector<8x128xf32>
    %cst_216 = arith.constant 5.000000e-01 : f32
    %542 = vector.broadcast %cst_216 : f32 to vector<8x128xf32>
    %543 = arith.mulf %542, %541 : vector<8x128xf32>
    %544 = math.tanh %543 : vector<8x128xf32>
    %cst_217 = arith.constant 5.000000e-01 : f32
    %545 = vector.broadcast %cst_217 : f32 to vector<8x128xf32>
    %546 = arith.mulf %545, %544 : vector<8x128xf32>
    %cst_218 = arith.constant 5.000000e-01 : f32
    %547 = vector.broadcast %cst_218 : f32 to vector<8x128xf32>
    %548 = arith.addf %546, %547 : vector<8x128xf32>
    %549 = vector.extract_strided_slice %540 {offsets = [0, 128], sizes = [8, 128], strides = [1, 1]} : vector<8x512xf32> to vector<8x128xf32>
    %cst_219 = arith.constant 5.000000e-01 : f32
    %550 = vector.broadcast %cst_219 : f32 to vector<8x128xf32>
    %551 = arith.mulf %550, %549 : vector<8x128xf32>
    %552 = math.tanh %551 : vector<8x128xf32>
    %cst_220 = arith.constant 5.000000e-01 : f32
    %553 = vector.broadcast %cst_220 : f32 to vector<8x128xf32>
    %554 = arith.mulf %553, %552 : vector<8x128xf32>
    %cst_221 = arith.constant 5.000000e-01 : f32
    %555 = vector.broadcast %cst_221 : f32 to vector<8x128xf32>
    %556 = arith.addf %554, %555 : vector<8x128xf32>
    %557 = vector.extract_strided_slice %540 {offsets = [0, 256], sizes = [8, 128], strides = [1, 1]} : vector<8x512xf32> to vector<8x128xf32>
    %558 = math.tanh %557 : vector<8x128xf32>
    %559 = vector.extract_strided_slice %540 {offsets = [0, 384], sizes = [8, 128], strides = [1, 1]} : vector<8x512xf32> to vector<8x128xf32>
    %cst_222 = arith.constant 5.000000e-01 : f32
    %560 = vector.broadcast %cst_222 : f32 to vector<8x128xf32>
    %561 = arith.mulf %560, %559 : vector<8x128xf32>
    %562 = math.tanh %561 : vector<8x128xf32>
    %cst_223 = arith.constant 5.000000e-01 : f32
    %563 = vector.broadcast %cst_223 : f32 to vector<8x128xf32>
    %564 = arith.mulf %563, %562 : vector<8x128xf32>
    %cst_224 = arith.constant 5.000000e-01 : f32
    %565 = vector.broadcast %cst_224 : f32 to vector<8x128xf32>
    %566 = arith.addf %564, %565 : vector<8x128xf32>
    %567 = arith.mulf %556, %535 : vector<8x128xf32>
    %568 = arith.mulf %548, %558 : vector<8x128xf32>
    %569 = arith.addf %567, %568 : vector<8x128xf32>
    %570 = math.tanh %569 : vector<8x128xf32>
    %571 = arith.mulf %566, %570 : vector<8x128xf32>
    %c0_225 = arith.constant 0 : index
    %c0_226 = arith.constant 0 : index
    %572 = vector.load %arg7[%c0_225, %c0_226] : memref<128x128xf32, #tpu.memory_space<vmem>>, vector<128x128xf32>
    %cst_227 = arith.constant dense<0.000000e+00> : vector<8x128xf32>
    %573 = tpu.matmul %571, %572, %cst_227 {dimension_numbers = #tpu.dot_dimension_numbers<[1], [0], [0], [1], [0, 0, 1, 1], [], []>} : vector<8x128xf32>, vector<128x128xf32>, vector<8x128xf32> -> vector<8x128xf32>
    %c0_228 = arith.constant 0 : index
    %c0_229 = arith.constant 0 : index
    %574 = vector.load %arg8[%c0_228, %c0_229] : memref<1x128xf32, #tpu.memory_space<vmem>>, vector<1x128xf32>
    %575 = vector.broadcast %574 : vector<1x128xf32> to vector<8x128xf32>
    %576 = arith.addf %573, %575 : vector<8x128xf32>
    %c0_230 = arith.constant 0 : index
    %c0_231 = arith.constant 0 : index
    %577 = vector.load %arg9[%c0_230, %c0_231] : memref<8x128xf32, #tpu.memory_space<vmem>>, vector<8x128xf32>
    tpu.vector_store %arg9[%c0_230, %c0_231], %576 {strides = array<i32>} : memref<8x128xf32, #tpu.memory_space<vmem>>, vector<8x128xf32>,
    return
  }
}

</mosaic_0001>

<llo_original>
// kernel: _forward.1
$region0: #{_forward.1}
  #allocation0 [shape = 'u32[]', space=smem, size = 0x4, offset = 0x4, fixed_abs, tag = 'smem constant byte address 0x4 - core index']
  #allocation1 [shape = 'u32[72,128]{1,0:T(1,128)}', space=vmem, size = 0x9000, scoped, tag = 'internal scratch']
  #allocation2 [shape = 'f32[64,512]{1,0:T(8,128)}', space=vmem, size = 0x20000, scoped, tag = 'scratch operand']
  #allocation3 [shape = 'f32[64,128]{1,0:T(8,128)}', space=vmem, size = 0x8000, scoped, tag = 'scratch operand']
  %s0 = inlined_call_operand.vmem [shape: f32[64,16], index: 0, kind: input, shape index: {}]
  %s1 = inlined_call_operand.vmem [shape: f32[16,512], index: 1, kind: input, shape index: {}]
  %s2 = inlined_call_operand.hbm [shape: f32[128,512], index: 2, kind: input, shape index: {}]
  %s3 = inlined_call_operand.vmem [shape: f32[1,512], index: 3, kind: input, shape index: {}]
  %s4 = inlined_call_operand.hbm [shape: f32[128,512], index: 4, kind: input, shape index: {}]
  %s5 = inlined_call_operand.hbm [shape: f32[128,512], index: 5, kind: input, shape index: {}]
  %s6 = inlined_call_operand.vmem [shape: f32[1,512], index: 6, kind: input, shape index: {}]
  %s7 = inlined_call_operand.hbm [shape: f32[128,128], index: 7, kind: input, shape index: {}]
  %s8 = inlined_call_operand.vmem [shape: f32[1,128], index: 8, kind: input, shape index: {}]
  %s9 = inlined_call_operand.vmem [shape: f32[8,128], index: 9, kind: output, shape index: {}]
  %s10 = sld [smem:[#allocation0]]
  $region62: #{_forward.1} parent=0
    _
  %s12 = ssub.s32 1, %s10
  %s13 = scalar_select 0, %s12, %s10
  $region1: #{_forward.1} parent=0
    #allocation4 [shape = 'u8[262144]{0}', space=vmem, size = 0x40000, scoped, tag = 'input window, operand 2, single buffered']
    #allocation5 [shape = 's32[1]{0}', space=sflag, size = 0x4, scoped, tag = 'scoped memory for _forward.1']
    #allocation6 [shape = 'u8[262144]{0}', space=vmem, size = 0x40000, scoped, tag = 'input window, operand 4, single buffered']
    #allocation7 [shape = 's32[1]{0}', space=sflag, size = 0x4, scoped, tag = 'scoped memory for _forward.1']
    #allocation8 [shape = 'u8[262144]{0}', space=vmem, size = 0x40000, scoped, tag = 'input window, operand 5, single buffered']
    #allocation9 [shape = 'u8[65536]{0}', space=vmem, size = 0x10000, scoped, tag = 'input window, operand 7, single buffered']
    #allocation10 [shape = 's32[1]{0}', space=sflag, size = 0x4, scoped, tag = 'scoped memory for _forward.1']
    %14 = vsyncpa [#allocation5], 0
    %15 = vsyncpa [#allocation7], 0
    %16 = vsyncpa [#allocation10], 0
    // Predicated region
    $region2: #{_forward.1} parent=1 // pred_check
      _
    $region3: #{_forward.1} parent=1 // pred_check_branch
      %18 = sbr.rel (0) target = $region5
    $region4: #{_forward.1} parent=1 // pred_region
      _
    $region5: #{_forward.1} parent=1 // pred_fallthru
      _
    // Predicated region
    $region6: #{_forward.1} parent=1 // pred_check
      _
    $region7: #{_forward.1} parent=1 // pred_check_branch
      %20 = sbr.rel (0) target = $region9
    $region8: #{_forward.1} parent=1 // pred_region
      _
    $region9: #{_forward.1} parent=1 // pred_fallthru
      _
    // Predicated region
    $region10: #{_forward.1} parent=1 // pred_check
      _
    $region11: #{_forward.1} parent=1 // pred_check_branch
      %22 = sbr.rel (0) target = $region13
    $region12: #{_forward.1} parent=1 // pred_region
      %24 = vsyncadd [#allocation5], 0
      %s25 = sshll.u32 %s2, 4
      %s26 = int_to_ptr.hbm [resolvable:$true] %s25
      %s27 = sshll.u32 [#allocation4], 4
      %s28 = int_to_ptr.vmem [resolvable:$true] %s27
      %33 = dma.hbm_to_vmem [thread:$0]  %s26, 8192, %s28, [#allocation5], 512, 512, 32
    $region13: #{_forward.1} parent=1 // pred_fallthru
      _
    // Predicated region
    $region14: #{_forward.1} parent=1 // pred_check
      _
    $region15: #{_forward.1} parent=1 // pred_check_branch
      %35 = sbr.rel (0) target = $region17
    $region16: #{_forward.1} parent=1 // pred_region
      _
    $region17: #{_forward.1} parent=1 // pred_fallthru
      _
    // Predicated region
    $region18: #{_forward.1} parent=1 // pred_check
      _
    $region19: #{_forward.1} parent=1 // pred_check_branch
      %37 = sbr.rel (0) target = $region21
    $region20: #{_forward.1} parent=1 // pred_region
      %39 = vsyncadd [#allocation7], 0
      %s40 = sshll.u32 %s4, 4
      %s41 = int_to_ptr.hbm [resolvable:$true] %s40
      %s42 = sshll.u32 [#allocation6], 4
      %s43 = int_to_ptr.vmem [resolvable:$true] %s42
      %48 = dma.hbm_to_vmem [thread:$0]  %s41, 8192, %s43, [#allocation7], 512, 512, 32
    $region21: #{_forward.1} parent=1 // pred_fallthru
      _
    // Predicated region
    $region22: #{_forward.1} parent=1 // pred_check
      _
    $region23: #{_forward.1} parent=1 // pred_check_branch
      %50 = sbr.rel (0) target = $region25
    $region24: #{_forward.1} parent=1 // pred_region
      %52 = vsyncadd [#allocation7], 0
      %s53 = sshll.u32 %s5, 4
      %s54 = int_to_ptr.hbm [resolvable:$true] %s53
      %s55 = sshll.u32 [#allocation8], 4
      %s56 = int_to_ptr.vmem [resolvable:$true] %s55
      %61 = dma.hbm_to_vmem [thread:$0]  %s54, 8192, %s56, [#allocation7], 512, 512, 32
    $region25: #{_forward.1} parent=1 // pred_fallthru
      _
    // Predicated region
    $region26: #{_forward.1} parent=1 // pred_check
      _
    $region27: #{_forward.1} parent=1 // pred_check_branch
      %63 = sbr.rel (0) target = $region29
    $region28: #{_forward.1} parent=1 // pred_region
      _
    $region29: #{_forward.1} parent=1 // pred_fallthru
      _
    // Predicated region
    $region30: #{_forward.1} parent=1 // pred_check
      _
    $region31: #{_forward.1} parent=1 // pred_check_branch
      %65 = sbr.rel (0) target = $region33
    $region32: #{_forward.1} parent=1 // pred_region
      %67 = vsyncadd [#allocation10], 0
      %s68 = sshll.u32 %s7, 4
      %s69 = int_to_ptr.hbm [resolvable:$true] %s68
      %s70 = sshll.u32 [#allocation9], 4
      %s71 = int_to_ptr.vmem [resolvable:$true] %s70
      %76 = dma.hbm_to_vmem [thread:$0]  %s69, 2048, %s71, [#allocation10], 128, 128, 8
    $region33: #{_forward.1} parent=1 // pred_fallthru
      _
    // Predicated region
    $region34: #{_forward.1} parent=1 // pred_check
      _
    $region35: #{_forward.1} parent=1 // pred_check_branch
      %78 = sbr.rel (0) target = $region37
    $region36: #{_forward.1} parent=1 // pred_region
      _
    $region37: #{_forward.1} parent=1 // pred_fallthru
      _
    // Predicated region
    $region38: #{_forward.1} parent=1 // pred_check
      _
    $region39: #{_forward.1} parent=1 // pred_check_branch
      %80 = sbr.rel (0) target = $region41
    $region40: #{_forward.1} parent=1 // pred_region
      %82 = dma.done [#allocation5], 8192
    $region41: #{_forward.1} parent=1 // pred_fallthru
      _
    // Predicated region
    $region42: #{_forward.1} parent=1 // pred_check
      _
    $region43: #{_forward.1} parent=1 // pred_check_branch
      %84 = sbr.rel (0) target = $region45
    $region44: #{_forward.1} parent=1 // pred_region
      %86 = dma.done [#allocation7], 8192
    $region45: #{_forward.1} parent=1 // pred_fallthru
      _
    // Predicated region
    $region46: #{_forward.1} parent=1 // pred_check
      _
    $region47: #{_forward.1} parent=1 // pred_check_branch
      %88 = sbr.rel (0) target = $region49
    $region48: #{_forward.1} parent=1 // pred_region
      %90 = dma.done [#allocation7], 8192
    $region49: #{_forward.1} parent=1 // pred_fallthru
      _
    // Predicated region
    $region50: #{_forward.1} parent=1 // pred_check
      _
    $region51: #{_forward.1} parent=1 // pred_check_branch
      %92 = sbr.rel (0) target = $region53
    $region52: #{_forward.1} parent=1 // pred_region
      %94 = dma.done [#allocation10], 2048
    $region53: #{_forward.1} parent=1 // pred_fallthru
      _
    %v95 = vld [vmem:[%s1] sm:$0xff]
    %v96 = vld [vmem:[%s1 + $0x8] sm:$0xff]
    %v97 = vld [vmem:[%s1 + $0x10] sm:$0xff]
    %v98 = vld [vmem:[%s1 + $0x18] sm:$0xff]
    %v99 = vld [vmem:[%s1 + $0x20] sm:$0xff]
    %v100 = vld [vmem:[%s1 + $0x28] sm:$0xff]
    %v101 = vld [vmem:[%s1 + $0x30] sm:$0xff]
    %v102 = vld [vmem:[%s1 + $0x38] sm:$0xff]
    %v103 = vld [vmem:[%s0] sm:$0xff]
    %v104 = vld [vmem:[%s0 + $0x8] sm:$0xff]
    %v105 = vld [vmem:[%s0 + $0x10] sm:$0xff]
    %v106 = vld [vmem:[%s0 + $0x18] sm:$0xff]
    %v107 = vld [vmem:[%s0 + $0x20] sm:$0xff]
    %v108 = vld [vmem:[%s0 + $0x28] sm:$0xff]
    %v109 = vld [vmem:[%s0 + $0x30] sm:$0xff]
    %v110 = vld [vmem:[%s0 + $0x38] sm:$0xff]
    %v111 = vld [vmem:[%s3] sm:$0xf]
    %v113 = vperm.slane %v111, 0
    %v114 = vperm.slane %v111, 1
    %v115 = vperm.slane %v111, 2
    %v116 = vperm.slane %v111, 3
    %vm121 = vcmask 130048
    %v123 = vsel %vm121, %v103, 0
    %v126 = vsel %vm121, %v104, 0
    %v129 = vsel %vm121, %v105, 0
    %v132 = vsel %vm121, %v106, 0
    %v135 = vsel %vm121, %v107, 0
    %v138 = vsel %vm121, %v108, 0
    %v141 = vsel %vm121, %v109, 0
    %v144 = vsel %vm121, %v110, 0
    %146 = vmatpush.msra.mxu0 0.0
    %147 = vmatpush.msra.mxu0 0.0
    %148 = vmatpush.msra.mxu0 0.0
    %149 = vmatpush.msra.mxu0 0.0
    %150 = vmatpush.msra.mxu0 0.0
    %151 = vmatpush.msra.mxu0 0.0
    %152 = vmatpush.msra.mxu0 0.0
    %153 = vmatpush.msra.mxu0 0.0
    %154 = vmatpush.msra.mxu0 0.0
    %155 = vmatpush.msra.mxu0 0.0
    %156 = vmatpush.msra.mxu0 0.0
    %157 = vmatpush.msra.mxu0 0.0
    %158 = vmatpush.msra.mxu0 0.0
    %159 = vmatpush.msra.mxu0 0.0
    %160 = vmatpush.msra.mxu0 %v99
    %161 = vmatpush.msra.mxu0 %v95
    %162 = vmatmul.f32.gmra.mxu0 %v123
    %v163 = vpop.f32.mrf.mxu0
    %v164 = vadd.f32 %v113, %v163
    %165 = vmatmul.f32.gmra.mxu0 %v126
    %v166 = vpop.f32.mrf.mxu0
    %v167 = vadd.f32 %v113, %v166
    %168 = vmatmul.f32.gmra.mxu0 %v129
    %v169 = vpop.f32.mrf.mxu0
    %v170 = vadd.f32 %v113, %v169
    %171 = vmatmul.f32.gmra.mxu0 %v132
    %v172 = vpop.f32.mrf.mxu0
    %v173 = vadd.f32 %v113, %v172
    %174 = vmatmul.f32.gmra.mxu0 %v135
    %v175 = vpop.f32.mrf.mxu0
    %v176 = vadd.f32 %v113, %v175
    %177 = vmatmul.f32.gmra.mxu0 %v138
    %v178 = vpop.f32.mrf.mxu0
    %v179 = vadd.f32 %v113, %v178
    %180 = vmatmul.f32.gmra.mxu0 %v141
    %v181 = vpop.f32.mrf.mxu0
    %v182 = vadd.f32 %v113, %v181
    %183 = vmatmul.f32.gmra.mxu0 %v144
    %v184 = vpop.f32.mrf.mxu0
    %v185 = vadd.f32 %v113, %v184
    %186 = vdwg.mxu0
    %187 = vmatpush.msra.mxu0 0.0
    %188 = vmatpush.msra.mxu0 0.0
    %189 = vmatpush.msra.mxu0 0.0
    %190 = vmatpush.msra.mxu0 0.0
    %191 = vmatpush.msra.mxu0 0.0
    %192 = vmatpush.msra.mxu0 0.0
    %193 = vmatpush.msra.mxu0 0.0
    %194 = vmatpush.msra.mxu0 0.0
    %195 = vmatpush.msra.mxu0 0.0
    %196 = vmatpush.msra.mxu0 0.0
    %197 = vmatpush.msra.mxu0 0.0
    %198 = vmatpush.msra.mxu0 0.0
    %199 = vmatpush.msra.mxu0 0.0
    %200 = vmatpush.msra.mxu0 0.0
    %201 = vmatpush.msra.mxu0 %v100
    %202 = vmatpush.msra.mxu0 %v96
    %203 = vmatmul.f32.gmra.mxu0 %v123
    %v204 = vpop.f32.mrf.mxu0
    %v205 = vadd.f32 %v114, %v204
    %206 = vmatmul.f32.gmra.mxu0 %v126
    %v207 = vpop.f32.mrf.mxu0
    %v208 = vadd.f32 %v114, %v207
    %209 = vmatmul.f32.gmra.mxu0 %v129
    %v210 = vpop.f32.mrf.mxu0
    %v211 = vadd.f32 %v114, %v210
    %212 = vmatmul.f32.gmra.mxu0 %v132
    %v213 = vpop.f32.mrf.mxu0
    %v214 = vadd.f32 %v114, %v213
    %215 = vmatmul.f32.gmra.mxu0 %v135
    %v216 = vpop.f32.mrf.mxu0
    %v217 = vadd.f32 %v114, %v216
    %218 = vmatmul.f32.gmra.mxu0 %v138
    %v219 = vpop.f32.mrf.mxu0
    %v220 = vadd.f32 %v114, %v219
    %221 = vmatmul.f32.gmra.mxu0 %v141
    %v222 = vpop.f32.mrf.mxu0
    %v223 = vadd.f32 %v114, %v222
    %224 = vmatmul.f32.gmra.mxu0 %v144
    %v225 = vpop.f32.mrf.mxu0
    %v226 = vadd.f32 %v114, %v225
    %227 = vdwg.mxu0
    %228 = vmatpush.msra.mxu0 0.0
    %229 = vmatpush.msra.mxu0 0.0
    %230 = vmatpush.msra.mxu0 0.0
    %231 = vmatpush.msra.mxu0 0.0
    %232 = vmatpush.msra.mxu0 0.0
    %233 = vmatpush.msra.mxu0 0.0
    %234 = vmatpush.msra.mxu0 0.0
    %235 = vmatpush.msra.mxu0 0.0
    %236 = vmatpush.msra.mxu0 0.0
    %237 = vmatpush.msra.mxu0 0.0
    %238 = vmatpush.msra.mxu0 0.0
    %239 = vmatpush.msra.mxu0 0.0
    %240 = vmatpush.msra.mxu0 0.0
    %241 = vmatpush.msra.mxu0 0.0
    %242 = vmatpush.msra.mxu0 %v101
    %243 = vmatpush.msra.mxu0 %v97
    %244 = vmatmul.f32.gmra.mxu0 %v123
    %v245 = vpop.f32.mrf.mxu0
    %v246 = vadd.f32 %v115, %v245
    %247 = vmatmul.f32.gmra.mxu0 %v126
    %v248 = vpop.f32.mrf.mxu0
    %v249 = vadd.f32 %v115, %v248
    %250 = vmatmul.f32.gmra.mxu0 %v129
    %v251 = vpop.f32.mrf.mxu0
    %v252 = vadd.f32 %v115, %v251
    %253 = vmatmul.f32.gmra.mxu0 %v132
    %v254 = vpop.f32.mrf.mxu0
    %v255 = vadd.f32 %v115, %v254
    %256 = vmatmul.f32.gmra.mxu0 %v135
    %v257 = vpop.f32.mrf.mxu0
    %v258 = vadd.f32 %v115, %v257
    %259 = vmatmul.f32.gmra.mxu0 %v138
    %v260 = vpop.f32.mrf.mxu0
    %v261 = vadd.f32 %v115, %v260
    %262 = vmatmul.f32.gmra.mxu0 %v141
    %v263 = vpop.f32.mrf.mxu0
    %v264 = vadd.f32 %v115, %v263
    %265 = vmatmul.f32.gmra.mxu0 %v144
    %v266 = vpop.f32.mrf.mxu0
    %v267 = vadd.f32 %v115, %v266
    %268 = vdwg.mxu0
    %269 = vmatpush.msra.mxu0 0.0
    %270 = vmatpush.msra.mxu0 0.0
    %271 = vmatpush.msra.mxu0 0.0
    %272 = vmatpush.msra.mxu0 0.0
    %273 = vmatpush.msra.mxu0 0.0
    %274 = vmatpush.msra.mxu0 0.0
    %275 = vmatpush.msra.mxu0 0.0
    %276 = vmatpush.msra.mxu0 0.0
    %277 = vmatpush.msra.mxu0 0.0
    %278 = vmatpush.msra.mxu0 0.0
    %279 = vmatpush.msra.mxu0 0.0
    %280 = vmatpush.msra.mxu0 0.0
    %281 = vmatpush.msra.mxu0 0.0
    %282 = vmatpush.msra.mxu0 0.0
    %283 = vmatpush.msra.mxu0 %v102
    %284 = vmatpush.msra.mxu0 %v98
    %285 = vmatmul.f32.gmra.mxu0 %v123
    %v286 = vpop.f32.mrf.mxu0
    %v287 = vadd.f32 %v116, %v286
    %288 = vmatmul.f32.gmra.mxu0 %v126
    %v289 = vpop.f32.mrf.mxu0
    %v290 = vadd.f32 %v116, %v289
    %291 = vmatmul.f32.gmra.mxu0 %v129
    %v292 = vpop.f32.mrf.mxu0
    %v293 = vadd.f32 %v116, %v292
    %294 = vmatmul.f32.gmra.mxu0 %v132
    %v295 = vpop.f32.mrf.mxu0
    %v296 = vadd.f32 %v116, %v295
    %297 = vmatmul.f32.gmra.mxu0 %v135
    %v298 = vpop.f32.mrf.mxu0
    %v299 = vadd.f32 %v116, %v298
    %300 = vmatmul.f32.gmra.mxu0 %v138
    %v301 = vpop.f32.mrf.mxu0
    %v302 = vadd.f32 %v116, %v301
    %303 = vmatmul.f32.gmra.mxu0 %v141
    %v304 = vpop.f32.mrf.mxu0
    %v305 = vadd.f32 %v116, %v304
    %306 = vmatmul.f32.gmra.mxu0 %v144
    %v307 = vpop.f32.mrf.mxu0
    %v308 = vadd.f32 %v116, %v307
    %309 = vdwg.mxu0
    %310 = vst [vmem:[#allocation2] sm:$0xff] %v164
    %311 = vst [vmem:[#allocation2 + $0x8] sm:$0xff] %v205
    %312 = vst [vmem:[#allocation2 + $0x10] sm:$0xff] %v246
    %313 = vst [vmem:[#allocation2 + $0x18] sm:$0xff] %v287
    %314 = vst [vmem:[#allocation2 + $0x20] sm:$0xff] %v167
    %315 = vst [vmem:[#allocation2 + $0x28] sm:$0xff] %v208
    %316 = vst [vmem:[#allocation2 + $0x30] sm:$0xff] %v249
    %317 = vst [vmem:[#allocation2 + $0x38] sm:$0xff] %v290
    %318 = vst [vmem:[#allocation2 + $0x40] sm:$0xff] %v170
    %319 = vst [vmem:[#allocation2 + $0x48] sm:$0xff] %v211
    %320 = vst [vmem:[#allocation2 + $0x50] sm:$0xff] %v252
    %321 = vst [vmem:[#allocation2 + $0x58] sm:$0xff] %v293
    %322 = vst [vmem:[#allocation2 + $0x60] sm:$0xff] %v173
    %323 = vst [vmem:[#allocation2 + $0x68] sm:$0xff] %v214
    %324 = vst [vmem:[#allocation2 + $0x70] sm:$0xff] %v255
    %325 = vst [vmem:[#allocation2 + $0x78] sm:$0xff] %v296
    %326 = vst [vmem:[#allocation2 + $0x80] sm:$0xff] %v176
    %327 = vst [vmem:[#allocation2 + $0x88] sm:$0xff] %v217
    %328 = vst [vmem:[#allocation2 + $0x90] sm:$0xff] %v258
    %329 = vst [vmem:[#allocation2 + $0x98] sm:$0xff] %v299
    %330 = vst [vmem:[#allocation2 + $0xa0] sm:$0xff] %v179
    %331 = vst [vmem:[#allocation2 + $0xa8] sm:$0xff] %v220
    %332 = vst [vmem:[#allocation2 + $0xb0] sm:$0xff] %v261
    %333 = vst [vmem:[#allocation2 + $0xb8] sm:$0xff] %v302
    %334 = vst [vmem:[#allocation2 + $0xc0] sm:$0xff] %v182
    %335 = vst [vmem:[#allocation2 + $0xc8] sm:$0xff] %v223
    %336 = vst [vmem:[#allocation2 + $0xd0] sm:$0xff] %v264
    %337 = vst [vmem:[#allocation2 + $0xd8] sm:$0xff] %v305
    %338 = vst [vmem:[#allocation2 + $0xe0] sm:$0xff] %v185
    %339 = vst [vmem:[#allocation2 + $0xe8] sm:$0xff] %v226
    %340 = vst [vmem:[#allocation2 + $0xf0] sm:$0xff] %v267
    %341 = vst [vmem:[#allocation2 + $0xf8] sm:$0xff] %v308
    %v342 = vld [vmem:[#allocation4] sm:$0xff]
    %v343 = vld [vmem:[#allocation4 + $0x8] sm:$0xff]
    %v344 = vld [vmem:[#allocation4 + $0x10] sm:$0xff]
    %v345 = vld [vmem:[#allocation4 + $0x18] sm:$0xff]
    %v346 = vld [vmem:[#allocation4 + $0x20] sm:$0xff]
    %v347 = vld [vmem:[#allocation4 + $0x28] sm:$0xff]
    %v348 = vld [vmem:[#allocation4 + $0x30] sm:$0xff]
    %v349 = vld [vmem:[#allocation4 + $0x38] sm:$0xff]
    %v350 = vld [vmem:[#allocation4 + $0x40] sm:$0xff]
    %v351 = vld [vmem:[#allocation4 + $0x48] sm:$0xff]
    %v352 = vld [vmem:[#allocation4 + $0x50] sm:$0xff]
    %v353 = vld [vmem:[#allocation4 + $0x58] sm:$0xff]
    %v354 = vld [vmem:[#allocation4 + $0x60] sm:$0xff]
    %v355 = vld [vmem:[#allocation4 + $0x68] sm:$0xff]
    %v356 = vld [vmem:[#allocation4 + $0x70] sm:$0xff]
    %v357 = vld [vmem:[#allocation4 + $0x78] sm:$0xff]
    %v358 = vld [vmem:[#allocation4 + $0x80] sm:$0xff]
    %v359 = vld [vmem:[#allocation4 + $0x88] sm:$0xff]
    %v360 = vld [vmem:[#allocation4 + $0x90] sm:$0xff]
    %v361 = vld [vmem:[#allocation4 + $0x98] sm:$0xff]
    %v362 = vld [vmem:[#allocation4 + $0xa0] sm:$0xff]
    %v363 = vld [vmem:[#allocation4 + $0xa8] sm:$0xff]
    %v364 = vld [vmem:[#allocation4 + $0xb0] sm:$0xff]
    %v365 = vld [vmem:[#allocation4 + $0xb8] sm:$0xff]
    %v366 = vld [vmem:[#allocation4 + $0xc0] sm:$0xff]
    %v367 = vld [vmem:[#allocation4 + $0xc8] sm:$0xff]
    %v368 = vld [vmem:[#allocation4 + $0xd0] sm:$0xff]
    %v369 = vld [vmem:[#allocation4 + $0xd8] sm:$0xff]
    %v370 = vld [vmem:[#allocation4 + $0xe0] sm:$0xff]
    %v371 = vld [vmem:[#allocation4 + $0xe8] sm:$0xff]
    %v372 = vld [vmem:[#allocation4 + $0xf0] sm:$0xff]
    %v373 = vld [vmem:[#allocation4 + $0xf8] sm:$0xff]
    %v374 = vld [vmem:[#allocation4 + $0x100] sm:$0xff]
    %v375 = vld [vmem:[#allocation4 + $0x108] sm:$0xff]
    %v376 = vld [vmem:[#allocation4 + $0x110] sm:$0xff]
    %v377 = vld [vmem:[#allocation4 + $0x118] sm:$0xff]
    %v378 = vld [vmem:[#allocation4 + $0x120] sm:$0xff]
    %v379 = vld [vmem:[#allocation4 + $0x128] sm:$0xff]
    %v380 = vld [vmem:[#allocation4 + $0x130] sm:$0xff]
    %v381 = vld [vmem:[#allocation4 + $0x138] sm:$0xff]
    %v382 = vld [vmem:[#allocation4 + $0x140] sm:$0xff]
    %v383 = vld [vmem:[#allocation4 + $0x148] sm:$0xff]
    %v384 = vld [vmem:[#allocation4 + $0x150] sm:$0xff]
    %v385 = vld [vmem:[#allocation4 + $0x158] sm:$0xff]
    %v386 = vld [vmem:[#allocation4 + $0x160] sm:$0xff]
    %v387 = vld [vmem:[#allocation4 + $0x168] sm:$0xff]
    %v388 = vld [vmem:[#allocation4 + $0x170] sm:$0xff]
    %v389 = vld [vmem:[#allocation4 + $0x178] sm:$0xff]
    %v390 = vld [vmem:[#allocation4 + $0x180] sm:$0xff]
    %v391 = vld [vmem:[#allocation4 + $0x188] sm:$0xff]
    %v392 = vld [vmem:[#allocation4 + $0x190] sm:$0xff]
    %v393 = vld [vmem:[#allocation4 + $0x198] sm:$0xff]
    %v394 = vld [vmem:[#allocation4 + $0x1a0] sm:$0xff]
    %v395 = vld [vmem:[#allocation4 + $0x1a8] sm:$0xff]
    %v396 = vld [vmem:[#allocation4 + $0x1b0] sm:$0xff]
    %v397 = vld [vmem:[#allocation4 + $0x1b8] sm:$0xff]
    %v398 = vld [vmem:[#allocation4 + $0x1c0] sm:$0xff]
    %v399 = vld [vmem:[#allocation4 + $0x1c8] sm:$0xff]
    %v400 = vld [vmem:[#allocation4 + $0x1d0] sm:$0xff]
    %v401 = vld [vmem:[#allocation4 + $0x1d8] sm:$0xff]
    %v402 = vld [vmem:[#allocation4 + $0x1e0] sm:$0xff]
    %v403 = vld [vmem:[#allocation4 + $0x1e8] sm:$0xff]
    %v404 = vld [vmem:[#allocation4 + $0x1f0] sm:$0xff]
    %v405 = vld [vmem:[#allocation4 + $0x1f8] sm:$0xff]
    %v406 = vld [vmem:[#allocation2] sm:$0xff]
    %v407 = vld [vmem:[#allocation2 + $0x8] sm:$0xff]
    %v408 = vld [vmem:[#allocation2 + $0x10] sm:$0xff]
    %v409 = vld [vmem:[#allocation2 + $0x18] sm:$0xff]
    %410 = vmatpush.msra.mxu0 %v402
    %411 = vmatpush.msra.mxu0 %v398
    %412 = vmatpush.msra.mxu0 %v394
    %413 = vmatpush.msra.mxu0 %v390
    %414 = vmatpush.msra.mxu0 %v386
    %415 = vmatpush.msra.mxu0 %v382
    %416 = vmatpush.msra.mxu0 %v378
    %417 = vmatpush.msra.mxu0 %v374
    %418 = vmatpush.msra.mxu0 %v370
    %419 = vmatpush.msra.mxu0 %v366
    %420 = vmatpush.msra.mxu0 %v362
    %421 = vmatpush.msra.mxu0 %v358
    %422 = vmatpush.msra.mxu0 %v354
    %423 = vmatpush.msra.mxu0 %v350
    %424 = vmatpush.msra.mxu0 %v346
    %425 = vmatpush.msra.mxu0 %v342
    %426 = vmatmul.f32.gmra.mxu0 0.0
    %v427 = vpop.f32.mrf.mxu0
    %v428 = vadd.f32 0.0, %v427
    %429 = vdwg.mxu0
    %430 = vmatpush.msra.mxu0 %v403
    %431 = vmatpush.msra.mxu0 %v399
    %432 = vmatpush.msra.mxu0 %v395
    %433 = vmatpush.msra.mxu0 %v391
    %434 = vmatpush.msra.mxu0 %v387
    %435 = vmatpush.msra.mxu0 %v383
    %436 = vmatpush.msra.mxu0 %v379
    %437 = vmatpush.msra.mxu0 %v375
    %438 = vmatpush.msra.mxu0 %v371
    %439 = vmatpush.msra.mxu0 %v367
    %440 = vmatpush.msra.mxu0 %v363
    %441 = vmatpush.msra.mxu0 %v359
    %442 = vmatpush.msra.mxu0 %v355
    %443 = vmatpush.msra.mxu0 %v351
    %444 = vmatpush.msra.mxu0 %v347
    %445 = vmatpush.msra.mxu0 %v343
    %446 = vmatmul.f32.gmra.mxu0 0.0
    %v447 = vpop.f32.mrf.mxu0
    %v448 = vadd.f32 0.0, %v447
    %449 = vdwg.mxu0
    %450 = vmatpush.msra.mxu0 %v404
    %451 = vmatpush.msra.mxu0 %v400
    %452 = vmatpush.msra.mxu0 %v396
    %453 = vmatpush.msra.mxu0 %v392
    %454 = vmatpush.msra.mxu0 %v388
    %455 = vmatpush.msra.mxu0 %v384
    %456 = vmatpush.msra.mxu0 %v380
    %457 = vmatpush.msra.mxu0 %v376
    %458 = vmatpush.msra.mxu0 %v372
    %459 = vmatpush.msra.mxu0 %v368
    %460 = vmatpush.msra.mxu0 %v364
    %461 = vmatpush.msra.mxu0 %v360
    %462 = vmatpush.msra.mxu0 %v356
    %463 = vmatpush.msra.mxu0 %v352
    %464 = vmatpush.msra.mxu0 %v348
    %465 = vmatpush.msra.mxu0 %v344
    %466 = vmatmul.f32.gmra.mxu0 0.0
    %v467 = vpop.f32.mrf.mxu0
    %v468 = vadd.f32 0.0, %v467
    %469 = vdwg.mxu0
    %470 = vmatpush.msra.mxu0 %v405
    %471 = vmatpush.msra.mxu0 %v401
    %472 = vmatpush.msra.mxu0 %v397
    %473 = vmatpush.msra.mxu0 %v393
    %474 = vmatpush.msra.mxu0 %v389
    %475 = vmatpush.msra.mxu0 %v385
    %476 = vmatpush.msra.mxu0 %v381
    %477 = vmatpush.msra.mxu0 %v377
    %478 = vmatpush.msra.mxu0 %v373
    %479 = vmatpush.msra.mxu0 %v369
    %480 = vmatpush.msra.mxu0 %v365
    %481 = vmatpush.msra.mxu0 %v361
    %482 = vmatpush.msra.mxu0 %v357
    %483 = vmatpush.msra.mxu0 %v353
    %484 = vmatpush.msra.mxu0 %v349
    %485 = vmatpush.msra.mxu0 %v345
    %486 = vmatmul.f32.gmra.mxu0 0.0
    %v487 = vpop.f32.mrf.mxu0
    %v488 = vadd.f32 0.0, %v487
    %489 = vdwg.mxu0
    %v490 = vadd.f32 %v406, %v428
    %v491 = vadd.f32 %v407, %v448
    %v492 = vadd.f32 %v408, %v468
    %v493 = vadd.f32 %v409, %v488
    %v494 = vmul.f32 %v490, 0.5
    %v495 = vtanh.pop %v494
    %v496 = vmul.f32 %v495, 0.5
    %v497 = vadd.f32 %v496, 0.5
    %v498 = vmul.f32 %v491, 0.5
    %v499 = vtanh.pop %v498
    %v500 = vmul.f32 %v499, 0.5
    %v501 = vadd.f32 %v500, 0.5
    %v502 = vtanh.pop %v492
    %v503 = vmul.f32 %v493, 0.5
    %v504 = vtanh.pop %v503
    %v505 = vmul.f32 %v504, 0.5
    %v506 = vadd.f32 %v505, 0.5
    %v507 = vmul.f32 %v501, 0.0
    %v508 = vmul.f32 %v497, %v502
    %v509 = vadd.f32 %v507, %v508
    %v510 = vtanh.pop %v509
    %v511 = vmul.f32 %v506, %v510
    %512 = vst [vmem:[#allocation3] sm:$0xff] %v511
    %v513 = vld [vmem:[#allocation2 + $0x20] sm:$0xff]
    %v514 = vld [vmem:[#allocation2 + $0x28] sm:$0xff]
    %v515 = vld [vmem:[#allocation2 + $0x30] sm:$0xff]
    %v516 = vld [vmem:[#allocation2 + $0x38] sm:$0xff]
    %517 = vmatpush.msra.mxu0 %v402
    %518 = vmatpush.msra.mxu0 %v398
    %519 = vmatpush.msra.mxu0 %v394
    %520 = vmatpush.msra.mxu0 %v390
    %521 = vmatpush.msra.mxu0 %v386
    %522 = vmatpush.msra.mxu0 %v382
    %523 = vmatpush.msra.mxu0 %v378
    %524 = vmatpush.msra.mxu0 %v374
    %525 = vmatpush.msra.mxu0 %v370
    %526 = vmatpush.msra.mxu0 %v366
    %527 = vmatpush.msra.mxu0 %v362
    %528 = vmatpush.msra.mxu0 %v358
    %529 = vmatpush.msra.mxu0 %v354
    %530 = vmatpush.msra.mxu0 %v350
    %531 = vmatpush.msra.mxu0 %v346
    %532 = vmatpush.msra.mxu0 %v342
    %533 = vmatmul.f32.gmra.mxu0 %v511
    %v534 = vpop.f32.mrf.mxu0
    %v535 = vadd.f32 0.0, %v534
    %536 = vdwg.mxu0
    %537 = vmatpush.msra.mxu0 %v403
    %538 = vmatpush.msra.mxu0 %v399
    %539 = vmatpush.msra.mxu0 %v395
    %540 = vmatpush.msra.mxu0 %v391
    %541 = vmatpush.msra.mxu0 %v387
    %542 = vmatpush.msra.mxu0 %v383
    %543 = vmatpush.msra.mxu0 %v379
    %544 = vmatpush.msra.mxu0 %v375
    %545 = vmatpush.msra.mxu0 %v371
    %546 = vmatpush.msra.mxu0 %v367
    %547 = vmatpush.msra.mxu0 %v363
    %548 = vmatpush.msra.mxu0 %v359
    %549 = vmatpush.msra.mxu0 %v355
    %550 = vmatpush.msra.mxu0 %v351
    %551 = vmatpush.msra.mxu0 %v347
    %552 = vmatpush.msra.mxu0 %v343
    %553 = vmatmul.f32.gmra.mxu0 %v511
    %v554 = vpop.f32.mrf.mxu0
    %v555 = vadd.f32 0.0, %v554
    %556 = vdwg.mxu0
    %557 = vmatpush.msra.mxu0 %v404
    %558 = vmatpush.msra.mxu0 %v400
    %559 = vmatpush.msra.mxu0 %v396
    %560 = vmatpush.msra.mxu0 %v392
    %561 = vmatpush.msra.mxu0 %v388
    %562 = vmatpush.msra.mxu0 %v384
    %563 = vmatpush.msra.mxu0 %v380
    %564 = vmatpush.msra.mxu0 %v376
    %565 = vmatpush.msra.mxu0 %v372
    %566 = vmatpush.msra.mxu0 %v368
    %567 = vmatpush.msra.mxu0 %v364
    %568 = vmatpush.msra.mxu0 %v360
    %569 = vmatpush.msra.mxu0 %v356
    %570 = vmatpush.msra.mxu0 %v352
    %571 = vmatpush.msra.mxu0 %v348
    %572 = vmatpush.msra.mxu0 %v344
    %573 = vmatmul.f32.gmra.mxu0 %v511
    %v574 = vpop.f32.mrf.mxu0
    %v575 = vadd.f32 0.0, %v574
    %576 = vdwg.mxu0
    %577 = vmatpush.msra.mxu0 %v405
    %578 = vmatpush.msra.mxu0 %v401
    %579 = vmatpush.msra.mxu0 %v397
    %580 = vmatpush.msra.mxu0 %v393
    %581 = vmatpush.msra.mxu0 %v389
    %582 = vmatpush.msra.mxu0 %v385
    %583 = vmatpush.msra.mxu0 %v381
    %584 = vmatpush.msra.mxu0 %v377
    %585 = vmatpush.msra.mxu0 %v373
    %586 = vmatpush.msra.mxu0 %v369
    %587 = vmatpush.msra.mxu0 %v365
    %588 = vmatpush.msra.mxu0 %v361
    %589 = vmatpush.msra.mxu0 %v357
    %590 = vmatpush.msra.mxu0 %v353
    %591 = vmatpush.msra.mxu0 %v349
    %592 = vmatpush.msra.mxu0 %v345
    %593 = vmatmul.f32.gmra.mxu0 %v511
    %v594 = vpop.f32.mrf.mxu0
    %v595 = vadd.f32 0.0, %v594
    %596 = vdwg.mxu0
    %v597 = vadd.f32 %v513, %v535
    %v598 = vadd.f32 %v514, %v555
    %v599 = vadd.f32 %v515, %v575
    %v600 = vadd.f32 %v516, %v595
    %v601 = vmul.f32 %v597, 0.5
    %v602 = vtanh.pop %v601
    %v603 = vmul.f32 %v602, 0.5
    %v604 = vadd.f32 %v603, 0.5
    %v605 = vmul.f32 %v598, 0.5
    %v606 = vtanh.pop %v605
    %v607 = vmul.f32 %v606, 0.5
    %v608 = vadd.f32 %v607, 0.5
    %v609 = vtanh.pop %v599
    %v610 = vmul.f32 %v600, 0.5
    %v611 = vtanh.pop %v610
    %v612 = vmul.f32 %v611, 0.5
    %v613 = vadd.f32 %v612, 0.5
    %v614 = vmul.f32 %v608, %v509
    %v615 = vmul.f32 %v604, %v609
    %v616 = vadd.f32 %v614, %v615
    %v617 = vtanh.pop %v616
    %v618 = vmul.f32 %v613, %v617
    %619 = vst [vmem:[#allocation3 + $0x8] sm:$0xff] %v618
    %v620 = vld [vmem:[#allocation2 + $0x40] sm:$0xff]
    %v621 = vld [vmem:[#allocation2 + $0x48] sm:$0xff]
    %v622 = vld [vmem:[#allocation2 + $0x50] sm:$0xff]
    %v623 = vld [vmem:[#allocation2 + $0x58] sm:$0xff]
    %624 = vmatpush.msra.mxu0 %v402
    %625 = vmatpush.msra.mxu0 %v398
    %626 = vmatpush.msra.mxu0 %v394
    %627 = vmatpush.msra.mxu0 %v390
    %628 = vmatpush.msra.mxu0 %v386
    %629 = vmatpush.msra.mxu0 %v382
    %630 = vmatpush.msra.mxu0 %v378
    %631 = vmatpush.msra.mxu0 %v374
    %632 = vmatpush.msra.mxu0 %v370
    %633 = vmatpush.msra.mxu0 %v366
    %634 = vmatpush.msra.mxu0 %v362
    %635 = vmatpush.msra.mxu0 %v358
    %636 = vmatpush.msra.mxu0 %v354
    %637 = vmatpush.msra.mxu0 %v350
    %638 = vmatpush.msra.mxu0 %v346
    %639 = vmatpush.msra.mxu0 %v342
    %640 = vmatmul.f32.gmra.mxu0 %v618
    %v641 = vpop.f32.mrf.mxu0
    %v642 = vadd.f32 0.0, %v641
    %643 = vdwg.mxu0
    %644 = vmatpush.msra.mxu0 %v403
    %645 = vmatpush.msra.mxu0 %v399
    %646 = vmatpush.msra.mxu0 %v395
    %647 = vmatpush.msra.mxu0 %v391
    %648 = vmatpush.msra.mxu0 %v387
    %649 = vmatpush.msra.mxu0 %v383
    %650 = vmatpush.msra.mxu0 %v379
    %651 = vmatpush.msra.mxu0 %v375
    %652 = vmatpush.msra.mxu0 %v371
    %653 = vmatpush.msra.mxu0 %v367
    %654 = vmatpush.msra.mxu0 %v363
    %655 = vmatpush.msra.mxu0 %v359
    %656 = vmatpush.msra.mxu0 %v355
    %657 = vmatpush.msra.mxu0 %v351
    %658 = vmatpush.msra.mxu0 %v347
    %659 = vmatpush.msra.mxu0 %v343
    %660 = vmatmul.f32.gmra.mxu0 %v618
    %v661 = vpop.f32.mrf.mxu0
    %v662 = vadd.f32 0.0, %v661
    %663 = vdwg.mxu0
    %664 = vmatpush.msra.mxu0 %v404
    %665 = vmatpush.msra.mxu0 %v400
    %666 = vmatpush.msra.mxu0 %v396
    %667 = vmatpush.msra.mxu0 %v392
    %668 = vmatpush.msra.mxu0 %v388
    %669 = vmatpush.msra.mxu0 %v384
    %670 = vmatpush.msra.mxu0 %v380
    %671 = vmatpush.msra.mxu0 %v376
    %672 = vmatpush.msra.mxu0 %v372
    %673 = vmatpush.msra.mxu0 %v368
    %674 = vmatpush.msra.mxu0 %v364
    %675 = vmatpush.msra.mxu0 %v360
    %676 = vmatpush.msra.mxu0 %v356
    %677 = vmatpush.msra.mxu0 %v352
    %678 = vmatpush.msra.mxu0 %v348
    %679 = vmatpush.msra.mxu0 %v344
    %680 = vmatmul.f32.gmra.mxu0 %v618
    %v681 = vpop.f32.mrf.mxu0
    %v682 = vadd.f32 0.0, %v681
    %683 = vdwg.mxu0
    %684 = vmatpush.msra.mxu0 %v405
    %685 = vmatpush.msra.mxu0 %v401
    %686 = vmatpush.msra.mxu0 %v397
    %687 = vmatpush.msra.mxu0 %v393
    %688 = vmatpush.msra.mxu0 %v389
    %689 = vmatpush.msra.mxu0 %v385
    %690 = vmatpush.msra.mxu0 %v381
    %691 = vmatpush.msra.mxu0 %v377
    %692 = vmatpush.msra.mxu0 %v373
    %693 = vmatpush.msra.mxu0 %v369
    %694 = vmatpush.msra.mxu0 %v365
    %695 = vmatpush.msra.mxu0 %v361
    %696 = vmatpush.msra.mxu0 %v357
    %697 = vmatpush.msra.mxu0 %v353
    %698 = vmatpush.msra.mxu0 %v349
    %699 = vmatpush.msra.mxu0 %v345
    %700 = vmatmul.f32.gmra.mxu0 %v618
    %v701 = vpop.f32.mrf.mxu0
    %v702 = vadd.f32 0.0, %v701
    %703 = vdwg.mxu0
    %v704 = vadd.f32 %v620, %v642
    %v705 = vadd.f32 %v621, %v662
    %v706 = vadd.f32 %v622, %v682
    %v707 = vadd.f32 %v623, %v702
    %v708 = vmul.f32 %v704, 0.5
    %v709 = vtanh.pop %v708
    %v710 = vmul.f32 %v709, 0.5
    %v711 = vadd.f32 %v710, 0.5
    %v712 = vmul.f32 %v705, 0.5
    %v713 = vtanh.pop %v712
    %v714 = vmul.f32 %v713, 0.5
    %v715 = vadd.f32 %v714, 0.5
    %v716 = vtanh.pop %v706
    %v717 = vmul.f32 %v707, 0.5
    %v718 = vtanh.pop %v717
    %v719 = vmul.f32 %v718, 0.5
    %v720 = vadd.f32 %v719, 0.5
    %v721 = vmul.f32 %v715, %v616
    %v722 = vmul.f32 %v711, %v716
    %v723 = vadd.f32 %v721, %v722
    %v724 = vtanh.pop %v723
    %v725 = vmul.f32 %v720, %v724
    %726 = vst [vmem:[#allocation3 + $0x10] sm:$0xff] %v725
    %v727 = vld [vmem:[#allocation2 + $0x60] sm:$0xff]
    %v728 = vld [vmem:[#allocation2 + $0x68] sm:$0xff]
    %v729 = vld [vmem:[#allocation2 + $0x70] sm:$0xff]
    %v730 = vld [vmem:[#allocation2 + $0x78] sm:$0xff]
    %731 = vmatpush.msra.mxu0 %v402
    %732 = vmatpush.msra.mxu0 %v398
    %733 = vmatpush.msra.mxu0 %v394
    %734 = vmatpush.msra.mxu0 %v390
    %735 = vmatpush.msra.mxu0 %v386
    %736 = vmatpush.msra.mxu0 %v382
    %737 = vmatpush.msra.mxu0 %v378
    %738 = vmatpush.msra.mxu0 %v374
    %739 = vmatpush.msra.mxu0 %v370
    %740 = vmatpush.msra.mxu0 %v366
    %741 = vmatpush.msra.mxu0 %v362
    %742 = vmatpush.msra.mxu0 %v358
    %743 = vmatpush.msra.mxu0 %v354
    %744 = vmatpush.msra.mxu0 %v350
    %745 = vmatpush.msra.mxu0 %v346
    %746 = vmatpush.msra.mxu0 %v342
    %747 = vmatmul.f32.gmra.mxu0 %v725
    %v748 = vpop.f32.mrf.mxu0
    %v749 = vadd.f32 0.0, %v748
    %750 = vdwg.mxu0
    %751 = vmatpush.msra.mxu0 %v403
    %752 = vmatpush.msra.mxu0 %v399
    %753 = vmatpush.msra.mxu0 %v395
    %754 = vmatpush.msra.mxu0 %v391
    %755 = vmatpush.msra.mxu0 %v387
    %756 = vmatpush.msra.mxu0 %v383
    %757 = vmatpush.msra.mxu0 %v379
    %758 = vmatpush.msra.mxu0 %v375
    %759 = vmatpush.msra.mxu0 %v371
    %760 = vmatpush.msra.mxu0 %v367
    %761 = vmatpush.msra.mxu0 %v363
    %762 = vmatpush.msra.mxu0 %v359
    %763 = vmatpush.msra.mxu0 %v355
    %764 = vmatpush.msra.mxu0 %v351
    %765 = vmatpush.msra.mxu0 %v347
    %766 = vmatpush.msra.mxu0 %v343
    %767 = vmatmul.f32.gmra.mxu0 %v725
    %v768 = vpop.f32.mrf.mxu0
    %v769 = vadd.f32 0.0, %v768
    %770 = vdwg.mxu0
    %771 = vmatpush.msra.mxu0 %v404
    %772 = vmatpush.msra.mxu0 %v400
    %773 = vmatpush.msra.mxu0 %v396
    %774 = vmatpush.msra.mxu0 %v392
    %775 = vmatpush.msra.mxu0 %v388
    %776 = vmatpush.msra.mxu0 %v384
    %777 = vmatpush.msra.mxu0 %v380
    %778 = vmatpush.msra.mxu0 %v376
    %779 = vmatpush.msra.mxu0 %v372
    %780 = vmatpush.msra.mxu0 %v368
    %781 = vmatpush.msra.mxu0 %v364
    %782 = vmatpush.msra.mxu0 %v360
    %783 = vmatpush.msra.mxu0 %v356
    %784 = vmatpush.msra.mxu0 %v352
    %785 = vmatpush.msra.mxu0 %v348
    %786 = vmatpush.msra.mxu0 %v344
    %787 = vmatmul.f32.gmra.mxu0 %v725
    %v788 = vpop.f32.mrf.mxu0
    %v789 = vadd.f32 0.0, %v788
    %790 = vdwg.mxu0
    %791 = vmatpush.msra.mxu0 %v405
    %792 = vmatpush.msra.mxu0 %v401
    %793 = vmatpush.msra.mxu0 %v397
    %794 = vmatpush.msra.mxu0 %v393
    %795 = vmatpush.msra.mxu0 %v389
    %796 = vmatpush.msra.mxu0 %v385
    %797 = vmatpush.msra.mxu0 %v381
    %798 = vmatpush.msra.mxu0 %v377
    %799 = vmatpush.msra.mxu0 %v373
    %800 = vmatpush.msra.mxu0 %v369
    %801 = vmatpush.msra.mxu0 %v365
    %802 = vmatpush.msra.mxu0 %v361
    %803 = vmatpush.msra.mxu0 %v357
    %804 = vmatpush.msra.mxu0 %v353
    %805 = vmatpush.msra.mxu0 %v349
    %806 = vmatpush.msra.mxu0 %v345
    %807 = vmatmul.f32.gmra.mxu0 %v725
    %v808 = vpop.f32.mrf.mxu0
    %v809 = vadd.f32 0.0, %v808
    %810 = vdwg.mxu0
    %v811 = vadd.f32 %v727, %v749
    %v812 = vadd.f32 %v728, %v769
    %v813 = vadd.f32 %v729, %v789
    %v814 = vadd.f32 %v730, %v809
    %v815 = vmul.f32 %v811, 0.5
    %v816 = vtanh.pop %v815
    %v817 = vmul.f32 %v816, 0.5
    %v818 = vadd.f32 %v817, 0.5
    %v819 = vmul.f32 %v812, 0.5
    %v820 = vtanh.pop %v819
    %v821 = vmul.f32 %v820, 0.5
    %v822 = vadd.f32 %v821, 0.5
    %v823 = vtanh.pop %v813
    %v824 = vmul.f32 %v814, 0.5
    %v825 = vtanh.pop %v824
    %v826 = vmul.f32 %v825, 0.5
    %v827 = vadd.f32 %v826, 0.5
    %v828 = vmul.f32 %v822, %v723
    %v829 = vmul.f32 %v818, %v823
    %v830 = vadd.f32 %v828, %v829
    %v831 = vtanh.pop %v830
    %v832 = vmul.f32 %v827, %v831
    %833 = vst [vmem:[#allocation3 + $0x18] sm:$0xff] %v832
    %v834 = vld [vmem:[#allocation2 + $0x80] sm:$0xff]
    %v835 = vld [vmem:[#allocation2 + $0x88] sm:$0xff]
    %v836 = vld [vmem:[#allocation2 + $0x90] sm:$0xff]
    %v837 = vld [vmem:[#allocation2 + $0x98] sm:$0xff]
    %838 = vmatpush.msra.mxu0 %v402
    %839 = vmatpush.msra.mxu0 %v398
    %840 = vmatpush.msra.mxu0 %v394
    %841 = vmatpush.msra.mxu0 %v390
    %842 = vmatpush.msra.mxu0 %v386
    %843 = vmatpush.msra.mxu0 %v382
    %844 = vmatpush.msra.mxu0 %v378
    %845 = vmatpush.msra.mxu0 %v374
    %846 = vmatpush.msra.mxu0 %v370
    %847 = vmatpush.msra.mxu0 %v366
    %848 = vmatpush.msra.mxu0 %v362
    %849 = vmatpush.msra.mxu0 %v358
    %850 = vmatpush.msra.mxu0 %v354
    %851 = vmatpush.msra.mxu0 %v350
    %852 = vmatpush.msra.mxu0 %v346
    %853 = vmatpush.msra.mxu0 %v342
    %854 = vmatmul.f32.gmra.mxu0 %v832
    %v855 = vpop.f32.mrf.mxu0
    %v856 = vadd.f32 0.0, %v855
    %857 = vdwg.mxu0
    %858 = vmatpush.msra.mxu0 %v403
    %859 = vmatpush.msra.mxu0 %v399
    %860 = vmatpush.msra.mxu0 %v395
    %861 = vmatpush.msra.mxu0 %v391
    %862 = vmatpush.msra.mxu0 %v387
    %863 = vmatpush.msra.mxu0 %v383
    %864 = vmatpush.msra.mxu0 %v379
    %865 = vmatpush.msra.mxu0 %v375
    %866 = vmatpush.msra.mxu0 %v371
    %867 = vmatpush.msra.mxu0 %v367
    %868 = vmatpush.msra.mxu0 %v363
    %869 = vmatpush.msra.mxu0 %v359
    %870 = vmatpush.msra.mxu0 %v355
    %871 = vmatpush.msra.mxu0 %v351
    %872 = vmatpush.msra.mxu0 %v347
    %873 = vmatpush.msra.mxu0 %v343
    %874 = vmatmul.f32.gmra.mxu0 %v832
    %v875 = vpop.f32.mrf.mxu0
    %v876 = vadd.f32 0.0, %v875
    %877 = vdwg.mxu0
    %878 = vmatpush.msra.mxu0 %v404
    %879 = vmatpush.msra.mxu0 %v400
    %880 = vmatpush.msra.mxu0 %v396
    %881 = vmatpush.msra.mxu0 %v392
    %882 = vmatpush.msra.mxu0 %v388
    %883 = vmatpush.msra.mxu0 %v384
    %884 = vmatpush.msra.mxu0 %v380
    %885 = vmatpush.msra.mxu0 %v376
    %886 = vmatpush.msra.mxu0 %v372
    %887 = vmatpush.msra.mxu0 %v368
    %888 = vmatpush.msra.mxu0 %v364
    %889 = vmatpush.msra.mxu0 %v360
    %890 = vmatpush.msra.mxu0 %v356
    %891 = vmatpush.msra.mxu0 %v352
    %892 = vmatpush.msra.mxu0 %v348
    %893 = vmatpush.msra.mxu0 %v344
    %894 = vmatmul.f32.gmra.mxu0 %v832
    %v895 = vpop.f32.mrf.mxu0
    %v896 = vadd.f32 0.0, %v895
    %897 = vdwg.mxu0
    %898 = vmatpush.msra.mxu0 %v405
    %899 = vmatpush.msra.mxu0 %v401
    %900 = vmatpush.msra.mxu0 %v397
    %901 = vmatpush.msra.mxu0 %v393
    %902 = vmatpush.msra.mxu0 %v389
    %903 = vmatpush.msra.mxu0 %v385
    %904 = vmatpush.msra.mxu0 %v381
    %905 = vmatpush.msra.mxu0 %v377
    %906 = vmatpush.msra.mxu0 %v373
    %907 = vmatpush.msra.mxu0 %v369
    %908 = vmatpush.msra.mxu0 %v365
    %909 = vmatpush.msra.mxu0 %v361
    %910 = vmatpush.msra.mxu0 %v357
    %911 = vmatpush.msra.mxu0 %v353
    %912 = vmatpush.msra.mxu0 %v349
    %913 = vmatpush.msra.mxu0 %v345
    %914 = vmatmul.f32.gmra.mxu0 %v832
    %v915 = vpop.f32.mrf.mxu0
    %v916 = vadd.f32 0.0, %v915
    %917 = vdwg.mxu0
    %v918 = vadd.f32 %v834, %v856
    %v919 = vadd.f32 %v835, %v876
    %v920 = vadd.f32 %v836, %v896
    %v921 = vadd.f32 %v837, %v916
    %v922 = vmul.f32 %v918, 0.5
    %v923 = vtanh.pop %v922
    %v924 = vmul.f32 %v923, 0.5
    %v925 = vadd.f32 %v924, 0.5
    %v926 = vmul.f32 %v919, 0.5
    %v927 = vtanh.pop %v926
    %v928 = vmul.f32 %v927, 0.5
    %v929 = vadd.f32 %v928, 0.5
    %v930 = vtanh.pop %v920
    %v931 = vmul.f32 %v921, 0.5
    %v932 = vtanh.pop %v931
    %v933 = vmul.f32 %v932, 0.5
    %v934 = vadd.f32 %v933, 0.5
    %v935 = vmul.f32 %v929, %v830
    %v936 = vmul.f32 %v925, %v930
    %v937 = vadd.f32 %v935, %v936
    %v938 = vtanh.pop %v937
    %v939 = vmul.f32 %v934, %v938
    %940 = vst [vmem:[#allocation3 + $0x20] sm:$0xff] %v939
    %v941 = vld [vmem:[#allocation2 + $0xa0] sm:$0xff]
    %v942 = vld [vmem:[#allocation2 + $0xa8] sm:$0xff]
    %v943 = vld [vmem:[#allocation2 + $0xb0] sm:$0xff]
    %v944 = vld [vmem:[#allocation2 + $0xb8] sm:$0xff]
    %945 = vmatpush.msra.mxu0 %v402
    %946 = vmatpush.msra.mxu0 %v398
    %947 = vmatpush.msra.mxu0 %v394
    %948 = vmatpush.msra.mxu0 %v390
    %949 = vmatpush.msra.mxu0 %v386
    %950 = vmatpush.msra.mxu0 %v382
    %951 = vmatpush.msra.mxu0 %v378
    %952 = vmatpush.msra.mxu0 %v374
    %953 = vmatpush.msra.mxu0 %v370
    %954 = vmatpush.msra.mxu0 %v366
    %955 = vmatpush.msra.mxu0 %v362
    %956 = vmatpush.msra.mxu0 %v358
    %957 = vmatpush.msra.mxu0 %v354
    %958 = vmatpush.msra.mxu0 %v350
    %959 = vmatpush.msra.mxu0 %v346
    %960 = vmatpush.msra.mxu0 %v342
    %961 = vmatmul.f32.gmra.mxu0 %v939
    %v962 = vpop.f32.mrf.mxu0
    %v963 = vadd.f32 0.0, %v962
    %964 = vdwg.mxu0
    %965 = vmatpush.msra.mxu0 %v403
    %966 = vmatpush.msra.mxu0 %v399
    %967 = vmatpush.msra.mxu0 %v395
    %968 = vmatpush.msra.mxu0 %v391
    %969 = vmatpush.msra.mxu0 %v387
    %970 = vmatpush.msra.mxu0 %v383
    %971 = vmatpush.msra.mxu0 %v379
    %972 = vmatpush.msra.mxu0 %v375
    %973 = vmatpush.msra.mxu0 %v371
    %974 = vmatpush.msra.mxu0 %v367
    %975 = vmatpush.msra.mxu0 %v363
    %976 = vmatpush.msra.mxu0 %v359
    %977 = vmatpush.msra.mxu0 %v355
    %978 = vmatpush.msra.mxu0 %v351
    %979 = vmatpush.msra.mxu0 %v347
    %980 = vmatpush.msra.mxu0 %v343
    %981 = vmatmul.f32.gmra.mxu0 %v939
    %v982 = vpop.f32.mrf.mxu0
    %v983 = vadd.f32 0.0, %v982
    %984 = vdwg.mxu0
    %985 = vmatpush.msra.mxu0 %v404
    %986 = vmatpush.msra.mxu0 %v400
    %987 = vmatpush.msra.mxu0 %v396
    %988 = vmatpush.msra.mxu0 %v392
    %989 = vmatpush.msra.mxu0 %v388
    %990 = vmatpush.msra.mxu0 %v384
    %991 = vmatpush.msra.mxu0 %v380
    %992 = vmatpush.msra.mxu0 %v376
    %993 = vmatpush.msra.mxu0 %v372
    %994 = vmatpush.msra.mxu0 %v368
    %995 = vmatpush.msra.mxu0 %v364
    %996 = vmatpush.msra.mxu0 %v360
    %997 = vmatpush.msra.mxu0 %v356
    %998 = vmatpush.msra.mxu0 %v352
    %999 = vmatpush.msra.mxu0 %v348
    %1000 = vmatpush.msra.mxu0 %v344
    %1001 = vmatmul.f32.gmra.mxu0 %v939
    %v1002 = vpop.f32.mrf.mxu0
    %v1003 = vadd.f32 0.0, %v1002
    %1004 = vdwg.mxu0
    %1005 = vmatpush.msra.mxu0 %v405
    %1006 = vmatpush.msra.mxu0 %v401
    %1007 = vmatpush.msra.mxu0 %v397
    %1008 = vmatpush.msra.mxu0 %v393
    %1009 = vmatpush.msra.mxu0 %v389
    %1010 = vmatpush.msra.mxu0 %v385
    %1011 = vmatpush.msra.mxu0 %v381
    %1012 = vmatpush.msra.mxu0 %v377
    %1013 = vmatpush.msra.mxu0 %v373
    %1014 = vmatpush.msra.mxu0 %v369
    %1015 = vmatpush.msra.mxu0 %v365
    %1016 = vmatpush.msra.mxu0 %v361
    %1017 = vmatpush.msra.mxu0 %v357
    %1018 = vmatpush.msra.mxu0 %v353
    %1019 = vmatpush.msra.mxu0 %v349
    %1020 = vmatpush.msra.mxu0 %v345
    %1021 = vmatmul.f32.gmra.mxu0 %v939
    %v1022 = vpop.f32.mrf.mxu0
    %v1023 = vadd.f32 0.0, %v1022
    %1024 = vdwg.mxu0
    %v1025 = vadd.f32 %v941, %v963
    %v1026 = vadd.f32 %v942, %v983
    %v1027 = vadd.f32 %v943, %v1003
    %v1028 = vadd.f32 %v944, %v1023
    %v1029 = vmul.f32 %v1025, 0.5
    %v1030 = vtanh.pop %v1029
    %v1031 = vmul.f32 %v1030, 0.5
    %v1032 = vadd.f32 %v1031, 0.5
    %v1033 = vmul.f32 %v1026, 0.5
    %v1034 = vtanh.pop %v1033
    %v1035 = vmul.f32 %v1034, 0.5
    %v1036 = vadd.f32 %v1035, 0.5
    %v1037 = vtanh.pop %v1027
    %v1038 = vmul.f32 %v1028, 0.5
    %v1039 = vtanh.pop %v1038
    %v1040 = vmul.f32 %v1039, 0.5
    %v1041 = vadd.f32 %v1040, 0.5
    %v1042 = vmul.f32 %v1036, %v937
    %v1043 = vmul.f32 %v1032, %v1037
    %v1044 = vadd.f32 %v1042, %v1043
    %v1045 = vtanh.pop %v1044
    %v1046 = vmul.f32 %v1041, %v1045
    %1047 = vst [vmem:[#allocation3 + $0x28] sm:$0xff] %v1046
    %v1048 = vld [vmem:[#allocation2 + $0xc0] sm:$0xff]
    %v1049 = vld [vmem:[#allocation2 + $0xc8] sm:$0xff]
    %v1050 = vld [vmem:[#allocation2 + $0xd0] sm:$0xff]
    %v1051 = vld [vmem:[#allocation2 + $0xd8] sm:$0xff]
    %1052 = vmatpush.msra.mxu0 %v402
    %1053 = vmatpush.msra.mxu0 %v398
    %1054 = vmatpush.msra.mxu0 %v394
    %1055 = vmatpush.msra.mxu0 %v390
    %1056 = vmatpush.msra.mxu0 %v386
    %1057 = vmatpush.msra.mxu0 %v382
    %1058 = vmatpush.msra.mxu0 %v378
    %1059 = vmatpush.msra.mxu0 %v374
    %1060 = vmatpush.msra.mxu0 %v370
    %1061 = vmatpush.msra.mxu0 %v366
    %1062 = vmatpush.msra.mxu0 %v362
    %1063 = vmatpush.msra.mxu0 %v358
    %1064 = vmatpush.msra.mxu0 %v354
    %1065 = vmatpush.msra.mxu0 %v350
    %1066 = vmatpush.msra.mxu0 %v346
    %1067 = vmatpush.msra.mxu0 %v342
    %1068 = vmatmul.f32.gmra.mxu0 %v1046
    %v1069 = vpop.f32.mrf.mxu0
    %v1070 = vadd.f32 0.0, %v1069
    %1071 = vdwg.mxu0
    %1072 = vmatpush.msra.mxu0 %v403
    %1073 = vmatpush.msra.mxu0 %v399
    %1074 = vmatpush.msra.mxu0 %v395
    %1075 = vmatpush.msra.mxu0 %v391
    %1076 = vmatpush.msra.mxu0 %v387
    %1077 = vmatpush.msra.mxu0 %v383
    %1078 = vmatpush.msra.mxu0 %v379
    %1079 = vmatpush.msra.mxu0 %v375
    %1080 = vmatpush.msra.mxu0 %v371
    %1081 = vmatpush.msra.mxu0 %v367
    %1082 = vmatpush.msra.mxu0 %v363
    %1083 = vmatpush.msra.mxu0 %v359
    %1084 = vmatpush.msra.mxu0 %v355
    %1085 = vmatpush.msra.mxu0 %v351
    %1086 = vmatpush.msra.mxu0 %v347
    %1087 = vmatpush.msra.mxu0 %v343
    %1088 = vmatmul.f32.gmra.mxu0 %v1046
    %v1089 = vpop.f32.mrf.mxu0
    %v1090 = vadd.f32 0.0, %v1089
    %1091 = vdwg.mxu0
    %1092 = vmatpush.msra.mxu0 %v404
    %1093 = vmatpush.msra.mxu0 %v400
    %1094 = vmatpush.msra.mxu0 %v396
    %1095 = vmatpush.msra.mxu0 %v392
    %1096 = vmatpush.msra.mxu0 %v388
    %1097 = vmatpush.msra.mxu0 %v384
    %1098 = vmatpush.msra.mxu0 %v380
    %1099 = vmatpush.msra.mxu0 %v376
    %1100 = vmatpush.msra.mxu0 %v372
    %1101 = vmatpush.msra.mxu0 %v368
    %1102 = vmatpush.msra.mxu0 %v364
    %1103 = vmatpush.msra.mxu0 %v360
    %1104 = vmatpush.msra.mxu0 %v356
    %1105 = vmatpush.msra.mxu0 %v352
    %1106 = vmatpush.msra.mxu0 %v348
    %1107 = vmatpush.msra.mxu0 %v344
    %1108 = vmatmul.f32.gmra.mxu0 %v1046
    %v1109 = vpop.f32.mrf.mxu0
    %v1110 = vadd.f32 0.0, %v1109
    %1111 = vdwg.mxu0
    %1112 = vmatpush.msra.mxu0 %v405
    %1113 = vmatpush.msra.mxu0 %v401
    %1114 = vmatpush.msra.mxu0 %v397
    %1115 = vmatpush.msra.mxu0 %v393
    %1116 = vmatpush.msra.mxu0 %v389
    %1117 = vmatpush.msra.mxu0 %v385
    %1118 = vmatpush.msra.mxu0 %v381
    %1119 = vmatpush.msra.mxu0 %v377
    %1120 = vmatpush.msra.mxu0 %v373
    %1121 = vmatpush.msra.mxu0 %v369
    %1122 = vmatpush.msra.mxu0 %v365
    %1123 = vmatpush.msra.mxu0 %v361
    %1124 = vmatpush.msra.mxu0 %v357
    %1125 = vmatpush.msra.mxu0 %v353
    %1126 = vmatpush.msra.mxu0 %v349
    %1127 = vmatpush.msra.mxu0 %v345
    %1128 = vmatmul.f32.gmra.mxu0 %v1046
    %v1129 = vpop.f32.mrf.mxu0
    %v1130 = vadd.f32 0.0, %v1129
    %1131 = vdwg.mxu0
    %v1132 = vadd.f32 %v1048, %v1070
    %v1133 = vadd.f32 %v1049, %v1090
    %v1134 = vadd.f32 %v1050, %v1110
    %v1135 = vadd.f32 %v1051, %v1130
    %v1136 = vmul.f32 %v1132, 0.5
    %v1137 = vtanh.pop %v1136
    %v1138 = vmul.f32 %v1137, 0.5
    %v1139 = vadd.f32 %v1138, 0.5
    %v1140 = vmul.f32 %v1133, 0.5
    %v1141 = vtanh.pop %v1140
    %v1142 = vmul.f32 %v1141, 0.5
    %v1143 = vadd.f32 %v1142, 0.5
    %v1144 = vtanh.pop %v1134
    %v1145 = vmul.f32 %v1135, 0.5
    %v1146 = vtanh.pop %v1145
    %v1147 = vmul.f32 %v1146, 0.5
    %v1148 = vadd.f32 %v1147, 0.5
    %v1149 = vmul.f32 %v1143, %v1044
    %v1150 = vmul.f32 %v1139, %v1144
    %v1151 = vadd.f32 %v1149, %v1150
    %v1152 = vtanh.pop %v1151
    %v1153 = vmul.f32 %v1148, %v1152
    %1154 = vst [vmem:[#allocation3 + $0x30] sm:$0xff] %v1153
    %v1155 = vld [vmem:[#allocation2 + $0xe0] sm:$0xff]
    %v1156 = vld [vmem:[#allocation2 + $0xe8] sm:$0xff]
    %v1157 = vld [vmem:[#allocation2 + $0xf0] sm:$0xff]
    %v1158 = vld [vmem:[#allocation2 + $0xf8] sm:$0xff]
    %1159 = vmatpush.msra.mxu0 %v402
    %1160 = vmatpush.msra.mxu0 %v398
    %1161 = vmatpush.msra.mxu0 %v394
    %1162 = vmatpush.msra.mxu0 %v390
    %1163 = vmatpush.msra.mxu0 %v386
    %1164 = vmatpush.msra.mxu0 %v382
    %1165 = vmatpush.msra.mxu0 %v378
    %1166 = vmatpush.msra.mxu0 %v374
    %1167 = vmatpush.msra.mxu0 %v370
    %1168 = vmatpush.msra.mxu0 %v366
    %1169 = vmatpush.msra.mxu0 %v362
    %1170 = vmatpush.msra.mxu0 %v358
    %1171 = vmatpush.msra.mxu0 %v354
    %1172 = vmatpush.msra.mxu0 %v350
    %1173 = vmatpush.msra.mxu0 %v346
    %1174 = vmatpush.msra.mxu0 %v342
    %1175 = vmatmul.f32.gmra.mxu0 %v1153
    %v1176 = vpop.f32.mrf.mxu0
    %v1177 = vadd.f32 0.0, %v1176
    %1178 = vdwg.mxu0
    %1179 = vmatpush.msra.mxu0 %v403
    %1180 = vmatpush.msra.mxu0 %v399
    %1181 = vmatpush.msra.mxu0 %v395
    %1182 = vmatpush.msra.mxu0 %v391
    %1183 = vmatpush.msra.mxu0 %v387
    %1184 = vmatpush.msra.mxu0 %v383
    %1185 = vmatpush.msra.mxu0 %v379
    %1186 = vmatpush.msra.mxu0 %v375
    %1187 = vmatpush.msra.mxu0 %v371
    %1188 = vmatpush.msra.mxu0 %v367
    %1189 = vmatpush.msra.mxu0 %v363
    %1190 = vmatpush.msra.mxu0 %v359
    %1191 = vmatpush.msra.mxu0 %v355
    %1192 = vmatpush.msra.mxu0 %v351
    %1193 = vmatpush.msra.mxu0 %v347
    %1194 = vmatpush.msra.mxu0 %v343
    %1195 = vmatmul.f32.gmra.mxu0 %v1153
    %v1196 = vpop.f32.mrf.mxu0
    %v1197 = vadd.f32 0.0, %v1196
    %1198 = vdwg.mxu0
    %1199 = vmatpush.msra.mxu0 %v404
    %1200 = vmatpush.msra.mxu0 %v400
    %1201 = vmatpush.msra.mxu0 %v396
    %1202 = vmatpush.msra.mxu0 %v392
    %1203 = vmatpush.msra.mxu0 %v388
    %1204 = vmatpush.msra.mxu0 %v384
    %1205 = vmatpush.msra.mxu0 %v380
    %1206 = vmatpush.msra.mxu0 %v376
    %1207 = vmatpush.msra.mxu0 %v372
    %1208 = vmatpush.msra.mxu0 %v368
    %1209 = vmatpush.msra.mxu0 %v364
    %1210 = vmatpush.msra.mxu0 %v360
    %1211 = vmatpush.msra.mxu0 %v356
    %1212 = vmatpush.msra.mxu0 %v352
    %1213 = vmatpush.msra.mxu0 %v348
    %1214 = vmatpush.msra.mxu0 %v344
    %1215 = vmatmul.f32.gmra.mxu0 %v1153
    %v1216 = vpop.f32.mrf.mxu0
    %v1217 = vadd.f32 0.0, %v1216
    %1218 = vdwg.mxu0
    %1219 = vmatpush.msra.mxu0 %v405
    %1220 = vmatpush.msra.mxu0 %v401
    %1221 = vmatpush.msra.mxu0 %v397
    %1222 = vmatpush.msra.mxu0 %v393
    %1223 = vmatpush.msra.mxu0 %v389
    %1224 = vmatpush.msra.mxu0 %v385
    %1225 = vmatpush.msra.mxu0 %v381
    %1226 = vmatpush.msra.mxu0 %v377
    %1227 = vmatpush.msra.mxu0 %v373
    %1228 = vmatpush.msra.mxu0 %v369
    %1229 = vmatpush.msra.mxu0 %v365
    %1230 = vmatpush.msra.mxu0 %v361
    %1231 = vmatpush.msra.mxu0 %v357
    %1232 = vmatpush.msra.mxu0 %v353
    %1233 = vmatpush.msra.mxu0 %v349
    %1234 = vmatpush.msra.mxu0 %v345
    %1235 = vmatmul.f32.gmra.mxu0 %v1153
    %v1236 = vpop.f32.mrf.mxu0
    %v1237 = vadd.f32 0.0, %v1236
    %1238 = vdwg.mxu0
    %v1239 = vadd.f32 %v1155, %v1177
    %v1240 = vadd.f32 %v1156, %v1197
    %v1241 = vadd.f32 %v1157, %v1217
    %v1242 = vadd.f32 %v1158, %v1237
    %v1243 = vmul.f32 %v1239, 0.5
    %v1244 = vtanh.pop %v1243
    %v1245 = vmul.f32 %v1244, 0.5
    %v1246 = vadd.f32 %v1245, 0.5
    %v1247 = vmul.f32 %v1240, 0.5
    %v1248 = vtanh.pop %v1247
    %v1249 = vmul.f32 %v1248, 0.5
    %v1250 = vadd.f32 %v1249, 0.5
    %v1251 = vtanh.pop %v1241
    %v1252 = vmul.f32 %v1242, 0.5
    %v1253 = vtanh.pop %v1252
    %v1254 = vmul.f32 %v1253, 0.5
    %v1255 = vadd.f32 %v1254, 0.5
    %v1256 = vmul.f32 %v1250, %v1151
    %v1257 = vmul.f32 %v1246, %v1251
    %v1258 = vadd.f32 %v1256, %v1257
    %v1259 = vtanh.pop %v1258
    %v1260 = vmul.f32 %v1255, %v1259
    %1261 = vst [vmem:[#allocation3 + $0x38] sm:$0xff] %v1260
    %v1262 = vld [vmem:[#allocation6] sm:$0xff]
    %v1263 = vld [vmem:[#allocation6 + $0x8] sm:$0xff]
    %v1264 = vld [vmem:[#allocation6 + $0x10] sm:$0xff]
    %v1265 = vld [vmem:[#allocation6 + $0x18] sm:$0xff]
    %v1266 = vld [vmem:[#allocation6 + $0x20] sm:$0xff]
    %v1267 = vld [vmem:[#allocation6 + $0x28] sm:$0xff]
    %v1268 = vld [vmem:[#allocation6 + $0x30] sm:$0xff]
    %v1269 = vld [vmem:[#allocation6 + $0x38] sm:$0xff]
    %v1270 = vld [vmem:[#allocation6 + $0x40] sm:$0xff]
    %v1271 = vld [vmem:[#allocation6 + $0x48] sm:$0xff]
    %v1272 = vld [vmem:[#allocation6 + $0x50] sm:$0xff]
    %v1273 = vld [vmem:[#allocation6 + $0x58] sm:$0xff]
    %v1274 = vld [vmem:[#allocation6 + $0x60] sm:$0xff]
    %v1275 = vld [vmem:[#allocation6 + $0x68] sm:$0xff]
    %v1276 = vld [vmem:[#allocation6 + $0x70] sm:$0xff]
    %v1277 = vld [vmem:[#allocation6 + $0x78] sm:$0xff]
    %v1278 = vld [vmem:[#allocation6 + $0x80] sm:$0xff]
    %v1279 = vld [vmem:[#allocation6 + $0x88] sm:$0xff]
    %v1280 = vld [vmem:[#allocation6 + $0x90] sm:$0xff]
    %v1281 = vld [vmem:[#allocation6 + $0x98] sm:$0xff]
    %v1282 = vld [vmem:[#allocation6 + $0xa0] sm:$0xff]
    %v1283 = vld [vmem:[#allocation6 + $0xa8] sm:$0xff]
    %v1284 = vld [vmem:[#allocation6 + $0xb0] sm:$0xff]
    %v1285 = vld [vmem:[#allocation6 + $0xb8] sm:$0xff]
    %v1286 = vld [vmem:[#allocation6 + $0xc0] sm:$0xff]
    %v1287 = vld [vmem:[#allocation6 + $0xc8] sm:$0xff]
    %v1288 = vld [vmem:[#allocation6 + $0xd0] sm:$0xff]
    %v1289 = vld [vmem:[#allocation6 + $0xd8] sm:$0xff]
    %v1290 = vld [vmem:[#allocation6 + $0xe0] sm:$0xff]
    %v1291 = vld [vmem:[#allocation6 + $0xe8] sm:$0xff]
    %v1292 = vld [vmem:[#allocation6 + $0xf0] sm:$0xff]
    %v1293 = vld [vmem:[#allocation6 + $0xf8] sm:$0xff]
    %v1294 = vld [vmem:[#allocation6 + $0x100] sm:$0xff]
    %v1295 = vld [vmem:[#allocation6 + $0x108] sm:$0xff]
    %v1296 = vld [vmem:[#allocation6 + $0x110] sm:$0xff]
    %v1297 = vld [vmem:[#allocation6 + $0x118] sm:$0xff]
    %v1298 = vld [vmem:[#allocation6 + $0x120] sm:$0xff]
    %v1299 = vld [vmem:[#allocation6 + $0x128] sm:$0xff]
    %v1300 = vld [vmem:[#allocation6 + $0x130] sm:$0xff]
    %v1301 = vld [vmem:[#allocation6 + $0x138] sm:$0xff]
    %v1302 = vld [vmem:[#allocation6 + $0x140] sm:$0xff]
    %v1303 = vld [vmem:[#allocation6 + $0x148] sm:$0xff]
    %v1304 = vld [vmem:[#allocation6 + $0x150] sm:$0xff]
    %v1305 = vld [vmem:[#allocation6 + $0x158] sm:$0xff]
    %v1306 = vld [vmem:[#allocation6 + $0x160] sm:$0xff]
    %v1307 = vld [vmem:[#allocation6 + $0x168] sm:$0xff]
    %v1308 = vld [vmem:[#allocation6 + $0x170] sm:$0xff]
    %v1309 = vld [vmem:[#allocation6 + $0x178] sm:$0xff]
    %v1310 = vld [vmem:[#allocation6 + $0x180] sm:$0xff]
    %v1311 = vld [vmem:[#allocation6 + $0x188] sm:$0xff]
    %v1312 = vld [vmem:[#allocation6 + $0x190] sm:$0xff]
    %v1313 = vld [vmem:[#allocation6 + $0x198] sm:$0xff]
    %v1314 = vld [vmem:[#allocation6 + $0x1a0] sm:$0xff]
    %v1315 = vld [vmem:[#allocation6 + $0x1a8] sm:$0xff]
    %v1316 = vld [vmem:[#allocation6 + $0x1b0] sm:$0xff]
    %v1317 = vld [vmem:[#allocation6 + $0x1b8] sm:$0xff]
    %v1318 = vld [vmem:[#allocation6 + $0x1c0] sm:$0xff]
    %v1319 = vld [vmem:[#allocation6 + $0x1c8] sm:$0xff]
    %v1320 = vld [vmem:[#allocation6 + $0x1d0] sm:$0xff]
    %v1321 = vld [vmem:[#allocation6 + $0x1d8] sm:$0xff]
    %v1322 = vld [vmem:[#allocation6 + $0x1e0] sm:$0xff]
    %v1323 = vld [vmem:[#allocation6 + $0x1e8] sm:$0xff]
    %v1324 = vld [vmem:[#allocation6 + $0x1f0] sm:$0xff]
    %v1325 = vld [vmem:[#allocation6 + $0x1f8] sm:$0xff]
    %v1326 = vld [vmem:[#allocation3] sm:$0xff]
    %v1327 = vld [vmem:[#allocation3 + $0x8] sm:$0xff]
    %v1328 = vld [vmem:[#allocation3 + $0x10] sm:$0xff]
    %v1329 = vld [vmem:[#allocation3 + $0x18] sm:$0xff]
    %v1330 = vld [vmem:[#allocation3 + $0x20] sm:$0xff]
    %v1331 = vld [vmem:[#allocation3 + $0x28] sm:$0xff]
    %v1332 = vld [vmem:[#allocation3 + $0x30] sm:$0xff]
    %v1333 = vld [vmem:[#allocation3 + $0x38] sm:$0xff]
    %v1334 = vld [vmem:[%s6] sm:$0xf]
    %v1336 = vperm.slane %v1334, 0
    %v1337 = vperm.slane %v1334, 1
    %v1338 = vperm.slane %v1334, 2
    %v1339 = vperm.slane %v1334, 3
    %1344 = vmatpush.msra.mxu0 %v1322
    %1345 = vmatpush.msra.mxu0 %v1318
    %1346 = vmatpush.msra.mxu0 %v1314
    %1347 = vmatpush.msra.mxu0 %v1310
    %1348 = vmatpush.msra.mxu0 %v1306
    %1349 = vmatpush.msra.mxu0 %v1302
    %1350 = vmatpush.msra.mxu0 %v1298
    %1351 = vmatpush.msra.mxu0 %v1294
    %1352 = vmatpush.msra.mxu0 %v1290
    %1353 = vmatpush.msra.mxu0 %v1286
    %1354 = vmatpush.msra.mxu0 %v1282
    %1355 = vmatpush.msra.mxu0 %v1278
    %1356 = vmatpush.msra.mxu0 %v1274
    %1357 = vmatpush.msra.mxu0 %v1270
    %1358 = vmatpush.msra.mxu0 %v1266
    %1359 = vmatpush.msra.mxu0 %v1262
    %1360 = vmatmul.f32.gmra.mxu0 %v1326
    %v1361 = vpop.f32.mrf.mxu0
    %v1362 = vadd.f32 %v1336, %v1361
    %1363 = vmatmul.f32.gmra.mxu0 %v1327
    %v1364 = vpop.f32.mrf.mxu0
    %v1365 = vadd.f32 %v1336, %v1364
    %1366 = vmatmul.f32.gmra.mxu0 %v1328
    %v1367 = vpop.f32.mrf.mxu0
    %v1368 = vadd.f32 %v1336, %v1367
    %1369 = vmatmul.f32.gmra.mxu0 %v1329
    %v1370 = vpop.f32.mrf.mxu0
    %v1371 = vadd.f32 %v1336, %v1370
    %1372 = vmatmul.f32.gmra.mxu0 %v1330
    %v1373 = vpop.f32.mrf.mxu0
    %v1374 = vadd.f32 %v1336, %v1373
    %1375 = vmatmul.f32.gmra.mxu0 %v1331
    %v1376 = vpop.f32.mrf.mxu0
    %v1377 = vadd.f32 %v1336, %v1376
    %1378 = vmatmul.f32.gmra.mxu0 %v1332
    %v1379 = vpop.f32.mrf.mxu0
    %v1380 = vadd.f32 %v1336, %v1379
    %1381 = vmatmul.f32.gmra.mxu0 %v1333
    %v1382 = vpop.f32.mrf.mxu0
    %v1383 = vadd.f32 %v1336, %v1382
    %1384 = vdwg.mxu0
    %1385 = vmatpush.msra.mxu0 %v1323
    %1386 = vmatpush.msra.mxu0 %v1319
    %1387 = vmatpush.msra.mxu0 %v1315
    %1388 = vmatpush.msra.mxu0 %v1311
    %1389 = vmatpush.msra.mxu0 %v1307
    %1390 = vmatpush.msra.mxu0 %v1303
    %1391 = vmatpush.msra.mxu0 %v1299
    %1392 = vmatpush.msra.mxu0 %v1295
    %1393 = vmatpush.msra.mxu0 %v1291
    %1394 = vmatpush.msra.mxu0 %v1287
    %1395 = vmatpush.msra.mxu0 %v1283
    %1396 = vmatpush.msra.mxu0 %v1279
    %1397 = vmatpush.msra.mxu0 %v1275
    %1398 = vmatpush.msra.mxu0 %v1271
    %1399 = vmatpush.msra.mxu0 %v1267
    %1400 = vmatpush.msra.mxu0 %v1263
    %1401 = vmatmul.f32.gmra.mxu0 %v1326
    %v1402 = vpop.f32.mrf.mxu0
    %v1403 = vadd.f32 %v1337, %v1402
    %1404 = vmatmul.f32.gmra.mxu0 %v1327
    %v1405 = vpop.f32.mrf.mxu0
    %v1406 = vadd.f32 %v1337, %v1405
    %1407 = vmatmul.f32.gmra.mxu0 %v1328
    %v1408 = vpop.f32.mrf.mxu0
    %v1409 = vadd.f32 %v1337, %v1408
    %1410 = vmatmul.f32.gmra.mxu0 %v1329
    %v1411 = vpop.f32.mrf.mxu0
    %v1412 = vadd.f32 %v1337, %v1411
    %1413 = vmatmul.f32.gmra.mxu0 %v1330
    %v1414 = vpop.f32.mrf.mxu0
    %v1415 = vadd.f32 %v1337, %v1414
    %1416 = vmatmul.f32.gmra.mxu0 %v1331
    %v1417 = vpop.f32.mrf.mxu0
    %v1418 = vadd.f32 %v1337, %v1417
    %1419 = vmatmul.f32.gmra.mxu0 %v1332
    %v1420 = vpop.f32.mrf.mxu0
    %v1421 = vadd.f32 %v1337, %v1420
    %1422 = vmatmul.f32.gmra.mxu0 %v1333
    %v1423 = vpop.f32.mrf.mxu0
    %v1424 = vadd.f32 %v1337, %v1423
    %1425 = vdwg.mxu0
    %1426 = vmatpush.msra.mxu0 %v1324
    %1427 = vmatpush.msra.mxu0 %v1320
    %1428 = vmatpush.msra.mxu0 %v1316
    %1429 = vmatpush.msra.mxu0 %v1312
    %1430 = vmatpush.msra.mxu0 %v1308
    %1431 = vmatpush.msra.mxu0 %v1304
    %1432 = vmatpush.msra.mxu0 %v1300
    %1433 = vmatpush.msra.mxu0 %v1296
    %1434 = vmatpush.msra.mxu0 %v1292
    %1435 = vmatpush.msra.mxu0 %v1288
    %1436 = vmatpush.msra.mxu0 %v1284
    %1437 = vmatpush.msra.mxu0 %v1280
    %1438 = vmatpush.msra.mxu0 %v1276
    %1439 = vmatpush.msra.mxu0 %v1272
    %1440 = vmatpush.msra.mxu0 %v1268
    %1441 = vmatpush.msra.mxu0 %v1264
    %1442 = vmatmul.f32.gmra.mxu0 %v1326
    %v1443 = vpop.f32.mrf.mxu0
    %v1444 = vadd.f32 %v1338, %v1443
    %1445 = vmatmul.f32.gmra.mxu0 %v1327
    %v1446 = vpop.f32.mrf.mxu0
    %v1447 = vadd.f32 %v1338, %v1446
    %1448 = vmatmul.f32.gmra.mxu0 %v1328
    %v1449 = vpop.f32.mrf.mxu0
    %v1450 = vadd.f32 %v1338, %v1449
    %1451 = vmatmul.f32.gmra.mxu0 %v1329
    %v1452 = vpop.f32.mrf.mxu0
    %v1453 = vadd.f32 %v1338, %v1452
    %1454 = vmatmul.f32.gmra.mxu0 %v1330
    %v1455 = vpop.f32.mrf.mxu0
    %v1456 = vadd.f32 %v1338, %v1455
    %1457 = vmatmul.f32.gmra.mxu0 %v1331
    %v1458 = vpop.f32.mrf.mxu0
    %v1459 = vadd.f32 %v1338, %v1458
    %1460 = vmatmul.f32.gmra.mxu0 %v1332
    %v1461 = vpop.f32.mrf.mxu0
    %v1462 = vadd.f32 %v1338, %v1461
    %1463 = vmatmul.f32.gmra.mxu0 %v1333
    %v1464 = vpop.f32.mrf.mxu0
    %v1465 = vadd.f32 %v1338, %v1464
    %1466 = vdwg.mxu0
    %1467 = vmatpush.msra.mxu0 %v1325
    %1468 = vmatpush.msra.mxu0 %v1321
    %1469 = vmatpush.msra.mxu0 %v1317
    %1470 = vmatpush.msra.mxu0 %v1313
    %1471 = vmatpush.msra.mxu0 %v1309
    %1472 = vmatpush.msra.mxu0 %v1305
    %1473 = vmatpush.msra.mxu0 %v1301
    %1474 = vmatpush.msra.mxu0 %v1297
    %1475 = vmatpush.msra.mxu0 %v1293
    %1476 = vmatpush.msra.mxu0 %v1289
    %1477 = vmatpush.msra.mxu0 %v1285
    %1478 = vmatpush.msra.mxu0 %v1281
    %1479 = vmatpush.msra.mxu0 %v1277
    %1480 = vmatpush.msra.mxu0 %v1273
    %1481 = vmatpush.msra.mxu0 %v1269
    %1482 = vmatpush.msra.mxu0 %v1265
    %1483 = vmatmul.f32.gmra.mxu0 %v1326
    %v1484 = vpop.f32.mrf.mxu0
    %v1485 = vadd.f32 %v1339, %v1484
    %1486 = vmatmul.f32.gmra.mxu0 %v1327
    %v1487 = vpop.f32.mrf.mxu0
    %v1488 = vadd.f32 %v1339, %v1487
    %1489 = vmatmul.f32.gmra.mxu0 %v1328
    %v1490 = vpop.f32.mrf.mxu0
    %v1491 = vadd.f32 %v1339, %v1490
    %1492 = vmatmul.f32.gmra.mxu0 %v1329
    %v1493 = vpop.f32.mrf.mxu0
    %v1494 = vadd.f32 %v1339, %v1493
    %1495 = vmatmul.f32.gmra.mxu0 %v1330
    %v1496 = vpop.f32.mrf.mxu0
    %v1497 = vadd.f32 %v1339, %v1496
    %1498 = vmatmul.f32.gmra.mxu0 %v1331
    %v1499 = vpop.f32.mrf.mxu0
    %v1500 = vadd.f32 %v1339, %v1499
    %1501 = vmatmul.f32.gmra.mxu0 %v1332
    %v1502 = vpop.f32.mrf.mxu0
    %v1503 = vadd.f32 %v1339, %v1502
    %1504 = vmatmul.f32.gmra.mxu0 %v1333
    %v1505 = vpop.f32.mrf.mxu0
    %v1506 = vadd.f32 %v1339, %v1505
    %1507 = vdwg.mxu0
    %1508 = vst [vmem:[#allocation2] sm:$0xff] %v1362
    %1509 = vst [vmem:[#allocation2 + $0x8] sm:$0xff] %v1403
    %1510 = vst [vmem:[#allocation2 + $0x10] sm:$0xff] %v1444
    %1511 = vst [vmem:[#allocation2 + $0x18] sm:$0xff] %v1485
    %1512 = vst [vmem:[#allocation2 + $0x20] sm:$0xff] %v1365
    %1513 = vst [vmem:[#allocation2 + $0x28] sm:$0xff] %v1406
    %1514 = vst [vmem:[#allocation2 + $0x30] sm:$0xff] %v1447
    %1515 = vst [vmem:[#allocation2 + $0x38] sm:$0xff] %v1488
    %1516 = vst [vmem:[#allocation2 + $0x40] sm:$0xff] %v1368
    %1517 = vst [vmem:[#allocation2 + $0x48] sm:$0xff] %v1409
    %1518 = vst [vmem:[#allocation2 + $0x50] sm:$0xff] %v1450
    %1519 = vst [vmem:[#allocation2 + $0x58] sm:$0xff] %v1491
    %1520 = vst [vmem:[#allocation2 + $0x60] sm:$0xff] %v1371
    %1521 = vst [vmem:[#allocation2 + $0x68] sm:$0xff] %v1412
    %1522 = vst [vmem:[#allocation2 + $0x70] sm:$0xff] %v1453
    %1523 = vst [vmem:[#allocation2 + $0x78] sm:$0xff] %v1494
    %1524 = vst [vmem:[#allocation2 + $0x80] sm:$0xff] %v1374
    %1525 = vst [vmem:[#allocation2 + $0x88] sm:$0xff] %v1415
    %1526 = vst [vmem:[#allocation2 + $0x90] sm:$0xff] %v1456
    %1527 = vst [vmem:[#allocation2 + $0x98] sm:$0xff] %v1497
    %1528 = vst [vmem:[#allocation2 + $0xa0] sm:$0xff] %v1377
    %1529 = vst [vmem:[#allocation2 + $0xa8] sm:$0xff] %v1418
    %1530 = vst [vmem:[#allocation2 + $0xb0] sm:$0xff] %v1459
    %1531 = vst [vmem:[#allocation2 + $0xb8] sm:$0xff] %v1500
    %1532 = vst [vmem:[#allocation2 + $0xc0] sm:$0xff] %v1380
    %1533 = vst [vmem:[#allocation2 + $0xc8] sm:$0xff] %v1421
    %1534 = vst [vmem:[#allocation2 + $0xd0] sm:$0xff] %v1462
    %1535 = vst [vmem:[#allocation2 + $0xd8] sm:$0xff] %v1503
    %1536 = vst [vmem:[#allocation2 + $0xe0] sm:$0xff] %v1383
    %1537 = vst [vmem:[#allocation2 + $0xe8] sm:$0xff] %v1424
    %1538 = vst [vmem:[#allocation2 + $0xf0] sm:$0xff] %v1465
    %1539 = vst [vmem:[#allocation2 + $0xf8] sm:$0xff] %v1506
    %v1540 = vld [vmem:[#allocation8] sm:$0xff]
    %v1541 = vld [vmem:[#allocation8 + $0x8] sm:$0xff]
    %v1542 = vld [vmem:[#allocation8 + $0x10] sm:$0xff]
    %v1543 = vld [vmem:[#allocation8 + $0x18] sm:$0xff]
    %v1544 = vld [vmem:[#allocation8 + $0x20] sm:$0xff]
    %v1545 = vld [vmem:[#allocation8 + $0x28] sm:$0xff]
    %v1546 = vld [vmem:[#allocation8 + $0x30] sm:$0xff]
    %v1547 = vld [vmem:[#allocation8 + $0x38] sm:$0xff]
    %v1548 = vld [vmem:[#allocation8 + $0x40] sm:$0xff]
    %v1549 = vld [vmem:[#allocation8 + $0x48] sm:$0xff]
    %v1550 = vld [vmem:[#allocation8 + $0x50] sm:$0xff]
    %v1551 = vld [vmem:[#allocation8 + $0x58] sm:$0xff]
    %v1552 = vld [vmem:[#allocation8 + $0x60] sm:$0xff]
    %v1553 = vld [vmem:[#allocation8 + $0x68] sm:$0xff]
    %v1554 = vld [vmem:[#allocation8 + $0x70] sm:$0xff]
    %v1555 = vld [vmem:[#allocation8 + $0x78] sm:$0xff]
    %v1556 = vld [vmem:[#allocation8 + $0x80] sm:$0xff]
    %v1557 = vld [vmem:[#allocation8 + $0x88] sm:$0xff]
    %v1558 = vld [vmem:[#allocation8 + $0x90] sm:$0xff]
    %v1559 = vld [vmem:[#allocation8 + $0x98] sm:$0xff]
    %v1560 = vld [vmem:[#allocation8 + $0xa0] sm:$0xff]
    %v1561 = vld [vmem:[#allocation8 + $0xa8] sm:$0xff]
    %v1562 = vld [vmem:[#allocation8 + $0xb0] sm:$0xff]
    %v1563 = vld [vmem:[#allocation8 + $0xb8] sm:$0xff]
    %v1564 = vld [vmem:[#allocation8 + $0xc0] sm:$0xff]
    %v1565 = vld [vmem:[#allocation8 + $0xc8] sm:$0xff]
    %v1566 = vld [vmem:[#allocation8 + $0xd0] sm:$0xff]
    %v1567 = vld [vmem:[#allocation8 + $0xd8] sm:$0xff]
    %v1568 = vld [vmem:[#allocation8 + $0xe0] sm:$0xff]
    %v1569 = vld [vmem:[#allocation8 + $0xe8] sm:$0xff]
    %v1570 = vld [vmem:[#allocation8 + $0xf0] sm:$0xff]
    %v1571 = vld [vmem:[#allocation8 + $0xf8] sm:$0xff]
    %v1572 = vld [vmem:[#allocation8 + $0x100] sm:$0xff]
    %v1573 = vld [vmem:[#allocation8 + $0x108] sm:$0xff]
    %v1574 = vld [vmem:[#allocation8 + $0x110] sm:$0xff]
    %v1575 = vld [vmem:[#allocation8 + $0x118] sm:$0xff]
    %v1576 = vld [vmem:[#allocation8 + $0x120] sm:$0xff]
    %v1577 = vld [vmem:[#allocation8 + $0x128] sm:$0xff]
    %v1578 = vld [vmem:[#allocation8 + $0x130] sm:$0xff]
    %v1579 = vld [vmem:[#allocation8 + $0x138] sm:$0xff]
    %v1580 = vld [vmem:[#allocation8 + $0x140] sm:$0xff]
    %v1581 = vld [vmem:[#allocation8 + $0x148] sm:$0xff]
    %v1582 = vld [vmem:[#allocation8 + $0x150] sm:$0xff]
    %v1583 = vld [vmem:[#allocation8 + $0x158] sm:$0xff]
    %v1584 = vld [vmem:[#allocation8 + $0x160] sm:$0xff]
    %v1585 = vld [vmem:[#allocation8 + $0x168] sm:$0xff]
    %v1586 = vld [vmem:[#allocation8 + $0x170] sm:$0xff]
    %v1587 = vld [vmem:[#allocation8 + $0x178] sm:$0xff]
    %v1588 = vld [vmem:[#allocation8 + $0x180] sm:$0xff]
    %v1589 = vld [vmem:[#allocation8 + $0x188] sm:$0xff]
    %v1590 = vld [vmem:[#allocation8 + $0x190] sm:$0xff]
    %v1591 = vld [vmem:[#allocation8 + $0x198] sm:$0xff]
    %v1592 = vld [vmem:[#allocation8 + $0x1a0] sm:$0xff]
    %v1593 = vld [vmem:[#allocation8 + $0x1a8] sm:$0xff]
    %v1594 = vld [vmem:[#allocation8 + $0x1b0] sm:$0xff]
    %v1595 = vld [vmem:[#allocation8 + $0x1b8] sm:$0xff]
    %v1596 = vld [vmem:[#allocation8 + $0x1c0] sm:$0xff]
    %v1597 = vld [vmem:[#allocation8 + $0x1c8] sm:$0xff]
    %v1598 = vld [vmem:[#allocation8 + $0x1d0] sm:$0xff]
    %v1599 = vld [vmem:[#allocation8 + $0x1d8] sm:$0xff]
    %v1600 = vld [vmem:[#allocation8 + $0x1e0] sm:$0xff]
    %v1601 = vld [vmem:[#allocation8 + $0x1e8] sm:$0xff]
    %v1602 = vld [vmem:[#allocation8 + $0x1f0] sm:$0xff]
    %v1603 = vld [vmem:[#allocation8 + $0x1f8] sm:$0xff]
    %v1604 = vld [vmem:[#allocation2] sm:$0xff]
    %v1605 = vld [vmem:[#allocation2 + $0x8] sm:$0xff]
    %v1606 = vld [vmem:[#allocation2 + $0x10] sm:$0xff]
    %v1607 = vld [vmem:[#allocation2 + $0x18] sm:$0xff]
    %1608 = vmatpush.msra.mxu0 %v1600
    %1609 = vmatpush.msra.mxu0 %v1596
    %1610 = vmatpush.msra.mxu0 %v1592
    %1611 = vmatpush.msra.mxu0 %v1588
    %1612 = vmatpush.msra.mxu0 %v1584
    %1613 = vmatpush.msra.mxu0 %v1580
    %1614 = vmatpush.msra.mxu0 %v1576
    %1615 = vmatpush.msra.mxu0 %v1572
    %1616 = vmatpush.msra.mxu0 %v1568
    %1617 = vmatpush.msra.mxu0 %v1564
    %1618 = vmatpush.msra.mxu0 %v1560
    %1619 = vmatpush.msra.mxu0 %v1556
    %1620 = vmatpush.msra.mxu0 %v1552
    %1621 = vmatpush.msra.mxu0 %v1548
    %1622 = vmatpush.msra.mxu0 %v1544
    %1623 = vmatpush.msra.mxu0 %v1540
    %1624 = vmatmul.f32.gmra.mxu0 0.0
    %v1625 = vpop.f32.mrf.mxu0
    %v1626 = vadd.f32 0.0, %v1625
    %1627 = vdwg.mxu0
    %1628 = vmatpush.msra.mxu0 %v1601
    %1629 = vmatpush.msra.mxu0 %v1597
    %1630 = vmatpush.msra.mxu0 %v1593
    %1631 = vmatpush.msra.mxu0 %v1589
    %1632 = vmatpush.msra.mxu0 %v1585
    %1633 = vmatpush.msra.mxu0 %v1581
    %1634 = vmatpush.msra.mxu0 %v1577
    %1635 = vmatpush.msra.mxu0 %v1573
    %1636 = vmatpush.msra.mxu0 %v1569
    %1637 = vmatpush.msra.mxu0 %v1565
    %1638 = vmatpush.msra.mxu0 %v1561
    %1639 = vmatpush.msra.mxu0 %v1557
    %1640 = vmatpush.msra.mxu0 %v1553
    %1641 = vmatpush.msra.mxu0 %v1549
    %1642 = vmatpush.msra.mxu0 %v1545
    %1643 = vmatpush.msra.mxu0 %v1541
    %1644 = vmatmul.f32.gmra.mxu0 0.0
    %v1645 = vpop.f32.mrf.mxu0
    %v1646 = vadd.f32 0.0, %v1645
    %1647 = vdwg.mxu0
    %1648 = vmatpush.msra.mxu0 %v1602
    %1649 = vmatpush.msra.mxu0 %v1598
    %1650 = vmatpush.msra.mxu0 %v1594
    %1651 = vmatpush.msra.mxu0 %v1590
    %1652 = vmatpush.msra.mxu0 %v1586
    %1653 = vmatpush.msra.mxu0 %v1582
    %1654 = vmatpush.msra.mxu0 %v1578
    %1655 = vmatpush.msra.mxu0 %v1574
    %1656 = vmatpush.msra.mxu0 %v1570
    %1657 = vmatpush.msra.mxu0 %v1566
    %1658 = vmatpush.msra.mxu0 %v1562
    %1659 = vmatpush.msra.mxu0 %v1558
    %1660 = vmatpush.msra.mxu0 %v1554
    %1661 = vmatpush.msra.mxu0 %v1550
    %1662 = vmatpush.msra.mxu0 %v1546
    %1663 = vmatpush.msra.mxu0 %v1542
    %1664 = vmatmul.f32.gmra.mxu0 0.0
    %v1665 = vpop.f32.mrf.mxu0
    %v1666 = vadd.f32 0.0, %v1665
    %1667 = vdwg.mxu0
    %1668 = vmatpush.msra.mxu0 %v1603
    %1669 = vmatpush.msra.mxu0 %v1599
    %1670 = vmatpush.msra.mxu0 %v1595
    %1671 = vmatpush.msra.mxu0 %v1591
    %1672 = vmatpush.msra.mxu0 %v1587
    %1673 = vmatpush.msra.mxu0 %v1583
    %1674 = vmatpush.msra.mxu0 %v1579
    %1675 = vmatpush.msra.mxu0 %v1575
    %1676 = vmatpush.msra.mxu0 %v1571
    %1677 = vmatpush.msra.mxu0 %v1567
    %1678 = vmatpush.msra.mxu0 %v1563
    %1679 = vmatpush.msra.mxu0 %v1559
    %1680 = vmatpush.msra.mxu0 %v1555
    %1681 = vmatpush.msra.mxu0 %v1551
    %1682 = vmatpush.msra.mxu0 %v1547
    %1683 = vmatpush.msra.mxu0 %v1543
    %1684 = vmatmul.f32.gmra.mxu0 0.0
    %v1685 = vpop.f32.mrf.mxu0
    %v1686 = vadd.f32 0.0, %v1685
    %1687 = vdwg.mxu0
    %v1688 = vadd.f32 %v1604, %v1626
    %v1689 = vadd.f32 %v1605, %v1646
    %v1690 = vadd.f32 %v1606, %v1666
    %v1691 = vadd.f32 %v1607, %v1686
    %v1692 = vmul.f32 %v1688, 0.5
    %v1693 = vtanh.pop %v1692
    %v1694 = vmul.f32 %v1693, 0.5
    %v1695 = vadd.f32 %v1694, 0.5
    %v1696 = vmul.f32 %v1689, 0.5
    %v1697 = vtanh.pop %v1696
    %v1698 = vmul.f32 %v1697, 0.5
    %v1699 = vadd.f32 %v1698, 0.5
    %v1700 = vtanh.pop %v1690
    %v1701 = vmul.f32 %v1691, 0.5
    %v1702 = vtanh.pop %v1701
    %v1703 = vmul.f32 %v1702, 0.5
    %v1704 = vadd.f32 %v1703, 0.5
    %v1705 = vmul.f32 %v1699, 0.0
    %v1706 = vmul.f32 %v1695, %v1700
    %v1707 = vadd.f32 %v1705, %v1706
    %v1708 = vtanh.pop %v1707
    %v1709 = vmul.f32 %v1704, %v1708
    %v1710 = vld [vmem:[#allocation2 + $0x20] sm:$0xff]
    %v1711 = vld [vmem:[#allocation2 + $0x28] sm:$0xff]
    %v1712 = vld [vmem:[#allocation2 + $0x30] sm:$0xff]
    %v1713 = vld [vmem:[#allocation2 + $0x38] sm:$0xff]
    %1714 = vmatpush.msra.mxu0 %v1600
    %1715 = vmatpush.msra.mxu0 %v1596
    %1716 = vmatpush.msra.mxu0 %v1592
    %1717 = vmatpush.msra.mxu0 %v1588
    %1718 = vmatpush.msra.mxu0 %v1584
    %1719 = vmatpush.msra.mxu0 %v1580
    %1720 = vmatpush.msra.mxu0 %v1576
    %1721 = vmatpush.msra.mxu0 %v1572
    %1722 = vmatpush.msra.mxu0 %v1568
    %1723 = vmatpush.msra.mxu0 %v1564
    %1724 = vmatpush.msra.mxu0 %v1560
    %1725 = vmatpush.msra.mxu0 %v1556
    %1726 = vmatpush.msra.mxu0 %v1552
    %1727 = vmatpush.msra.mxu0 %v1548
    %1728 = vmatpush.msra.mxu0 %v1544
    %1729 = vmatpush.msra.mxu0 %v1540
    %1730 = vmatmul.f32.gmra.mxu0 %v1709
    %v1731 = vpop.f32.mrf.mxu0
    %v1732 = vadd.f32 0.0, %v1731
    %1733 = vdwg.mxu0
    %1734 = vmatpush.msra.mxu0 %v1601
    %1735 = vmatpush.msra.mxu0 %v1597
    %1736 = vmatpush.msra.mxu0 %v1593
    %1737 = vmatpush.msra.mxu0 %v1589
    %1738 = vmatpush.msra.mxu0 %v1585
    %1739 = vmatpush.msra.mxu0 %v1581
    %1740 = vmatpush.msra.mxu0 %v1577
    %1741 = vmatpush.msra.mxu0 %v1573
    %1742 = vmatpush.msra.mxu0 %v1569
    %1743 = vmatpush.msra.mxu0 %v1565
    %1744 = vmatpush.msra.mxu0 %v1561
    %1745 = vmatpush.msra.mxu0 %v1557
    %1746 = vmatpush.msra.mxu0 %v1553
    %1747 = vmatpush.msra.mxu0 %v1549
    %1748 = vmatpush.msra.mxu0 %v1545
    %1749 = vmatpush.msra.mxu0 %v1541
    %1750 = vmatmul.f32.gmra.mxu0 %v1709
    %v1751 = vpop.f32.mrf.mxu0
    %v1752 = vadd.f32 0.0, %v1751
    %1753 = vdwg.mxu0
    %1754 = vmatpush.msra.mxu0 %v1602
    %1755 = vmatpush.msra.mxu0 %v1598
    %1756 = vmatpush.msra.mxu0 %v1594
    %1757 = vmatpush.msra.mxu0 %v1590
    %1758 = vmatpush.msra.mxu0 %v1586
    %1759 = vmatpush.msra.mxu0 %v1582
    %1760 = vmatpush.msra.mxu0 %v1578
    %1761 = vmatpush.msra.mxu0 %v1574
    %1762 = vmatpush.msra.mxu0 %v1570
    %1763 = vmatpush.msra.mxu0 %v1566
    %1764 = vmatpush.msra.mxu0 %v1562
    %1765 = vmatpush.msra.mxu0 %v1558
    %1766 = vmatpush.msra.mxu0 %v1554
    %1767 = vmatpush.msra.mxu0 %v1550
    %1768 = vmatpush.msra.mxu0 %v1546
    %1769 = vmatpush.msra.mxu0 %v1542
    %1770 = vmatmul.f32.gmra.mxu0 %v1709
    %v1771 = vpop.f32.mrf.mxu0
    %v1772 = vadd.f32 0.0, %v1771
    %1773 = vdwg.mxu0
    %1774 = vmatpush.msra.mxu0 %v1603
    %1775 = vmatpush.msra.mxu0 %v1599
    %1776 = vmatpush.msra.mxu0 %v1595
    %1777 = vmatpush.msra.mxu0 %v1591
    %1778 = vmatpush.msra.mxu0 %v1587
    %1779 = vmatpush.msra.mxu0 %v1583
    %1780 = vmatpush.msra.mxu0 %v1579
    %1781 = vmatpush.msra.mxu0 %v1575
    %1782 = vmatpush.msra.mxu0 %v1571
    %1783 = vmatpush.msra.mxu0 %v1567
    %1784 = vmatpush.msra.mxu0 %v1563
    %1785 = vmatpush.msra.mxu0 %v1559
    %1786 = vmatpush.msra.mxu0 %v1555
    %1787 = vmatpush.msra.mxu0 %v1551
    %1788 = vmatpush.msra.mxu0 %v1547
    %1789 = vmatpush.msra.mxu0 %v1543
    %1790 = vmatmul.f32.gmra.mxu0 %v1709
    %v1791 = vpop.f32.mrf.mxu0
    %v1792 = vadd.f32 0.0, %v1791
    %1793 = vdwg.mxu0
    %v1794 = vadd.f32 %v1710, %v1732
    %v1795 = vadd.f32 %v1711, %v1752
    %v1796 = vadd.f32 %v1712, %v1772
    %v1797 = vadd.f32 %v1713, %v1792
    %v1798 = vmul.f32 %v1794, 0.5
    %v1799 = vtanh.pop %v1798
    %v1800 = vmul.f32 %v1799, 0.5
    %v1801 = vadd.f32 %v1800, 0.5
    %v1802 = vmul.f32 %v1795, 0.5
    %v1803 = vtanh.pop %v1802
    %v1804 = vmul.f32 %v1803, 0.5
    %v1805 = vadd.f32 %v1804, 0.5
    %v1806 = vtanh.pop %v1796
    %v1807 = vmul.f32 %v1797, 0.5
    %v1808 = vtanh.pop %v1807
    %v1809 = vmul.f32 %v1808, 0.5
    %v1810 = vadd.f32 %v1809, 0.5
    %v1811 = vmul.f32 %v1805, %v1707
    %v1812 = vmul.f32 %v1801, %v1806
    %v1813 = vadd.f32 %v1811, %v1812
    %v1814 = vtanh.pop %v1813
    %v1815 = vmul.f32 %v1810, %v1814
    %v1816 = vld [vmem:[#allocation2 + $0x40] sm:$0xff]
    %v1817 = vld [vmem:[#allocation2 + $0x48] sm:$0xff]
    %v1818 = vld [vmem:[#allocation2 + $0x50] sm:$0xff]
    %v1819 = vld [vmem:[#allocation2 + $0x58] sm:$0xff]
    %1820 = vmatpush.msra.mxu0 %v1600
    %1821 = vmatpush.msra.mxu0 %v1596
    %1822 = vmatpush.msra.mxu0 %v1592
    %1823 = vmatpush.msra.mxu0 %v1588
    %1824 = vmatpush.msra.mxu0 %v1584
    %1825 = vmatpush.msra.mxu0 %v1580
    %1826 = vmatpush.msra.mxu0 %v1576
    %1827 = vmatpush.msra.mxu0 %v1572
    %1828 = vmatpush.msra.mxu0 %v1568
    %1829 = vmatpush.msra.mxu0 %v1564
    %1830 = vmatpush.msra.mxu0 %v1560
    %1831 = vmatpush.msra.mxu0 %v1556
    %1832 = vmatpush.msra.mxu0 %v1552
    %1833 = vmatpush.msra.mxu0 %v1548
    %1834 = vmatpush.msra.mxu0 %v1544
    %1835 = vmatpush.msra.mxu0 %v1540
    %1836 = vmatmul.f32.gmra.mxu0 %v1815
    %v1837 = vpop.f32.mrf.mxu0
    %v1838 = vadd.f32 0.0, %v1837
    %1839 = vdwg.mxu0
    %1840 = vmatpush.msra.mxu0 %v1601
    %1841 = vmatpush.msra.mxu0 %v1597
    %1842 = vmatpush.msra.mxu0 %v1593
    %1843 = vmatpush.msra.mxu0 %v1589
    %1844 = vmatpush.msra.mxu0 %v1585
    %1845 = vmatpush.msra.mxu0 %v1581
    %1846 = vmatpush.msra.mxu0 %v1577
    %1847 = vmatpush.msra.mxu0 %v1573
    %1848 = vmatpush.msra.mxu0 %v1569
    %1849 = vmatpush.msra.mxu0 %v1565
    %1850 = vmatpush.msra.mxu0 %v1561
    %1851 = vmatpush.msra.mxu0 %v1557
    %1852 = vmatpush.msra.mxu0 %v1553
    %1853 = vmatpush.msra.mxu0 %v1549
    %1854 = vmatpush.msra.mxu0 %v1545
    %1855 = vmatpush.msra.mxu0 %v1541
    %1856 = vmatmul.f32.gmra.mxu0 %v1815
    %v1857 = vpop.f32.mrf.mxu0
    %v1858 = vadd.f32 0.0, %v1857
    %1859 = vdwg.mxu0
    %1860 = vmatpush.msra.mxu0 %v1602
    %1861 = vmatpush.msra.mxu0 %v1598
    %1862 = vmatpush.msra.mxu0 %v1594
    %1863 = vmatpush.msra.mxu0 %v1590
    %1864 = vmatpush.msra.mxu0 %v1586
    %1865 = vmatpush.msra.mxu0 %v1582
    %1866 = vmatpush.msra.mxu0 %v1578
    %1867 = vmatpush.msra.mxu0 %v1574
    %1868 = vmatpush.msra.mxu0 %v1570
    %1869 = vmatpush.msra.mxu0 %v1566
    %1870 = vmatpush.msra.mxu0 %v1562
    %1871 = vmatpush.msra.mxu0 %v1558
    %1872 = vmatpush.msra.mxu0 %v1554
    %1873 = vmatpush.msra.mxu0 %v1550
    %1874 = vmatpush.msra.mxu0 %v1546
    %1875 = vmatpush.msra.mxu0 %v1542
    %1876 = vmatmul.f32.gmra.mxu0 %v1815
    %v1877 = vpop.f32.mrf.mxu0
    %v1878 = vadd.f32 0.0, %v1877
    %1879 = vdwg.mxu0
    %1880 = vmatpush.msra.mxu0 %v1603
    %1881 = vmatpush.msra.mxu0 %v1599
    %1882 = vmatpush.msra.mxu0 %v1595
    %1883 = vmatpush.msra.mxu0 %v1591
    %1884 = vmatpush.msra.mxu0 %v1587
    %1885 = vmatpush.msra.mxu0 %v1583
    %1886 = vmatpush.msra.mxu0 %v1579
    %1887 = vmatpush.msra.mxu0 %v1575
    %1888 = vmatpush.msra.mxu0 %v1571
    %1889 = vmatpush.msra.mxu0 %v1567
    %1890 = vmatpush.msra.mxu0 %v1563
    %1891 = vmatpush.msra.mxu0 %v1559
    %1892 = vmatpush.msra.mxu0 %v1555
    %1893 = vmatpush.msra.mxu0 %v1551
    %1894 = vmatpush.msra.mxu0 %v1547
    %1895 = vmatpush.msra.mxu0 %v1543
    %1896 = vmatmul.f32.gmra.mxu0 %v1815
    %v1897 = vpop.f32.mrf.mxu0
    %v1898 = vadd.f32 0.0, %v1897
    %1899 = vdwg.mxu0
    %v1900 = vadd.f32 %v1816, %v1838
    %v1901 = vadd.f32 %v1817, %v1858
    %v1902 = vadd.f32 %v1818, %v1878
    %v1903 = vadd.f32 %v1819, %v1898
    %v1904 = vmul.f32 %v1900, 0.5
    %v1905 = vtanh.pop %v1904
    %v1906 = vmul.f32 %v1905, 0.5
    %v1907 = vadd.f32 %v1906, 0.5
    %v1908 = vmul.f32 %v1901, 0.5
    %v1909 = vtanh.pop %v1908
    %v1910 = vmul.f32 %v1909, 0.5
    %v1911 = vadd.f32 %v1910, 0.5
    %v1912 = vtanh.pop %v1902
    %v1913 = vmul.f32 %v1903, 0.5
    %v1914 = vtanh.pop %v1913
    %v1915 = vmul.f32 %v1914, 0.5
    %v1916 = vadd.f32 %v1915, 0.5
    %v1917 = vmul.f32 %v1911, %v1813
    %v1918 = vmul.f32 %v1907, %v1912
    %v1919 = vadd.f32 %v1917, %v1918
    %v1920 = vtanh.pop %v1919
    %v1921 = vmul.f32 %v1916, %v1920
    %v1922 = vld [vmem:[#allocation2 + $0x60] sm:$0xff]
    %v1923 = vld [vmem:[#allocation2 + $0x68] sm:$0xff]
    %v1924 = vld [vmem:[#allocation2 + $0x70] sm:$0xff]
    %v1925 = vld [vmem:[#allocation2 + $0x78] sm:$0xff]
    %1926 = vmatpush.msra.mxu0 %v1600
    %1927 = vmatpush.msra.mxu0 %v1596
    %1928 = vmatpush.msra.mxu0 %v1592
    %1929 = vmatpush.msra.mxu0 %v1588
    %1930 = vmatpush.msra.mxu0 %v1584
    %1931 = vmatpush.msra.mxu0 %v1580
    %1932 = vmatpush.msra.mxu0 %v1576
    %1933 = vmatpush.msra.mxu0 %v1572
    %1934 = vmatpush.msra.mxu0 %v1568
    %1935 = vmatpush.msra.mxu0 %v1564
    %1936 = vmatpush.msra.mxu0 %v1560
    %1937 = vmatpush.msra.mxu0 %v1556
    %1938 = vmatpush.msra.mxu0 %v1552
    %1939 = vmatpush.msra.mxu0 %v1548
    %1940 = vmatpush.msra.mxu0 %v1544
    %1941 = vmatpush.msra.mxu0 %v1540
    %1942 = vmatmul.f32.gmra.mxu0 %v1921
    %v1943 = vpop.f32.mrf.mxu0
    %v1944 = vadd.f32 0.0, %v1943
    %1945 = vdwg.mxu0
    %1946 = vmatpush.msra.mxu0 %v1601
    %1947 = vmatpush.msra.mxu0 %v1597
    %1948 = vmatpush.msra.mxu0 %v1593
    %1949 = vmatpush.msra.mxu0 %v1589
    %1950 = vmatpush.msra.mxu0 %v1585
    %1951 = vmatpush.msra.mxu0 %v1581
    %1952 = vmatpush.msra.mxu0 %v1577
    %1953 = vmatpush.msra.mxu0 %v1573
    %1954 = vmatpush.msra.mxu0 %v1569
    %1955 = vmatpush.msra.mxu0 %v1565
    %1956 = vmatpush.msra.mxu0 %v1561
    %1957 = vmatpush.msra.mxu0 %v1557
    %1958 = vmatpush.msra.mxu0 %v1553
    %1959 = vmatpush.msra.mxu0 %v1549
    %1960 = vmatpush.msra.mxu0 %v1545
    %1961 = vmatpush.msra.mxu0 %v1541
    %1962 = vmatmul.f32.gmra.mxu0 %v1921
    %v1963 = vpop.f32.mrf.mxu0
    %v1964 = vadd.f32 0.0, %v1963
    %1965 = vdwg.mxu0
    %1966 = vmatpush.msra.mxu0 %v1602
    %1967 = vmatpush.msra.mxu0 %v1598
    %1968 = vmatpush.msra.mxu0 %v1594
    %1969 = vmatpush.msra.mxu0 %v1590
    %1970 = vmatpush.msra.mxu0 %v1586
    %1971 = vmatpush.msra.mxu0 %v1582
    %1972 = vmatpush.msra.mxu0 %v1578
    %1973 = vmatpush.msra.mxu0 %v1574
    %1974 = vmatpush.msra.mxu0 %v1570
    %1975 = vmatpush.msra.mxu0 %v1566
    %1976 = vmatpush.msra.mxu0 %v1562
    %1977 = vmatpush.msra.mxu0 %v1558
    %1978 = vmatpush.msra.mxu0 %v1554
    %1979 = vmatpush.msra.mxu0 %v1550
    %1980 = vmatpush.msra.mxu0 %v1546
    %1981 = vmatpush.msra.mxu0 %v1542
    %1982 = vmatmul.f32.gmra.mxu0 %v1921
    %v1983 = vpop.f32.mrf.mxu0
    %v1984 = vadd.f32 0.0, %v1983
    %1985 = vdwg.mxu0
    %1986 = vmatpush.msra.mxu0 %v1603
    %1987 = vmatpush.msra.mxu0 %v1599
    %1988 = vmatpush.msra.mxu0 %v1595
    %1989 = vmatpush.msra.mxu0 %v1591
    %1990 = vmatpush.msra.mxu0 %v1587
    %1991 = vmatpush.msra.mxu0 %v1583
    %1992 = vmatpush.msra.mxu0 %v1579
    %1993 = vmatpush.msra.mxu0 %v1575
    %1994 = vmatpush.msra.mxu0 %v1571
    %1995 = vmatpush.msra.mxu0 %v1567
    %1996 = vmatpush.msra.mxu0 %v1563
    %1997 = vmatpush.msra.mxu0 %v1559
    %1998 = vmatpush.msra.mxu0 %v1555
    %1999 = vmatpush.msra.mxu0 %v1551
    %2000 = vmatpush.msra.mxu0 %v1547
    %2001 = vmatpush.msra.mxu0 %v1543
    %2002 = vmatmul.f32.gmra.mxu0 %v1921
    %v2003 = vpop.f32.mrf.mxu0
    %v2004 = vadd.f32 0.0, %v2003
    %2005 = vdwg.mxu0
    %v2006 = vadd.f32 %v1922, %v1944
    %v2007 = vadd.f32 %v1923, %v1964
    %v2008 = vadd.f32 %v1924, %v1984
    %v2009 = vadd.f32 %v1925, %v2004
    %v2010 = vmul.f32 %v2006, 0.5
    %v2011 = vtanh.pop %v2010
    %v2012 = vmul.f32 %v2011, 0.5
    %v2013 = vadd.f32 %v2012, 0.5
    %v2014 = vmul.f32 %v2007, 0.5
    %v2015 = vtanh.pop %v2014
    %v2016 = vmul.f32 %v2015, 0.5
    %v2017 = vadd.f32 %v2016, 0.5
    %v2018 = vtanh.pop %v2008
    %v2019 = vmul.f32 %v2009, 0.5
    %v2020 = vtanh.pop %v2019
    %v2021 = vmul.f32 %v2020, 0.5
    %v2022 = vadd.f32 %v2021, 0.5
    %v2023 = vmul.f32 %v2017, %v1919
    %v2024 = vmul.f32 %v2013, %v2018
    %v2025 = vadd.f32 %v2023, %v2024
    %v2026 = vtanh.pop %v2025
    %v2027 = vmul.f32 %v2022, %v2026
    %v2028 = vld [vmem:[#allocation2 + $0x80] sm:$0xff]
    %v2029 = vld [vmem:[#allocation2 + $0x88] sm:$0xff]
    %v2030 = vld [vmem:[#allocation2 + $0x90] sm:$0xff]
    %v2031 = vld [vmem:[#allocation2 + $0x98] sm:$0xff]
    %2032 = vmatpush.msra.mxu0 %v1600
    %2033 = vmatpush.msra.mxu0 %v1596
    %2034 = vmatpush.msra.mxu0 %v1592
    %2035 = vmatpush.msra.mxu0 %v1588
    %2036 = vmatpush.msra.mxu0 %v1584
    %2037 = vmatpush.msra.mxu0 %v1580
    %2038 = vmatpush.msra.mxu0 %v1576
    %2039 = vmatpush.msra.mxu0 %v1572
    %2040 = vmatpush.msra.mxu0 %v1568
    %2041 = vmatpush.msra.mxu0 %v1564
    %2042 = vmatpush.msra.mxu0 %v1560
    %2043 = vmatpush.msra.mxu0 %v1556
    %2044 = vmatpush.msra.mxu0 %v1552
    %2045 = vmatpush.msra.mxu0 %v1548
    %2046 = vmatpush.msra.mxu0 %v1544
    %2047 = vmatpush.msra.mxu0 %v1540
    %2048 = vmatmul.f32.gmra.mxu0 %v2027
    %v2049 = vpop.f32.mrf.mxu0
    %v2050 = vadd.f32 0.0, %v2049
    %2051 = vdwg.mxu0
    %2052 = vmatpush.msra.mxu0 %v1601
    %2053 = vmatpush.msra.mxu0 %v1597
    %2054 = vmatpush.msra.mxu0 %v1593
    %2055 = vmatpush.msra.mxu0 %v1589
    %2056 = vmatpush.msra.mxu0 %v1585
    %2057 = vmatpush.msra.mxu0 %v1581
    %2058 = vmatpush.msra.mxu0 %v1577
    %2059 = vmatpush.msra.mxu0 %v1573
    %2060 = vmatpush.msra.mxu0 %v1569
    %2061 = vmatpush.msra.mxu0 %v1565
    %2062 = vmatpush.msra.mxu0 %v1561
    %2063 = vmatpush.msra.mxu0 %v1557
    %2064 = vmatpush.msra.mxu0 %v1553
    %2065 = vmatpush.msra.mxu0 %v1549
    %2066 = vmatpush.msra.mxu0 %v1545
    %2067 = vmatpush.msra.mxu0 %v1541
    %2068 = vmatmul.f32.gmra.mxu0 %v2027
    %v2069 = vpop.f32.mrf.mxu0
    %v2070 = vadd.f32 0.0, %v2069
    %2071 = vdwg.mxu0
    %2072 = vmatpush.msra.mxu0 %v1602
    %2073 = vmatpush.msra.mxu0 %v1598
    %2074 = vmatpush.msra.mxu0 %v1594
    %2075 = vmatpush.msra.mxu0 %v1590
    %2076 = vmatpush.msra.mxu0 %v1586
    %2077 = vmatpush.msra.mxu0 %v1582
    %2078 = vmatpush.msra.mxu0 %v1578
    %2079 = vmatpush.msra.mxu0 %v1574
    %2080 = vmatpush.msra.mxu0 %v1570
    %2081 = vmatpush.msra.mxu0 %v1566
    %2082 = vmatpush.msra.mxu0 %v1562
    %2083 = vmatpush.msra.mxu0 %v1558
    %2084 = vmatpush.msra.mxu0 %v1554
    %2085 = vmatpush.msra.mxu0 %v1550
    %2086 = vmatpush.msra.mxu0 %v1546
    %2087 = vmatpush.msra.mxu0 %v1542
    %2088 = vmatmul.f32.gmra.mxu0 %v2027
    %v2089 = vpop.f32.mrf.mxu0
    %v2090 = vadd.f32 0.0, %v2089
    %2091 = vdwg.mxu0
    %2092 = vmatpush.msra.mxu0 %v1603
    %2093 = vmatpush.msra.mxu0 %v1599
    %2094 = vmatpush.msra.mxu0 %v1595
    %2095 = vmatpush.msra.mxu0 %v1591
    %2096 = vmatpush.msra.mxu0 %v1587
    %2097 = vmatpush.msra.mxu0 %v1583
    %2098 = vmatpush.msra.mxu0 %v1579
    %2099 = vmatpush.msra.mxu0 %v1575
    %2100 = vmatpush.msra.mxu0 %v1571
    %2101 = vmatpush.msra.mxu0 %v1567
    %2102 = vmatpush.msra.mxu0 %v1563
    %2103 = vmatpush.msra.mxu0 %v1559
    %2104 = vmatpush.msra.mxu0 %v1555
    %2105 = vmatpush.msra.mxu0 %v1551
    %2106 = vmatpush.msra.mxu0 %v1547
    %2107 = vmatpush.msra.mxu0 %v1543
    %2108 = vmatmul.f32.gmra.mxu0 %v2027
    %v2109 = vpop.f32.mrf.mxu0
    %v2110 = vadd.f32 0.0, %v2109
    %2111 = vdwg.mxu0
    %v2112 = vadd.f32 %v2028, %v2050
    %v2113 = vadd.f32 %v2029, %v2070
    %v2114 = vadd.f32 %v2030, %v2090
    %v2115 = vadd.f32 %v2031, %v2110
    %v2116 = vmul.f32 %v2112, 0.5
    %v2117 = vtanh.pop %v2116
    %v2118 = vmul.f32 %v2117, 0.5
    %v2119 = vadd.f32 %v2118, 0.5
    %v2120 = vmul.f32 %v2113, 0.5
    %v2121 = vtanh.pop %v2120
    %v2122 = vmul.f32 %v2121, 0.5
    %v2123 = vadd.f32 %v2122, 0.5
    %v2124 = vtanh.pop %v2114
    %v2125 = vmul.f32 %v2115, 0.5
    %v2126 = vtanh.pop %v2125
    %v2127 = vmul.f32 %v2126, 0.5
    %v2128 = vadd.f32 %v2127, 0.5
    %v2129 = vmul.f32 %v2123, %v2025
    %v2130 = vmul.f32 %v2119, %v2124
    %v2131 = vadd.f32 %v2129, %v2130
    %v2132 = vtanh.pop %v2131
    %v2133 = vmul.f32 %v2128, %v2132
    %v2134 = vld [vmem:[#allocation2 + $0xa0] sm:$0xff]
    %v2135 = vld [vmem:[#allocation2 + $0xa8] sm:$0xff]
    %v2136 = vld [vmem:[#allocation2 + $0xb0] sm:$0xff]
    %v2137 = vld [vmem:[#allocation2 + $0xb8] sm:$0xff]
    %2138 = vmatpush.msra.mxu0 %v1600
    %2139 = vmatpush.msra.mxu0 %v1596
    %2140 = vmatpush.msra.mxu0 %v1592
    %2141 = vmatpush.msra.mxu0 %v1588
    %2142 = vmatpush.msra.mxu0 %v1584
    %2143 = vmatpush.msra.mxu0 %v1580
    %2144 = vmatpush.msra.mxu0 %v1576
    %2145 = vmatpush.msra.mxu0 %v1572
    %2146 = vmatpush.msra.mxu0 %v1568
    %2147 = vmatpush.msra.mxu0 %v1564
    %2148 = vmatpush.msra.mxu0 %v1560
    %2149 = vmatpush.msra.mxu0 %v1556
    %2150 = vmatpush.msra.mxu0 %v1552
    %2151 = vmatpush.msra.mxu0 %v1548
    %2152 = vmatpush.msra.mxu0 %v1544
    %2153 = vmatpush.msra.mxu0 %v1540
    %2154 = vmatmul.f32.gmra.mxu0 %v2133
    %v2155 = vpop.f32.mrf.mxu0
    %v2156 = vadd.f32 0.0, %v2155
    %2157 = vdwg.mxu0
    %2158 = vmatpush.msra.mxu0 %v1601
    %2159 = vmatpush.msra.mxu0 %v1597
    %2160 = vmatpush.msra.mxu0 %v1593
    %2161 = vmatpush.msra.mxu0 %v1589
    %2162 = vmatpush.msra.mxu0 %v1585
    %2163 = vmatpush.msra.mxu0 %v1581
    %2164 = vmatpush.msra.mxu0 %v1577
    %2165 = vmatpush.msra.mxu0 %v1573
    %2166 = vmatpush.msra.mxu0 %v1569
    %2167 = vmatpush.msra.mxu0 %v1565
    %2168 = vmatpush.msra.mxu0 %v1561
    %2169 = vmatpush.msra.mxu0 %v1557
    %2170 = vmatpush.msra.mxu0 %v1553
    %2171 = vmatpush.msra.mxu0 %v1549
    %2172 = vmatpush.msra.mxu0 %v1545
    %2173 = vmatpush.msra.mxu0 %v1541
    %2174 = vmatmul.f32.gmra.mxu0 %v2133
    %v2175 = vpop.f32.mrf.mxu0
    %v2176 = vadd.f32 0.0, %v2175
    %2177 = vdwg.mxu0
    %2178 = vmatpush.msra.mxu0 %v1602
    %2179 = vmatpush.msra.mxu0 %v1598
    %2180 = vmatpush.msra.mxu0 %v1594
    %2181 = vmatpush.msra.mxu0 %v1590
    %2182 = vmatpush.msra.mxu0 %v1586
    %2183 = vmatpush.msra.mxu0 %v1582
    %2184 = vmatpush.msra.mxu0 %v1578
    %2185 = vmatpush.msra.mxu0 %v1574
    %2186 = vmatpush.msra.mxu0 %v1570
    %2187 = vmatpush.msra.mxu0 %v1566
    %2188 = vmatpush.msra.mxu0 %v1562
    %2189 = vmatpush.msra.mxu0 %v1558
    %2190 = vmatpush.msra.mxu0 %v1554
    %2191 = vmatpush.msra.mxu0 %v1550
    %2192 = vmatpush.msra.mxu0 %v1546
    %2193 = vmatpush.msra.mxu0 %v1542
    %2194 = vmatmul.f32.gmra.mxu0 %v2133
    %v2195 = vpop.f32.mrf.mxu0
    %v2196 = vadd.f32 0.0, %v2195
    %2197 = vdwg.mxu0
    %2198 = vmatpush.msra.mxu0 %v1603
    %2199 = vmatpush.msra.mxu0 %v1599
    %2200 = vmatpush.msra.mxu0 %v1595
    %2201 = vmatpush.msra.mxu0 %v1591
    %2202 = vmatpush.msra.mxu0 %v1587
    %2203 = vmatpush.msra.mxu0 %v1583
    %2204 = vmatpush.msra.mxu0 %v1579
    %2205 = vmatpush.msra.mxu0 %v1575
    %2206 = vmatpush.msra.mxu0 %v1571
    %2207 = vmatpush.msra.mxu0 %v1567
    %2208 = vmatpush.msra.mxu0 %v1563
    %2209 = vmatpush.msra.mxu0 %v1559
    %2210 = vmatpush.msra.mxu0 %v1555
    %2211 = vmatpush.msra.mxu0 %v1551
    %2212 = vmatpush.msra.mxu0 %v1547
    %2213 = vmatpush.msra.mxu0 %v1543
    %2214 = vmatmul.f32.gmra.mxu0 %v2133
    %v2215 = vpop.f32.mrf.mxu0
    %v2216 = vadd.f32 0.0, %v2215
    %2217 = vdwg.mxu0
    %v2218 = vadd.f32 %v2134, %v2156
    %v2219 = vadd.f32 %v2135, %v2176
    %v2220 = vadd.f32 %v2136, %v2196
    %v2221 = vadd.f32 %v2137, %v2216
    %v2222 = vmul.f32 %v2218, 0.5
    %v2223 = vtanh.pop %v2222
    %v2224 = vmul.f32 %v2223, 0.5
    %v2225 = vadd.f32 %v2224, 0.5
    %v2226 = vmul.f32 %v2219, 0.5
    %v2227 = vtanh.pop %v2226
    %v2228 = vmul.f32 %v2227, 0.5
    %v2229 = vadd.f32 %v2228, 0.5
    %v2230 = vtanh.pop %v2220
    %v2231 = vmul.f32 %v2221, 0.5
    %v2232 = vtanh.pop %v2231
    %v2233 = vmul.f32 %v2232, 0.5
    %v2234 = vadd.f32 %v2233, 0.5
    %v2235 = vmul.f32 %v2229, %v2131
    %v2236 = vmul.f32 %v2225, %v2230
    %v2237 = vadd.f32 %v2235, %v2236
    %v2238 = vtanh.pop %v2237
    %v2239 = vmul.f32 %v2234, %v2238
    %v2240 = vld [vmem:[#allocation2 + $0xc0] sm:$0xff]
    %v2241 = vld [vmem:[#allocation2 + $0xc8] sm:$0xff]
    %v2242 = vld [vmem:[#allocation2 + $0xd0] sm:$0xff]
    %v2243 = vld [vmem:[#allocation2 + $0xd8] sm:$0xff]
    %2244 = vmatpush.msra.mxu0 %v1600
    %2245 = vmatpush.msra.mxu0 %v1596
    %2246 = vmatpush.msra.mxu0 %v1592
    %2247 = vmatpush.msra.mxu0 %v1588
    %2248 = vmatpush.msra.mxu0 %v1584
    %2249 = vmatpush.msra.mxu0 %v1580
    %2250 = vmatpush.msra.mxu0 %v1576
    %2251 = vmatpush.msra.mxu0 %v1572
    %2252 = vmatpush.msra.mxu0 %v1568
    %2253 = vmatpush.msra.mxu0 %v1564
    %2254 = vmatpush.msra.mxu0 %v1560
    %2255 = vmatpush.msra.mxu0 %v1556
    %2256 = vmatpush.msra.mxu0 %v1552
    %2257 = vmatpush.msra.mxu0 %v1548
    %2258 = vmatpush.msra.mxu0 %v1544
    %2259 = vmatpush.msra.mxu0 %v1540
    %2260 = vmatmul.f32.gmra.mxu0 %v2239
    %v2261 = vpop.f32.mrf.mxu0
    %v2262 = vadd.f32 0.0, %v2261
    %2263 = vdwg.mxu0
    %2264 = vmatpush.msra.mxu0 %v1601
    %2265 = vmatpush.msra.mxu0 %v1597
    %2266 = vmatpush.msra.mxu0 %v1593
    %2267 = vmatpush.msra.mxu0 %v1589
    %2268 = vmatpush.msra.mxu0 %v1585
    %2269 = vmatpush.msra.mxu0 %v1581
    %2270 = vmatpush.msra.mxu0 %v1577
    %2271 = vmatpush.msra.mxu0 %v1573
    %2272 = vmatpush.msra.mxu0 %v1569
    %2273 = vmatpush.msra.mxu0 %v1565
    %2274 = vmatpush.msra.mxu0 %v1561
    %2275 = vmatpush.msra.mxu0 %v1557
    %2276 = vmatpush.msra.mxu0 %v1553
    %2277 = vmatpush.msra.mxu0 %v1549
    %2278 = vmatpush.msra.mxu0 %v1545
    %2279 = vmatpush.msra.mxu0 %v1541
    %2280 = vmatmul.f32.gmra.mxu0 %v2239
    %v2281 = vpop.f32.mrf.mxu0
    %v2282 = vadd.f32 0.0, %v2281
    %2283 = vdwg.mxu0
    %2284 = vmatpush.msra.mxu0 %v1602
    %2285 = vmatpush.msra.mxu0 %v1598
    %2286 = vmatpush.msra.mxu0 %v1594
    %2287 = vmatpush.msra.mxu0 %v1590
    %2288 = vmatpush.msra.mxu0 %v1586
    %2289 = vmatpush.msra.mxu0 %v1582
    %2290 = vmatpush.msra.mxu0 %v1578
    %2291 = vmatpush.msra.mxu0 %v1574
    %2292 = vmatpush.msra.mxu0 %v1570
    %2293 = vmatpush.msra.mxu0 %v1566
    %2294 = vmatpush.msra.mxu0 %v1562
    %2295 = vmatpush.msra.mxu0 %v1558
    %2296 = vmatpush.msra.mxu0 %v1554
    %2297 = vmatpush.msra.mxu0 %v1550
    %2298 = vmatpush.msra.mxu0 %v1546
    %2299 = vmatpush.msra.mxu0 %v1542
    %2300 = vmatmul.f32.gmra.mxu0 %v2239
    %v2301 = vpop.f32.mrf.mxu0
    %v2302 = vadd.f32 0.0, %v2301
    %2303 = vdwg.mxu0
    %2304 = vmatpush.msra.mxu0 %v1603
    %2305 = vmatpush.msra.mxu0 %v1599
    %2306 = vmatpush.msra.mxu0 %v1595
    %2307 = vmatpush.msra.mxu0 %v1591
    %2308 = vmatpush.msra.mxu0 %v1587
    %2309 = vmatpush.msra.mxu0 %v1583
    %2310 = vmatpush.msra.mxu0 %v1579
    %2311 = vmatpush.msra.mxu0 %v1575
    %2312 = vmatpush.msra.mxu0 %v1571
    %2313 = vmatpush.msra.mxu0 %v1567
    %2314 = vmatpush.msra.mxu0 %v1563
    %2315 = vmatpush.msra.mxu0 %v1559
    %2316 = vmatpush.msra.mxu0 %v1555
    %2317 = vmatpush.msra.mxu0 %v1551
    %2318 = vmatpush.msra.mxu0 %v1547
    %2319 = vmatpush.msra.mxu0 %v1543
    %2320 = vmatmul.f32.gmra.mxu0 %v2239
    %v2321 = vpop.f32.mrf.mxu0
    %v2322 = vadd.f32 0.0, %v2321
    %2323 = vdwg.mxu0
    %v2324 = vadd.f32 %v2240, %v2262
    %v2325 = vadd.f32 %v2241, %v2282
    %v2326 = vadd.f32 %v2242, %v2302
    %v2327 = vadd.f32 %v2243, %v2322
    %v2328 = vmul.f32 %v2324, 0.5
    %v2329 = vtanh.pop %v2328
    %v2330 = vmul.f32 %v2329, 0.5
    %v2331 = vadd.f32 %v2330, 0.5
    %v2332 = vmul.f32 %v2325, 0.5
    %v2333 = vtanh.pop %v2332
    %v2334 = vmul.f32 %v2333, 0.5
    %v2335 = vadd.f32 %v2334, 0.5
    %v2336 = vtanh.pop %v2326
    %v2337 = vmul.f32 %v2327, 0.5
    %v2338 = vtanh.pop %v2337
    %v2339 = vmul.f32 %v2338, 0.5
    %v2340 = vadd.f32 %v2339, 0.5
    %v2341 = vmul.f32 %v2335, %v2237
    %v2342 = vmul.f32 %v2331, %v2336
    %v2343 = vadd.f32 %v2341, %v2342
    %v2344 = vtanh.pop %v2343
    %v2345 = vmul.f32 %v2340, %v2344
    %v2346 = vld [vmem:[#allocation2 + $0xe0] sm:$0xff]
    %v2347 = vld [vmem:[#allocation2 + $0xe8] sm:$0xff]
    %v2348 = vld [vmem:[#allocation2 + $0xf0] sm:$0xff]
    %v2349 = vld [vmem:[#allocation2 + $0xf8] sm:$0xff]
    %2350 = vmatpush.msra.mxu0 %v1600
    %2351 = vmatpush.msra.mxu0 %v1596
    %2352 = vmatpush.msra.mxu0 %v1592
    %2353 = vmatpush.msra.mxu0 %v1588
    %2354 = vmatpush.msra.mxu0 %v1584
    %2355 = vmatpush.msra.mxu0 %v1580
    %2356 = vmatpush.msra.mxu0 %v1576
    %2357 = vmatpush.msra.mxu0 %v1572
    %2358 = vmatpush.msra.mxu0 %v1568
    %2359 = vmatpush.msra.mxu0 %v1564
    %2360 = vmatpush.msra.mxu0 %v1560
    %2361 = vmatpush.msra.mxu0 %v1556
    %2362 = vmatpush.msra.mxu0 %v1552
    %2363 = vmatpush.msra.mxu0 %v1548
    %2364 = vmatpush.msra.mxu0 %v1544
    %2365 = vmatpush.msra.mxu0 %v1540
    %2366 = vmatmul.f32.gmra.mxu0 %v2345
    %v2367 = vpop.f32.mrf.mxu0
    %v2368 = vadd.f32 0.0, %v2367
    %2369 = vdwg.mxu0
    %2370 = vmatpush.msra.mxu0 %v1601
    %2371 = vmatpush.msra.mxu0 %v1597
    %2372 = vmatpush.msra.mxu0 %v1593
    %2373 = vmatpush.msra.mxu0 %v1589
    %2374 = vmatpush.msra.mxu0 %v1585
    %2375 = vmatpush.msra.mxu0 %v1581
    %2376 = vmatpush.msra.mxu0 %v1577
    %2377 = vmatpush.msra.mxu0 %v1573
    %2378 = vmatpush.msra.mxu0 %v1569
    %2379 = vmatpush.msra.mxu0 %v1565
    %2380 = vmatpush.msra.mxu0 %v1561
    %2381 = vmatpush.msra.mxu0 %v1557
    %2382 = vmatpush.msra.mxu0 %v1553
    %2383 = vmatpush.msra.mxu0 %v1549
    %2384 = vmatpush.msra.mxu0 %v1545
    %2385 = vmatpush.msra.mxu0 %v1541
    %2386 = vmatmul.f32.gmra.mxu0 %v2345
    %v2387 = vpop.f32.mrf.mxu0
    %v2388 = vadd.f32 0.0, %v2387
    %2389 = vdwg.mxu0
    %2390 = vmatpush.msra.mxu0 %v1602
    %2391 = vmatpush.msra.mxu0 %v1598
    %2392 = vmatpush.msra.mxu0 %v1594
    %2393 = vmatpush.msra.mxu0 %v1590
    %2394 = vmatpush.msra.mxu0 %v1586
    %2395 = vmatpush.msra.mxu0 %v1582
    %2396 = vmatpush.msra.mxu0 %v1578
    %2397 = vmatpush.msra.mxu0 %v1574
    %2398 = vmatpush.msra.mxu0 %v1570
    %2399 = vmatpush.msra.mxu0 %v1566
    %2400 = vmatpush.msra.mxu0 %v1562
    %2401 = vmatpush.msra.mxu0 %v1558
    %2402 = vmatpush.msra.mxu0 %v1554
    %2403 = vmatpush.msra.mxu0 %v1550
    %2404 = vmatpush.msra.mxu0 %v1546
    %2405 = vmatpush.msra.mxu0 %v1542
    %2406 = vmatmul.f32.gmra.mxu0 %v2345
    %v2407 = vpop.f32.mrf.mxu0
    %v2408 = vadd.f32 0.0, %v2407
    %2409 = vdwg.mxu0
    %2410 = vmatpush.msra.mxu0 %v1603
    %2411 = vmatpush.msra.mxu0 %v1599
    %2412 = vmatpush.msra.mxu0 %v1595
    %2413 = vmatpush.msra.mxu0 %v1591
    %2414 = vmatpush.msra.mxu0 %v1587
    %2415 = vmatpush.msra.mxu0 %v1583
    %2416 = vmatpush.msra.mxu0 %v1579
    %2417 = vmatpush.msra.mxu0 %v1575
    %2418 = vmatpush.msra.mxu0 %v1571
    %2419 = vmatpush.msra.mxu0 %v1567
    %2420 = vmatpush.msra.mxu0 %v1563
    %2421 = vmatpush.msra.mxu0 %v1559
    %2422 = vmatpush.msra.mxu0 %v1555
    %2423 = vmatpush.msra.mxu0 %v1551
    %2424 = vmatpush.msra.mxu0 %v1547
    %2425 = vmatpush.msra.mxu0 %v1543
    %2426 = vmatmul.f32.gmra.mxu0 %v2345
    %v2427 = vpop.f32.mrf.mxu0
    %v2428 = vadd.f32 0.0, %v2427
    %2429 = vdwg.mxu0
    %v2430 = vadd.f32 %v2346, %v2368
    %v2431 = vadd.f32 %v2347, %v2388
    %v2432 = vadd.f32 %v2348, %v2408
    %v2433 = vadd.f32 %v2349, %v2428
    %v2434 = vmul.f32 %v2430, 0.5
    %v2435 = vtanh.pop %v2434
    %v2436 = vmul.f32 %v2435, 0.5
    %v2437 = vadd.f32 %v2436, 0.5
    %v2438 = vmul.f32 %v2431, 0.5
    %v2439 = vtanh.pop %v2438
    %v2440 = vmul.f32 %v2439, 0.5
    %v2441 = vadd.f32 %v2440, 0.5
    %v2442 = vtanh.pop %v2432
    %v2443 = vmul.f32 %v2433, 0.5
    %v2444 = vtanh.pop %v2443
    %v2445 = vmul.f32 %v2444, 0.5
    %v2446 = vadd.f32 %v2445, 0.5
    %v2447 = vmul.f32 %v2441, %v2343
    %v2448 = vmul.f32 %v2437, %v2442
    %v2449 = vadd.f32 %v2447, %v2448
    %v2450 = vtanh.pop %v2449
    %v2451 = vmul.f32 %v2446, %v2450
    %v2452 = vld [vmem:[#allocation9] sm:$0xff]
    %v2453 = vld [vmem:[#allocation9 + $0x8] sm:$0xff]
    %v2454 = vld [vmem:[#allocation9 + $0x10] sm:$0xff]
    %v2455 = vld [vmem:[#allocation9 + $0x18] sm:$0xff]
    %v2456 = vld [vmem:[#allocation9 + $0x20] sm:$0xff]
    %v2457 = vld [vmem:[#allocation9 + $0x28] sm:$0xff]
    %v2458 = vld [vmem:[#allocation9 + $0x30] sm:$0xff]
    %v2459 = vld [vmem:[#allocation9 + $0x38] sm:$0xff]
    %v2460 = vld [vmem:[#allocation9 + $0x40] sm:$0xff]
    %v2461 = vld [vmem:[#allocation9 + $0x48] sm:$0xff]
    %v2462 = vld [vmem:[#allocation9 + $0x50] sm:$0xff]
    %v2463 = vld [vmem:[#allocation9 + $0x58] sm:$0xff]
    %v2464 = vld [vmem:[#allocation9 + $0x60] sm:$0xff]
    %v2465 = vld [vmem:[#allocation9 + $0x68] sm:$0xff]
    %v2466 = vld [vmem:[#allocation9 + $0x70] sm:$0xff]
    %v2467 = vld [vmem:[#allocation9 + $0x78] sm:$0xff]
    %v2468 = vld [vmem:[%s8] sm:$0x1]
    %v2470 = vperm.slane %v2468, 0
    %2472 = vmatpush.msra.mxu0 %v2467
    %2473 = vmatpush.msra.mxu0 %v2466
    %2474 = vmatpush.msra.mxu0 %v2465
    %2475 = vmatpush.msra.mxu0 %v2464
    %2476 = vmatpush.msra.mxu0 %v2463
    %2477 = vmatpush.msra.mxu0 %v2462
    %2478 = vmatpush.msra.mxu0 %v2461
    %2479 = vmatpush.msra.mxu0 %v2460
    %2480 = vmatpush.msra.mxu0 %v2459
    %2481 = vmatpush.msra.mxu0 %v2458
    %2482 = vmatpush.msra.mxu0 %v2457
    %2483 = vmatpush.msra.mxu0 %v2456
    %2484 = vmatpush.msra.mxu0 %v2455
    %2485 = vmatpush.msra.mxu0 %v2454
    %2486 = vmatpush.msra.mxu0 %v2453
    %2487 = vmatpush.msra.mxu0 %v2452
    %2488 = vmatmul.f32.gmra.mxu0 %v2451
    %v2489 = vpop.f32.mrf.mxu0
    %v2490 = vadd.f32 %v2470, %v2489
    %2491 = vdwg.mxu0
    %2492 = vst [vmem:[%s9] sm:$0xff] %v2490
    // Predicated region
    $region54: #{_forward.1} parent=1 // pred_check
      _
    $region55: #{_forward.1} parent=1 // pred_check_branch
      %2494 = sbr.rel (0) target = $region57
    $region56: #{_forward.1} parent=1 // pred_region
      _
    $region57: #{_forward.1} parent=1 // pred_fallthru
      _
    // Predicated region
    $region58: #{_forward.1} parent=1 // pred_check
      _
    $region59: #{_forward.1} parent=1 // pred_check_branch
      %2496 = sbr.rel (0) target = $region61
    $region60: #{_forward.1} parent=1 // pred_region
      _
    $region61: #{_forward.1} parent=1 // pred_fallthru
      _
    %2497 = vsyncpa [#allocation5], 1
    %2498 = vsyncpa [#allocation7], 1
    %2499 = vsyncpa [#allocation10], 1

</llo_original>
